<compile_context>
chip_gen: v7x
topology: tpu7x:2x2x1
jax: 0.10.0
libtpu: 0.0.40
codegen_flags: <defaults>
</compile_context>

<pallas_src>
import jax
import jax.numpy as jnp
from jax.experimental import pallas as pl
from jax.experimental.pallas import tpu as pltpu

EPS = 1e-5

# Logical (PyTorch) hidden widths and their lane-aligned padded widths.
H1_REAL, H2_REAL = 400, 300
H1_PAD, H2_PAD = 512, 384
OUT_PAD = 128

# Row indices in the packed per-feature-vector slab (one DMA instead of nine).
_ROW_G0, _ROW_BE0 = 0, 1
_ROW_B1, _ROW_G1, _ROW_BE1 = 2, 3, 4
_ROW_B2, _ROW_G2, _ROW_BE2 = 5, 6, 7
_ROW_B3 = 8
_NUM_ROWS = 9


def _batch_norm(h, gamma, beta):
    """Training-mode BatchNorm1d (biased variance, eps=1e-5).

    Single statistics pass: E[x] and E[x^2] from one sweep over (B, F), variance
    clamped at 0 to guard f32 cancellation; BN then folded into one per-feature
    affine so the normalisation costs a single mul+add pass over (B, F).
    """
    inv_b = 1.0 / h.shape[0]
    mu = jnp.sum(h, axis=0, keepdims=True) * inv_b
    ex2 = jnp.sum(h * h, axis=0, keepdims=True) * inv_b
    var = jnp.maximum(ex2 - mu * mu, 0.0)
    scale = gamma * jax.lax.rsqrt(var + EPS)    # EUP rsqrt (free slot)
    shift = beta - mu * scale
    return h * scale + shift                    # one (B, F) VPU pass


def actor_bn_kernel(umax_ref, x_ref, vec_ref, w1_ref, w2_ref, w3_ref, o_ref):
    # Static dims from the (static) ref shapes.
    x_dim = w1_ref.shape[0]
    h1 = w1_ref.shape[1]
    h2 = w2_ref.shape[1]
    out_pad = w3_ref.shape[1]

    # Unpack the coalesced per-feature vectors (static slices).
    g0 = vec_ref[_ROW_G0:_ROW_G0 + 1, :x_dim]
    be0 = vec_ref[_ROW_BE0:_ROW_BE0 + 1, :x_dim]
    b1 = vec_ref[_ROW_B1:_ROW_B1 + 1, :h1]
    g1 = vec_ref[_ROW_G1:_ROW_G1 + 1, :h1]
    be1 = vec_ref[_ROW_BE1:_ROW_BE1 + 1, :h1]
    b2 = vec_ref[_ROW_B2:_ROW_B2 + 1, :h2]
    g2 = vec_ref[_ROW_G2:_ROW_G2 + 1, :h2]
    be2 = vec_ref[_ROW_BE2:_ROW_BE2 + 1, :h2]
    b3 = vec_ref[_ROW_B3:_ROW_B3 + 1, :out_pad]

    x = x_ref[0].astype(jnp.float32)            # (B, x_dim); group dim squeezed

    # layer0_bn
    h = _batch_norm(x, g0, be0)

    # layer1 + layer1_bn + relu  (bf16 operands into the MXU, f32 accumulate/BN)
    h = jnp.dot(h.astype(jnp.bfloat16), w1_ref[...],
                preferred_element_type=jnp.float32) + b1
    h = jnp.maximum(_batch_norm(h, g1, be1), 0.0)

    # layer2 + layer2_bn + relu
    h = jnp.dot(h.astype(jnp.bfloat16), w2_ref[...],
                preferred_element_type=jnp.float32) + b2
    h = jnp.maximum(_batch_norm(h, g2, be2), 0.0)

    # layer3 + tanh * uMax (uMax from SMEM -> no recompile per value).
    # Output block is lane-dense (128 cols); padded cols are tanh(0)*uMax = 0.
    h = jnp.dot(h.astype(jnp.bfloat16), w3_ref[...],
                preferred_element_type=jnp.float32) + b3
    o_ref[0] = (umax_ref[0, 0] * jnp.tanh(h)).astype(o_ref.dtype)


def actor_bn_forward(x, params, u_max=1.0):
    """Fused ActorBN forward.

    x: (B, xDim)  -> returns (B, uDim)          (exact PyTorch-forward semantics)
       (G, B, xDim) -> returns (G, B, uDim)     (G independent BN groups; BN stats
                                                 are computed per group, grid axis
                                                 is "parallel" for v7x's 2 TCs)
    """
    squeeze_group = x.ndim == 2
    if squeeze_group:
        x = x[None]
    G, B, x_dim = x.shape
    u_dim = params["u_dim"]
    w1, w2, w3, vec = params["w1"], params["w2"], params["w3"], params["vec"]
    h1, h2, out_pad = w1.shape[1], w2.shape[1], w3.shape[1]

    umax_arr = jnp.full((1, 1), u_max, jnp.float32)

    flops = 2 * G * B * (x_dim * h1 + h1 * h2 + h2 * out_pad)
    transcendentals = G * (B * out_pad + 3 * (x_dim + h1 + h2))   # tanh + rsqrt
    bytes_accessed = (x.size * 4 + vec.size * 4
                      + (w1.size + w2.size + w3.size) * 2
                      + G * B * out_pad * 4)

    out_padded = pl.pallas_call(
        actor_bn_kernel,
        out_shape=jax.ShapeDtypeStruct((G, B, out_pad), jnp.float32),
        grid=(G,),
        in_specs=[
            # uMax scalar lives in SMEM, passed whole each grid step (tiny).
            pl.BlockSpec(memory_space=pltpu.MemorySpace.SMEM),
            # Per-group activation tile (full batch: BN needs whole-batch stats).
            pl.BlockSpec((1, B, x_dim), lambda g: (g, 0, 0)),
            # Constant index maps -> weights / vec slab DMA'd once, VMEM-resident.
            pl.BlockSpec(vec.shape, lambda g: (0, 0)),
            pl.BlockSpec(w1.shape, lambda g: (0, 0)),
            pl.BlockSpec(w2.shape, lambda g: (0, 0)),
            pl.BlockSpec(w3.shape, lambda g: (0, 0)),
        ],
        out_specs=pl.BlockSpec((1, B, out_pad), lambda g: (g, 0, 0)),
        compiler_params=pltpu.CompilerParams(
            dimension_semantics=("parallel",)),
        cost_estimate=pl.CostEstimate(flops=flops,
                                      transcendentals=transcendentals,
                                      bytes_accessed=bytes_accessed),
    )(umax_arr, x, vec, w1, w2, w3)

    y = out_padded[..., :u_dim]                 # drop dead (zero) output lanes
    return y[0] if squeeze_group else y


def _pack_vectors(vectors):
    """Pad each (1, F) row vector to the widest F and stack into one (9, maxF) slab."""
    max_f = max(v.shape[1] for v in vectors)
    rows = [jnp.pad(v, ((0, 0), (0, max_f - v.shape[1]))) for v in vectors]
    return jnp.concatenate(rows, axis=0)


def init_params(key, x_dim, u_dim):
    """Synthetic init mirroring ActorBN.__init__ distributions.

    fanin_init -> U(-1/sqrt(fanin), 1/sqrt(fanin)) for layers 1/2 (fanin = real
    xDim / 400), layer3 weight/bias -> U(-3e-3, 3e-3), BN gamma=1 / beta=0.
    Weights are stored as (in, out) (transposed vs PyTorch's (out, in)),
    zero-padded to lane-aligned widths (512 / 384 / 128) and cast to bf16.
    Padded rows/cols/biases/gammas are exactly zero -> padded features are dead.
    """
    ks = jax.random.split(key, 6)
    f1 = 1.0 / (x_dim ** 0.5)
    f2 = 1.0 / (H1_REAL ** 0.5)
    w3r = 3e-3

    def pad_cols(a, width):
        return jnp.pad(a, ((0, 0), (0, width - a.shape[1])))

    w1 = jax.random.uniform(ks[0], (x_dim, H1_REAL), jnp.float32, -f1, f1)
    b1 = jax.random.uniform(ks[1], (1, H1_REAL), jnp.float32, -f1, f1)
    w2 = jax.random.uniform(ks[2], (H1_REAL, H2_REAL), jnp.float32, -f2, f2)
    b2 = jax.random.uniform(ks[3], (1, H2_REAL), jnp.float32, -f2, f2)
    w3 = jax.random.uniform(ks[4], (H2_REAL, u_dim), jnp.float32, -w3r, w3r)
    b3 = jax.random.uniform(ks[5], (1, u_dim), jnp.float32, -w3r, w3r)

    w1p = pad_cols(w1, H1_PAD)                                           # (x_dim, 512)
    w2p = jnp.pad(w2, ((0, H1_PAD - H1_REAL), (0, H2_PAD - H2_REAL)))    # (512, 384)
    w3p = jnp.pad(w3, ((0, H2_PAD - H2_REAL), (0, OUT_PAD - u_dim)))     # (384, 128)

    g0 = jnp.ones((1, x_dim), jnp.float32)
    be0 = jnp.zeros((1, x_dim), jnp.float32)
    g1 = pad_cols(jnp.ones((1, H1_REAL), jnp.float32), H1_PAD)
    be1 = jnp.zeros((1, H1_PAD), jnp.float32)
    b1p = pad_cols(b1, H1_PAD)
    g2 = pad_cols(jnp.ones((1, H2_REAL), jnp.float32), H2_PAD)
    be2 = jnp.zeros((1, H2_PAD), jnp.float32)
    b2p = pad_cols(b2, H2_PAD)
    b3p = pad_cols(b3, OUT_PAD)

    return {
        "x_dim": x_dim,
        "u_dim": u_dim,
        # Single packed slab for all per-feature vectors -> one DMA instead of nine.
        "vec": _pack_vectors([g0, be0, b1p, g1, be1, b2p, g2, be2, b3p]),
        # bf16 weights: halve the weight DMA that dominates at small batch.
        # (v7x callers can drop to fp8+scales, v5e/v6e to int8+scales, for ~2x more.)
        "w1": w1p.astype(jnp.bfloat16),
        "w2": w2p.astype(jnp.bfloat16),
        "w3": w3p.astype(jnp.bfloat16),
    }


def actor_bn_reference(x, params, u_max=1.0):
    """Pure-JAX f32 reference (same bf16-rounded, padded weights; BN per group)."""
    squeeze = x.ndim == 2
    if squeeze:
        x = x[None]
    x_dim, u_dim = params["x_dim"], params["u_dim"]
    w1 = params["w1"].astype(jnp.float32)
    w2 = params["w2"].astype(jnp.float32)
    w3 = params["w3"].astype(jnp.float32)
    h1, h2, out_pad = w1.shape[1], w2.shape[1], w3.shape[1]
    vec = params["vec"]
    g0, be0 = vec[_ROW_G0:_ROW_G0 + 1, :x_dim], vec[_ROW_BE0:_ROW_BE0 + 1, :x_dim]
    b1, g1, be1 = (vec[_ROW_B1:_ROW_B1 + 1, :h1], vec[_ROW_G1:_ROW_G1 + 1, :h1],
                   vec[_ROW_BE1:_ROW_BE1 + 1, :h1])
    b2, g2, be2 = (vec[_ROW_B2:_ROW_B2 + 1, :h2], vec[_ROW_G2:_ROW_G2 + 1, :h2],
                   vec[_ROW_BE2:_ROW_BE2 + 1, :h2])
    b3 = vec[_ROW_B3:_ROW_B3 + 1, :out_pad]

    def bn(h, g, b):
        mu = jnp.mean(h, axis=0, keepdims=True)
        var = jnp.mean((h - mu) ** 2, axis=0, keepdims=True)
        return (h - mu) / jnp.sqrt(var + EPS) * g + b

    outs = []
    for gi in range(x.shape[0]):
        h = bn(x[gi], g0, be0)
        h = jnp.maximum(bn(h @ w1 + b1, g1, be1), 0.0)
        h = jnp.maximum(bn(h @ w2 + b2, g2, be2), 0.0)
        h = h @ w3 + b3
        outs.append(u_max * jnp.tanh(h))
    y = jnp.stack(outs)[..., :u_dim]
    return y[0] if squeeze else y


if __name__ == "__main__":
    x_dim, u_dim, u_max = 16, 4, 2.0
    # B=128 fills the MXU rows / bf16 sublanes; 2 groups exercise the "parallel"
    # grid axis (both v7x TensorCores).  BN is still over each group's full batch.
    groups, batch = 2, 128

    key = jax.random.PRNGKey(0)
    k_params, k_x = jax.random.split(key)
    params = init_params(k_params, x_dim, u_dim)
    x = jax.random.normal(k_x, (groups, batch, x_dim), jnp.float32)

    y = actor_bn_forward(x, params, u_max=u_max)
    y = jax.block_until_ready(y)
    assert y.shape == (groups, batch, u_dim)

    y_ref = actor_bn_reference(x, params, u_max=u_max)
    # bf16 matmul operands in the kernel vs f32 activations in the reference.
    assert jnp.allclose(y, y_ref, atol=2e-2, rtol=2e-2), "mismatch vs JAX reference"

    # Plain 2-D (B, xDim) path: exact ActorBN.forward shape semantics.
    y2 = jax.block_until_ready(actor_bn_forward(x[0], params, u_max=u_max))
    assert y2.shape == (batch, u_dim)
    assert jnp.allclose(y2, actor_bn_reference(x[0], params, u_max=u_max),
                        atol=2e-2, rtol=2e-2), "mismatch vs JAX reference (2-D path)"

    print("KERNEL_OK")
</pallas_src>

<mosaic_0001>
module attributes {stable_mosaic.version = 11 : i64} {
  func.func @actor_bn_kernel(%arg0: i32, %arg1: memref<1x1xf32, #tpu.memory_space<smem>>, %arg2: memref<1x128x16xf32, #tpu.memory_space<vmem>>, %arg3: memref<9x512xf32, #tpu.memory_space<vmem>>, %arg4: memref<16x512xbf16, #tpu.memory_space<vmem>>, %arg5: memref<512x384xbf16, #tpu.memory_space<vmem>>, %arg6: memref<384x128xbf16, #tpu.memory_space<vmem>>, %arg7: memref<1x128x128xf32, #tpu.memory_space<vmem>>) attributes {dimension_semantics = [#tpu.dimension_semantics<parallel>], iteration_bounds = array<i64: 2>, scalar_prefetch = 0 : i64, scratch_operands = 0 : i64, tpu.core_type = #tpu.core_type<tc>, window_params = [{transform_indices = @transform_0, window_bounds = array<i64: 1, 1>}, {transform_indices = @transform_1, window_bounds = array<i64: 1, 128, 16>}, {pipeline_mode = #tpu.pipeline_mode<synchronous>, transform_indices = @transform_2, window_bounds = array<i64: 9, 512>}, {pipeline_mode = #tpu.pipeline_mode<synchronous>, transform_indices = @transform_3, window_bounds = array<i64: 16, 512>}, {pipeline_mode = #tpu.pipeline_mode<synchronous>, transform_indices = @transform_4, window_bounds = array<i64: 512, 384>}, {pipeline_mode = #tpu.pipeline_mode<synchronous>, transform_indices = @transform_5, window_bounds = array<i64: 384, 128>}, {transform_indices = @transform_6, window_bounds = array<i64: 1, 128, 128>}]} {
    %c0 = arith.constant 0 : index
    %c0_0 = arith.constant 0 : index
    %0 = vector.load %arg3[%c0, %c0_0] : memref<9x512xf32, #tpu.memory_space<vmem>>, vector<1x16xf32>
    %c1 = arith.constant 1 : index
    %c0_1 = arith.constant 0 : index
    %1 = vector.load %arg3[%c1, %c0_1] : memref<9x512xf32, #tpu.memory_space<vmem>>, vector<1x16xf32>
    %c2 = arith.constant 2 : index
    %c0_2 = arith.constant 0 : index
    %2 = vector.load %arg3[%c2, %c0_2] : memref<9x512xf32, #tpu.memory_space<vmem>>, vector<1x512xf32>
    %c3 = arith.constant 3 : index
    %c0_3 = arith.constant 0 : index
    %3 = vector.load %arg3[%c3, %c0_3] : memref<9x512xf32, #tpu.memory_space<vmem>>, vector<1x512xf32>
    %c4 = arith.constant 4 : index
    %c0_4 = arith.constant 0 : index
    %4 = vector.load %arg3[%c4, %c0_4] : memref<9x512xf32, #tpu.memory_space<vmem>>, vector<1x512xf32>
    %c5 = arith.constant 5 : index
    %c0_5 = arith.constant 0 : index
    %5 = vector.load %arg3[%c5, %c0_5] : memref<9x512xf32, #tpu.memory_space<vmem>>, vector<1x384xf32>
    %c6 = arith.constant 6 : index
    %c0_6 = arith.constant 0 : index
    %6 = vector.load %arg3[%c6, %c0_6] : memref<9x512xf32, #tpu.memory_space<vmem>>, vector<1x384xf32>
    %c7 = arith.constant 7 : index
    %c0_7 = arith.constant 0 : index
    %7 = vector.load %arg3[%c7, %c0_7] : memref<9x512xf32, #tpu.memory_space<vmem>>, vector<1x384xf32>
    %c8 = arith.constant 8 : index
    %c0_8 = arith.constant 0 : index
    %8 = vector.load %arg3[%c8, %c0_8] : memref<9x512xf32, #tpu.memory_space<vmem>>, vector<1x128xf32>
    %c0_9 = arith.constant 0 : index
    %c0_10 = arith.constant 0 : index
    %c0_11 = arith.constant 0 : index
    %9 = vector.load %arg2[%c0_9, %c0_10, %c0_11] : memref<1x128x16xf32, #tpu.memory_space<vmem>>, vector<1x128x16xf32>
    %10 = vector.shape_cast %9 : vector<1x128x16xf32> to vector<128x16xf32>
    %cst = arith.constant dense<0.000000e+00> : vector<16xf32>
    %11 = vector.multi_reduction <add>, %10, %cst [0] : vector<128x16xf32> to vector<16xf32>
    %12 = vector.shape_cast %11 : vector<16xf32> to vector<1x16xf32>
    %cst_12 = arith.constant 7.812500e-03 : f32
    %13 = vector.broadcast %cst_12 : f32 to vector<1x16xf32>
    %14 = arith.mulf %12, %13 : vector<1x16xf32>
    %15 = arith.mulf %10, %10 : vector<128x16xf32>
    %cst_13 = arith.constant dense<0.000000e+00> : vector<16xf32>
    %16 = vector.multi_reduction <add>, %15, %cst_13 [0] : vector<128x16xf32> to vector<16xf32>
    %17 = vector.shape_cast %16 : vector<16xf32> to vector<1x16xf32>
    %cst_14 = arith.constant 7.812500e-03 : f32
    %18 = vector.broadcast %cst_14 : f32 to vector<1x16xf32>
    %19 = arith.mulf %17, %18 : vector<1x16xf32>
    %20 = arith.mulf %14, %14 : vector<1x16xf32>
    %21 = arith.subf %19, %20 : vector<1x16xf32>
    %cst_15 = arith.constant 0.000000e+00 : f32
    %22 = vector.broadcast %cst_15 : f32 to vector<1x16xf32>
    %23 = arith.maximumf %21, %22 : vector<1x16xf32>
    %cst_16 = arith.constant 9.99999974E-6 : f32
    %24 = vector.broadcast %cst_16 : f32 to vector<1x16xf32>
    %25 = arith.addf %23, %24 : vector<1x16xf32>
    %26 = math.rsqrt %25 : vector<1x16xf32>
    %27 = arith.mulf %0, %26 : vector<1x16xf32>
    %28 = arith.mulf %14, %27 : vector<1x16xf32>
    %29 = arith.subf %1, %28 : vector<1x16xf32>
    %30 = vector.broadcast %27 : vector<1x16xf32> to vector<128x16xf32>
    %31 = arith.mulf %10, %30 : vector<128x16xf32>
    %32 = vector.broadcast %29 : vector<1x16xf32> to vector<128x16xf32>
    %33 = arith.addf %31, %32 : vector<128x16xf32>
    %34 = arith.truncf %33 : vector<128x16xf32> to vector<128x16xbf16>
    %c0_17 = arith.constant 0 : index
    %c0_18 = arith.constant 0 : index
    %35 = vector.load %arg4[%c0_17, %c0_18] : memref<16x512xbf16, #tpu.memory_space<vmem>>, vector<16x512xbf16>
    %cst_19 = arith.constant dense<0.000000e+00> : vector<128x512xf32>
    %36 = tpu.matmul %34, %35, %cst_19 {dimension_numbers = #tpu.dot_dimension_numbers<[1], [0], [0], [1], [0, 0, 1, 1], [], []>} : vector<128x16xbf16>, vector<16x512xbf16>, vector<128x512xf32> -> vector<128x512xf32>
    %37 = vector.broadcast %2 : vector<1x512xf32> to vector<128x512xf32>
    %38 = arith.addf %36, %37 : vector<128x512xf32>
    %cst_20 = arith.constant dense<0.000000e+00> : vector<512xf32>
    %39 = vector.multi_reduction <add>, %38, %cst_20 [0] : vector<128x512xf32> to vector<512xf32>
    %40 = vector.shape_cast %39 : vector<512xf32> to vector<1x512xf32>
    %cst_21 = arith.constant 7.812500e-03 : f32
    %41 = vector.broadcast %cst_21 : f32 to vector<1x512xf32>
    %42 = arith.mulf %40, %41 : vector<1x512xf32>
    %43 = arith.mulf %38, %38 : vector<128x512xf32>
    %cst_22 = arith.constant dense<0.000000e+00> : vector<512xf32>
    %44 = vector.multi_reduction <add>, %43, %cst_22 [0] : vector<128x512xf32> to vector<512xf32>
    %45 = vector.shape_cast %44 : vector<512xf32> to vector<1x512xf32>
    %cst_23 = arith.constant 7.812500e-03 : f32
    %46 = vector.broadcast %cst_23 : f32 to vector<1x512xf32>
    %47 = arith.mulf %45, %46 : vector<1x512xf32>
    %48 = arith.mulf %42, %42 : vector<1x512xf32>
    %49 = arith.subf %47, %48 : vector<1x512xf32>
    %cst_24 = arith.constant 0.000000e+00 : f32
    %50 = vector.broadcast %cst_24 : f32 to vector<1x512xf32>
    %51 = arith.maximumf %49, %50 : vector<1x512xf32>
    %cst_25 = arith.constant 9.99999974E-6 : f32
    %52 = vector.broadcast %cst_25 : f32 to vector<1x512xf32>
    %53 = arith.addf %51, %52 : vector<1x512xf32>
    %54 = math.rsqrt %53 : vector<1x512xf32>
    %55 = arith.mulf %3, %54 : vector<1x512xf32>
    %56 = arith.mulf %42, %55 : vector<1x512xf32>
    %57 = arith.subf %4, %56 : vector<1x512xf32>
    %58 = vector.broadcast %55 : vector<1x512xf32> to vector<128x512xf32>
    %59 = arith.mulf %38, %58 : vector<128x512xf32>
    %60 = vector.broadcast %57 : vector<1x512xf32> to vector<128x512xf32>
    %61 = arith.addf %59, %60 : vector<128x512xf32>
    %cst_26 = arith.constant 0.000000e+00 : f32
    %62 = vector.broadcast %cst_26 : f32 to vector<128x512xf32>
    %63 = arith.maximumf %61, %62 : vector<128x512xf32>
    %64 = arith.truncf %63 : vector<128x512xf32> to vector<128x512xbf16>
    %c0_27 = arith.constant 0 : index
    %c0_28 = arith.constant 0 : index
    %65 = vector.load %arg5[%c0_27, %c0_28] : memref<512x384xbf16, #tpu.memory_space<vmem>>, vector<512x384xbf16>
    %cst_29 = arith.constant dense<0.000000e+00> : vector<128x384xf32>
    %66 = tpu.matmul %64, %65, %cst_29 {dimension_numbers = #tpu.dot_dimension_numbers<[1], [0], [0], [1], [0, 0, 1, 1], [], []>} : vector<128x512xbf16>, vector<512x384xbf16>, vector<128x384xf32> -> vector<128x384xf32>
    %67 = vector.broadcast %5 : vector<1x384xf32> to vector<128x384xf32>
    %68 = arith.addf %66, %67 : vector<128x384xf32>
    %cst_30 = arith.constant dense<0.000000e+00> : vector<384xf32>
    %69 = vector.multi_reduction <add>, %68, %cst_30 [0] : vector<128x384xf32> to vector<384xf32>
    %70 = vector.shape_cast %69 : vector<384xf32> to vector<1x384xf32>
    %cst_31 = arith.constant 7.812500e-03 : f32
    %71 = vector.broadcast %cst_31 : f32 to vector<1x384xf32>
    %72 = arith.mulf %70, %71 : vector<1x384xf32>
    %73 = arith.mulf %68, %68 : vector<128x384xf32>
    %cst_32 = arith.constant dense<0.000000e+00> : vector<384xf32>
    %74 = vector.multi_reduction <add>, %73, %cst_32 [0] : vector<128x384xf32> to vector<384xf32>
    %75 = vector.shape_cast %74 : vector<384xf32> to vector<1x384xf32>
    %cst_33 = arith.constant 7.812500e-03 : f32
    %76 = vector.broadcast %cst_33 : f32 to vector<1x384xf32>
    %77 = arith.mulf %75, %76 : vector<1x384xf32>
    %78 = arith.mulf %72, %72 : vector<1x384xf32>
    %79 = arith.subf %77, %78 : vector<1x384xf32>
    %cst_34 = arith.constant 0.000000e+00 : f32
    %80 = vector.broadcast %cst_34 : f32 to vector<1x384xf32>
    %81 = arith.maximumf %79, %80 : vector<1x384xf32>
    %cst_35 = arith.constant 9.99999974E-6 : f32
    %82 = vector.broadcast %cst_35 : f32 to vector<1x384xf32>
    %83 = arith.addf %81, %82 : vector<1x384xf32>
    %84 = math.rsqrt %83 : vector<1x384xf32>
    %85 = arith.mulf %6, %84 : vector<1x384xf32>
    %86 = arith.mulf %72, %85 : vector<1x384xf32>
    %87 = arith.subf %7, %86 : vector<1x384xf32>
    %88 = vector.broadcast %85 : vector<1x384xf32> to vector<128x384xf32>
    %89 = arith.mulf %68, %88 : vector<128x384xf32>
    %90 = vector.broadcast %87 : vector<1x384xf32> to vector<128x384xf32>
    %91 = arith.addf %89, %90 : vector<128x384xf32>
    %cst_36 = arith.constant 0.000000e+00 : f32
    %92 = vector.broadcast %cst_36 : f32 to vector<128x384xf32>
    %93 = arith.maximumf %91, %92 : vector<128x384xf32>
    %94 = arith.truncf %93 : vector<128x384xf32> to vector<128x384xbf16>
    %c0_37 = arith.constant 0 : index
    %c0_38 = arith.constant 0 : index
    %95 = vector.load %arg6[%c0_37, %c0_38] : memref<384x128xbf16, #tpu.memory_space<vmem>>, vector<384x128xbf16>
    %cst_39 = arith.constant dense<0.000000e+00> : vector<128x128xf32>
    %96 = tpu.matmul %94, %95, %cst_39 {dimension_numbers = #tpu.dot_dimension_numbers<[1], [0], [0], [1], [0, 0, 1, 1], [], []>} : vector<128x384xbf16>, vector<384x128xbf16>, vector<128x128xf32> -> vector<128x128xf32>
    %97 = vector.broadcast %8 : vector<1x128xf32> to vector<128x128xf32>
    %98 = arith.addf %96, %97 : vector<128x128xf32>
    %c0_40 = arith.constant 0 : index
    %c0_41 = arith.constant 0 : index
    %99 = memref.load %arg1[%c0_40, %c0_41] : memref<1x1xf32, #tpu.memory_space<smem>>
    %100 = math.tanh %98 : vector<128x128xf32>
    %101 = vector.broadcast %99 : f32 to vector<128x128xf32>
    %102 = arith.mulf %101, %100 : vector<128x128xf32>
    %c0_42 = arith.constant 0 : index
    %c0_43 = arith.constant 0 : index
    %c0_44 = arith.constant 0 : index
    %103 = vector.load %arg7[%c0_42, %c0_43, %c0_44] : memref<1x128x128xf32, #tpu.memory_space<vmem>>, vector<1x128x128xf32>
    %104 = vector.shape_cast %103 : vector<1x128x128xf32> to vector<128x128xf32>
    %105 = vector.shape_cast %102 : vector<128x128xf32> to vector<1x128x128xf32>
    tpu.vector_store %arg7[%c0_42, %c0_43, %c0_44], %105 {strides = array<i32>} : memref<1x128x128xf32, #tpu.memory_space<vmem>>, vector<1x128x128xf32>,
    return
  }
  func.func @transform_0(%arg0: i32) -> (i32, i32) {
    %c0_i32 = arith.constant 0 : i32
    %c0_i32_0 = arith.constant 0 : i32
    %c0_i32_1 = arith.constant 0 : i32
    return %c0_i32, %c0_i32_0 : i32, i32
  }
  func.func @transform_1(%arg0: i32) -> (i32, i32, i32) {
    %c0_i32 = arith.constant 0 : i32
    %c0_i32_0 = arith.constant 0 : i32
    %c0_i32_1 = arith.constant 0 : i32
    return %arg0, %c0_i32, %c0_i32_0 : i32, i32, i32
  }
  func.func @transform_2(%arg0: i32) -> (i32, i32) {
    %c0_i32 = arith.constant 0 : i32
    %c0_i32_0 = arith.constant 0 : i32
    %c0_i32_1 = arith.constant 0 : i32
    return %c0_i32, %c0_i32_0 : i32, i32
  }
  func.func @transform_3(%arg0: i32) -> (i32, i32) {
    %c0_i32 = arith.constant 0 : i32
    %c0_i32_0 = arith.constant 0 : i32
    %c0_i32_1 = arith.constant 0 : i32
    return %c0_i32, %c0_i32_0 : i32, i32
  }
  func.func @transform_4(%arg0: i32) -> (i32, i32) {
    %c0_i32 = arith.constant 0 : i32
    %c0_i32_0 = arith.constant 0 : i32
    %c0_i32_1 = arith.constant 0 : i32
    return %c0_i32, %c0_i32_0 : i32, i32
  }
  func.func @transform_5(%arg0: i32) -> (i32, i32) {
    %c0_i32 = arith.constant 0 : i32
    %c0_i32_0 = arith.constant 0 : i32
    %c0_i32_1 = arith.constant 0 : i32
    return %c0_i32, %c0_i32_0 : i32, i32
  }
  func.func @transform_6(%arg0: i32) -> (i32, i32, i32) {
    %c0_i32 = arith.constant 0 : i32
    %c0_i32_0 = arith.constant 0 : i32
    %c0_i32_1 = arith.constant 0 : i32
    return %arg0, %c0_i32, %c0_i32_0 : i32, i32, i32
  }
}

</mosaic_0001>

<llo_original>
// kernel: tpu_custom_call.1
$region0: #{tpu_custom_call.1}
  #allocation0 [shape = 'u32[]', space=smem, size = 0x4, offset = 0x4, fixed_abs, tag = 'smem constant byte address 0x4 - core index']
  #allocation1 [shape = 'u32[144,128]{1,0:T(1,128)}', space=vmem, size = 0x12000, scoped, tag = 'internal scratch']
  #allocation2 [shape = 'f32[1,1]{1,0:T(1,128)S(6)}', space=smem, size = 0x200, scoped, tag = 'scoped memory for tpu_custom_call.1']
  %s0 = inlined_call_operand.<no memory space> [shape: f32[1,1], index: 0, kind: input, shape index: {}]
  %s1 = inlined_call_operand.vmem [shape: f32[2,128,16], index: 1, kind: input, shape index: {}]
  %s2 = inlined_call_operand.vmem [shape: f32[9,512], index: 2, kind: input, shape index: {}]
  %s3 = inlined_call_operand.vmem [shape: bf16[16,512], index: 3, kind: input, shape index: {}]
  %s4 = inlined_call_operand.hbm [shape: bf16[512,384], index: 4, kind: input, shape index: {}]
  %s5 = inlined_call_operand.vmem [shape: bf16[384,128], index: 5, kind: input, shape index: {}]
  %s6 = inlined_call_operand.hbm [shape: f32[2,128,128], index: 6, kind: output, shape index: {}]
  %s7 = sld [smem:[#allocation0]]
  $region61: #{tpu_custom_call.1} parent=0
    _
  %s9 = ssub.s32 1, %s7
  %s10 = scalar_select 0, %s9, %s7
  %11 = sst [smem:[#allocation2]] %s0
  $region1: #{tpu_custom_call.1} parent=0
    #allocation3 [shape = 'u8[393216]{0}', space=vmem, size = 0x60000, scoped, tag = 'input window, operand 4, single buffered']
    #allocation4 [shape = 's32[2]{0}', space=sflag, size = 0x8, scoped, tag = 'scoped memory for tpu_custom_call.1']
    #allocation5 [shape = 's32[2]{0}', space=sflag, size = 0x8, scoped, tag = 'scoped memory for tpu_custom_call.1']
    #allocation6 [shape = 'u8[131072]{0}', space=vmem, size = 0x20000, scoped, tag = 'output window, operand 0']
    %12 = vsyncpa [#allocation4], 0
    %13 = vsyncpa [#allocation5], 0
    %s14 = scalar_lea.sflag [#allocation5], 1
    %15 = vsyncpa %s14, 0
    loop: start=0, step=1, limit=4
    $region2: #{tpu_custom_call.1} parent=1 // loop_pre_header
      _
    $region3: #{tpu_custom_call.1} parent=1 // loop_header
      %s17 = sphi 0, %s21
      %p18 = scmp.ge.s32.totalorder %s17, 4
      %s25 = sphi 0, %s25
      %s27 = sphi 0, %s25
      %s28 = sphi 0, %s27
      %s42 = sphi 0, %s28
      %s48 = sphi 0, %s50
      %s51 = sphi 0, %s48
      %s52 = sphi 0, %s51
      %s68 = sphi 0, %s52
      %s72 = sphi 0, %s72
      %s74 = sphi 0, %s72
      %s75 = sphi 0, %s74
      %s89 = sphi 0, %s75
      %s93 = sphi 0, %s93
      %s95 = sphi 0, %s93
      %s96 = sphi 0, %s95
      %s110 = sphi 0, %s96
      %s114 = sphi 0, %s114
      %s116 = sphi 0, %s114
      %s117 = sphi 0, %s116
      %s131 = sphi 0, %s117
      %s135 = sphi 0, %s135
      %s137 = sphi 0, %s135
      %s138 = sphi 0, %s137
      %s152 = sphi 0, %s138
      %s158 = sphi 0, %s160
      %s161 = sphi 0, %s158
      %s162 = sphi 0, %s161
      %s178 = sphi 0, %s162
    $region4: #{tpu_custom_call.1} parent=1 // loop_header_branch
      %20 = sbr.rel (%p18) target = $region8
    $region5: #{tpu_custom_call.1} parent=1 // loop_body
      %s22 = ssub.s32 %s17, 1
      %s23 = ssub.s32 %s17, 2
      %s24 = sadd.s32 %s17, 1
      %s26 = sadd.s32 %s25, 1
      %p29 = scmp.eq.s32.totalorder %s17, 1
      %p30 = scmp.ne.s32.totalorder %s25, %s27
      %p31 = scmp.eq.s32.totalorder %s17, 0
      %p32 = por %p30, %p31
      %p33 = scmp.ne.s32.totalorder %s25, %s27
      %p34 = scmp.eq.s32.totalorder %s22, 1
      %p35 = por %p33, %p34
      %p36 = scmp.ne.s32.totalorder %s27, %s28
      %p37 = scmp.eq.s32.totalorder %s22, 0
      %p38 = por %p36, %p37
      %p39 = scmp.ne.s32.totalorder %s27, %s28
      %p40 = scmp.eq.s32.totalorder %s23, 1
      %p41 = por %p39, %p40
      %p43 = scmp.ne.s32.totalorder %s28, %s42
      %p44 = scmp.eq.s32.totalorder %s23, 0
      %p45 = por %p43, %p44
      %s46 = ssub.s32 %s17, %s24
      %p47 = scmp.eq.s32.totalorder %s46, 0
      %s49 = sadd.s32 %s48, 1
      %s50 = scalar_select %p47, %s48, %s49
      %p53 = pneg %p47
      %p54 = scmp.eq.s32.totalorder %s17, 1
      %p55 = por %p53, %p54
      %p56 = scmp.ne.s32.totalorder %s48, %s51
      %p57 = scmp.eq.s32.totalorder %s17, 0
      %p58 = por %p56, %p57
      %p59 = scmp.ne.s32.totalorder %s48, %s51
      %p60 = scmp.eq.s32.totalorder %s22, 1
      %p61 = por %p59, %p60
      %p62 = scmp.ne.s32.totalorder %s51, %s52
      %p63 = scmp.eq.s32.totalorder %s22, 0
      %p64 = por %p62, %p63
      %p65 = scmp.ne.s32.totalorder %s51, %s52
      %p66 = scmp.eq.s32.totalorder %s23, 1
      %p67 = por %p65, %p66
      %p69 = scmp.ne.s32.totalorder %s52, %s68
      %p70 = scmp.eq.s32.totalorder %s23, 0
      %p71 = por %p69, %p70
      %s73 = sadd.s32 %s72, 1
      %p76 = scmp.eq.s32.totalorder %s17, 1
      %p77 = scmp.ne.s32.totalorder %s72, %s74
      %p78 = scmp.eq.s32.totalorder %s17, 0
      %p79 = por %p77, %p78
      %p80 = scmp.ne.s32.totalorder %s72, %s74
      %p81 = scmp.eq.s32.totalorder %s22, 1
      %p82 = por %p80, %p81
      %p83 = scmp.ne.s32.totalorder %s74, %s75
      %p84 = scmp.eq.s32.totalorder %s22, 0
      %p85 = por %p83, %p84
      %p86 = scmp.ne.s32.totalorder %s74, %s75
      %p87 = scmp.eq.s32.totalorder %s23, 1
      %p88 = por %p86, %p87
      %p90 = scmp.ne.s32.totalorder %s75, %s89
      %p91 = scmp.eq.s32.totalorder %s23, 0
      %p92 = por %p90, %p91
      %s94 = sadd.s32 %s93, 1
      %p97 = scmp.eq.s32.totalorder %s17, 1
      %p98 = scmp.ne.s32.totalorder %s93, %s95
      %p99 = scmp.eq.s32.totalorder %s17, 0
      %p100 = por %p98, %p99
      %p101 = scmp.ne.s32.totalorder %s93, %s95
      %p102 = scmp.eq.s32.totalorder %s22, 1
      %p103 = por %p101, %p102
      %p104 = scmp.ne.s32.totalorder %s95, %s96
      %p105 = scmp.eq.s32.totalorder %s22, 0
      %p106 = por %p104, %p105
      %p107 = scmp.ne.s32.totalorder %s95, %s96
      %p108 = scmp.eq.s32.totalorder %s23, 1
      %p109 = por %p107, %p108
      %p111 = scmp.ne.s32.totalorder %s96, %s110
      %p112 = scmp.eq.s32.totalorder %s23, 0
      %p113 = por %p111, %p112
      %s115 = sadd.s32 %s114, 1
      %p118 = scmp.eq.s32.totalorder %s17, 1
      %p119 = scmp.ne.s32.totalorder %s114, %s116
      %p120 = scmp.eq.s32.totalorder %s17, 0
      %p121 = por %p119, %p120
      %p122 = scmp.ne.s32.totalorder %s114, %s116
      %p123 = scmp.eq.s32.totalorder %s22, 1
      %p124 = por %p122, %p123
      %p125 = scmp.ne.s32.totalorder %s116, %s117
      %p126 = scmp.eq.s32.totalorder %s22, 0
      %p127 = por %p125, %p126
      %p128 = scmp.ne.s32.totalorder %s116, %s117
      %p129 = scmp.eq.s32.totalorder %s23, 1
      %p130 = por %p128, %p129
      %p132 = scmp.ne.s32.totalorder %s117, %s131
      %p133 = scmp.eq.s32.totalorder %s23, 0
      %p134 = por %p132, %p133
      %s136 = sadd.s32 %s135, 1
      %p139 = scmp.eq.s32.totalorder %s17, 1
      %p140 = scmp.ne.s32.totalorder %s135, %s137
      %p141 = scmp.eq.s32.totalorder %s17, 0
      %p142 = por %p140, %p141
      %p143 = scmp.ne.s32.totalorder %s135, %s137
      %p144 = scmp.eq.s32.totalorder %s22, 1
      %p145 = por %p143, %p144
      %p146 = scmp.ne.s32.totalorder %s137, %s138
      %p147 = scmp.eq.s32.totalorder %s22, 0
      %p148 = por %p146, %p147
      %p149 = scmp.ne.s32.totalorder %s137, %s138
      %p150 = scmp.eq.s32.totalorder %s23, 1
      %p151 = por %p149, %p150
      %p153 = scmp.ne.s32.totalorder %s138, %s152
      %p154 = scmp.eq.s32.totalorder %s23, 0
      %p155 = por %p153, %p154
      %s156 = ssub.s32 %s17, %s24
      %p157 = scmp.eq.s32.totalorder %s156, 0
      %s159 = sadd.s32 %s158, 1
      %s160 = scalar_select %p157, %s158, %s159
      %p163 = pneg %p157
      %p164 = scmp.eq.s32.totalorder %s17, 1
      %p165 = por %p163, %p164
      %p166 = scmp.ne.s32.totalorder %s158, %s161
      %p167 = scmp.eq.s32.totalorder %s17, 0
      %p168 = por %p166, %p167
      %p169 = scmp.ne.s32.totalorder %s158, %s161
      %p170 = scmp.eq.s32.totalorder %s22, 1
      %p171 = por %p169, %p170
      %p172 = scmp.ne.s32.totalorder %s161, %s162
      %p173 = scmp.eq.s32.totalorder %s22, 0
      %p174 = por %p172, %p173
      %p175 = scmp.ne.s32.totalorder %s161, %s162
      %p176 = scmp.eq.s32.totalorder %s23, 1
      %p177 = por %p175, %p176
      %p179 = scmp.ne.s32.totalorder %s162, %s178
      %p180 = scmp.eq.s32.totalorder %s23, 0
      %p181 = por %p179, %p180
      %p182 = scmp.le.s32.totalorder 1, %s17
      %p183 = scmp.lt.s32.totalorder %s17, 3
      %p184 = pnand %p182, %p183
      %p185 = pneg %p184
      // Predicated region
      $region9: #{tpu_custom_call.1} parent=5 // pred_check
        _
      $region10: #{tpu_custom_call.1} parent=5 // pred_check_branch
        %187 = sbr.rel (%p184) target = $region12
      $region11: #{tpu_custom_call.1} parent=5 // pred_region
        %s188 = ssub.s32 %s17, 1
        // Predicated region
        $region13: #{tpu_custom_call.1} parent=11 // pred_check
          %p189 = pneg %p38
        $region14: #{tpu_custom_call.1} parent=11 // pred_check_branch
          %191 = sbr.rel (%p189) target = $region16
        $region15: #{tpu_custom_call.1} parent=11 // pred_region
          _
        $region16: #{tpu_custom_call.1} parent=11 // pred_fallthru
          _
        // Predicated region
        $region17: #{tpu_custom_call.1} parent=11 // pred_check
          %p192 = pneg %p85
        $region18: #{tpu_custom_call.1} parent=11 // pred_check_branch
          %194 = sbr.rel (%p192) target = $region20
        $region19: #{tpu_custom_call.1} parent=11 // pred_region
          _
        $region20: #{tpu_custom_call.1} parent=11 // pred_fallthru
          _
        // Predicated region
        $region21: #{tpu_custom_call.1} parent=11 // pred_check
          %p195 = pneg %p106
        $region22: #{tpu_custom_call.1} parent=11 // pred_check_branch
          %197 = sbr.rel (%p195) target = $region24
        $region23: #{tpu_custom_call.1} parent=11 // pred_region
          _
        $region24: #{tpu_custom_call.1} parent=11 // pred_fallthru
          _
        // Predicated region
        $region25: #{tpu_custom_call.1} parent=11 // pred_check
          %p198 = pneg %p127
        $region26: #{tpu_custom_call.1} parent=11 // pred_check_branch
          %200 = sbr.rel (%p198) target = $region28
        $region27: #{tpu_custom_call.1} parent=11 // pred_region
          %s202 = ssub.s32 12288, 12288
          %203 = vsyncadd [#allocation4], %s202
          %s204 = sshll.u32 [#allocation3], 4
          %s205 = int_to_ptr.vmem [resolvable:$true] %s204
          %210 = dma.hbm_to_vmem [thread:$0]  %s4, 12288, %s205, [#allocation4], 192, 192, 12
        $region28: #{tpu_custom_call.1} parent=11 // pred_fallthru
          _
        // Predicated region
        $region29: #{tpu_custom_call.1} parent=11 // pred_check
          %p211 = pneg %p148
        $region30: #{tpu_custom_call.1} parent=11 // pred_check_branch
          %213 = sbr.rel (%p211) target = $region32
        $region31: #{tpu_custom_call.1} parent=11 // pred_region
          _
        $region32: #{tpu_custom_call.1} parent=11 // pred_fallthru
          _
      $region12: #{tpu_custom_call.1} parent=5 // pred_fallthru
        _
      %p214 = scmp.lt.s32.totalorder %s17, 2
      // Predicated region
      $region33: #{tpu_custom_call.1} parent=5 // pred_check
        %p215 = pneg %p214
      $region34: #{tpu_custom_call.1} parent=5 // pred_check_branch
        %217 = sbr.rel (%p215) target = $region36
      $region35: #{tpu_custom_call.1} parent=5 // pred_region
        // Predicated region
        $region37: #{tpu_custom_call.1} parent=35 // pred_check
          %p218 = pneg %p58
        $region38: #{tpu_custom_call.1} parent=35 // pred_check_branch
          %220 = sbr.rel (%p218) target = $region40
        $region39: #{tpu_custom_call.1} parent=35 // pred_region
          %p221 = scmp.lt.s32.totalorder %s17, 1
          %s222 = scalar_select %p221, %s17, 1
          %s223 = smul.addr %s222, 16
          %s224 = smul.addr %s223, 8
          %s225 = scalar_lea.vmem %s1, %s224
        $region40: #{tpu_custom_call.1} parent=35 // pred_fallthru
          _
      $region36: #{tpu_custom_call.1} parent=5 // pred_fallthru
        _
      %p226 = scmp.le.s32.totalorder 1, %s17
      %p227 = scmp.lt.s32.totalorder %s17, 3
      %p228 = pnand %p226, %p227
      %p229 = pneg %p228
      // Predicated region
      $region41: #{tpu_custom_call.1} parent=5 // pred_check
        _
      $region42: #{tpu_custom_call.1} parent=5 // pred_check_branch
        %231 = sbr.rel (%p228) target = $region44
      $region43: #{tpu_custom_call.1} parent=5 // pred_region
        %s232 = ssub.s32 %s17, 1
        // Predicated region
        $region45: #{tpu_custom_call.1} parent=43 // pred_check
          %p233 = pneg %p127
        $region46: #{tpu_custom_call.1} parent=43 // pred_check_branch
          %235 = sbr.rel (%p233) target = $region48
        $region47: #{tpu_custom_call.1} parent=43 // pred_region
          %236 = dma.done [#allocation4], 12288
        $region48: #{tpu_custom_call.1} parent=43 // pred_fallthru
          _
        %p237 = pneg %p38
        %p238 = pneg %p35
        %p239 = scmp.lt.s32.totalorder %s22, 1
        %s240 = scalar_select %p239, %s22, 1
        %s241 = smul.addr %s240, 16
        %s242 = smul.addr %s241, 8
        %s243 = scalar_lea.vmem %s1, %s242
        %p244 = pneg %p64
        %p245 = pneg %p61
        %p246 = pneg %p85
        %p247 = pneg %p82
        %p248 = pneg %p106
        %p249 = pneg %p103
        %p250 = pneg %p127
        %p251 = pneg %p124
        %p252 = pneg %p148
        %p253 = pneg %p145
        %p254 = pneg %p174
        %p255 = pneg %p171
        %s256 = sand.u32 %s161, 1
        %s257 = scalar_lea.sflag [#allocation5], %s256
        %s258 = sand.u32 %s161, 1
        %s259 = smul.addr %s258, 128
        %s260 = scalar_lea.vmem [#allocation6], %s259
        %p261 = scmp.lt.s32.totalorder %s22, 1
        %s262 = scalar_select %p261, %s22, 1
        %s263 = smul.addr %s262, 16
        %s264 = smul.addr %s263, 8
        %s265 = scalar_lea.vmem %s1, %s264
        %v267 = vld [vmem:[%s2] ss:$0 sm:$0xff]
        %v268 = vld [vmem:[%s2 + $0x1] ss:$0 sm:$0xff]
        %s269 = scalar_lea.vmem %s2, 2
        %v270 = vld [vmem:[%s269] ss:$8 sm:$0xf]
        %s271 = scalar_lea.vmem %s2, 3
        %v272 = vld [vmem:[%s271] ss:$8 sm:$0xf]
        %s273 = scalar_lea.vmem %s2, 4
        %v274 = vld [vmem:[%s273] ss:$8 sm:$0xf]
        %s275 = scalar_lea.vmem %s2, 5
        %v276 = vld [vmem:[%s275] ss:$8 sm:$0x7]
        %s277 = scalar_lea.vmem %s2, 6
        %v278 = vld [vmem:[%s277] ss:$8 sm:$0x7]
        %s279 = scalar_lea.vmem %s2, 7
        %v280 = vld [vmem:[%s279] ss:$8 sm:$0x7]
        %v281 = vld [vmem:[%s2 + $0x20] ss:$0 sm:$0xff]
        %v282 = vld [vmem:[%s265] sm:$0xff]
        %v283 = vld [vmem:[%s265 + $0x8] sm:$0xff]
        %v284 = vld [vmem:[%s265 + $0x10] sm:$0xff]
        %v285 = vld [vmem:[%s265 + $0x18] sm:$0xff]
        %v286 = vld [vmem:[%s265 + $0x20] sm:$0xff]
        %v287 = vld [vmem:[%s265 + $0x28] sm:$0xff]
        %v288 = vld [vmem:[%s265 + $0x30] sm:$0xff]
        %v289 = vld [vmem:[%s265 + $0x38] sm:$0xff]
        %v290 = vld [vmem:[%s265 + $0x40] sm:$0xff]
        %v291 = vld [vmem:[%s265 + $0x48] sm:$0xff]
        %v292 = vld [vmem:[%s265 + $0x50] sm:$0xff]
        %v293 = vld [vmem:[%s265 + $0x58] sm:$0xff]
        %v294 = vld [vmem:[%s265 + $0x60] sm:$0xff]
        %v295 = vld [vmem:[%s265 + $0x68] sm:$0xff]
        %v296 = vld [vmem:[%s265 + $0x70] sm:$0xff]
        %v297 = vld [vmem:[%s265 + $0x78] sm:$0xff]
        %vm298 = vcmask 130048
        %v299 = vsel %vm298, %v282, 0.0
        %v300 = vsel %vm298, %v283, 0.0
        %v301 = vadd.f32 %v299, %v300
        %v302 = vsel %vm298, %v284, 0.0
        %v303 = vadd.f32 %v301, %v302
        %v304 = vsel %vm298, %v285, 0.0
        %v305 = vadd.f32 %v303, %v304
        %v306 = vsel %vm298, %v286, 0.0
        %v307 = vadd.f32 %v305, %v306
        %v308 = vsel %vm298, %v287, 0.0
        %v309 = vadd.f32 %v307, %v308
        %v310 = vsel %vm298, %v288, 0.0
        %v311 = vadd.f32 %v309, %v310
        %v312 = vsel %vm298, %v289, 0.0
        %v313 = vadd.f32 %v311, %v312
        %v314 = vsel %vm298, %v290, 0.0
        %v315 = vadd.f32 %v313, %v314
        %v316 = vsel %vm298, %v291, 0.0
        %v317 = vadd.f32 %v315, %v316
        %v318 = vsel %vm298, %v292, 0.0
        %v319 = vadd.f32 %v317, %v318
        %v320 = vsel %vm298, %v293, 0.0
        %v321 = vadd.f32 %v319, %v320
        %v322 = vsel %vm298, %v294, 0.0
        %v323 = vadd.f32 %v321, %v322
        %v324 = vsel %vm298, %v295, 0.0
        %v325 = vadd.f32 %v323, %v324
        %v326 = vsel %vm298, %v296, 0.0
        %v327 = vadd.f32 %v325, %v326
        %v328 = vsel %vm298, %v297, 0.0
        %v329 = vadd.f32 %v327, %v328
        %v330 = vrot.slane %v329, 4
        %v331 = vadd.f32 %v329, %v330
        %v332 = vrot.slane %v331, 2
        %v333 = vadd.f32 %v331, %v332
        %v334 = vrot.slane %v333, 1
        %v335 = vadd.f32 %v333, %v334
        %v336 = vmul.f32 %v335, 0.0078125
        %v337 = vmul.f32 %v282, %v282
        %v338 = vmul.f32 %v283, %v283
        %v339 = vmul.f32 %v284, %v284
        %v340 = vmul.f32 %v285, %v285
        %v341 = vmul.f32 %v286, %v286
        %v342 = vmul.f32 %v287, %v287
        %v343 = vmul.f32 %v288, %v288
        %v344 = vmul.f32 %v289, %v289
        %v345 = vmul.f32 %v290, %v290
        %v346 = vmul.f32 %v291, %v291
        %v347 = vmul.f32 %v292, %v292
        %v348 = vmul.f32 %v293, %v293
        %v349 = vmul.f32 %v294, %v294
        %v350 = vmul.f32 %v295, %v295
        %v351 = vmul.f32 %v296, %v296
        %v352 = vmul.f32 %v297, %v297
        %v353 = vsel %vm298, %v337, 0.0
        %v354 = vsel %vm298, %v338, 0.0
        %v355 = vadd.f32 %v353, %v354
        %v356 = vsel %vm298, %v339, 0.0
        %v357 = vadd.f32 %v355, %v356
        %v358 = vsel %vm298, %v340, 0.0
        %v359 = vadd.f32 %v357, %v358
        %v360 = vsel %vm298, %v341, 0.0
        %v361 = vadd.f32 %v359, %v360
        %v362 = vsel %vm298, %v342, 0.0
        %v363 = vadd.f32 %v361, %v362
        %v364 = vsel %vm298, %v343, 0.0
        %v365 = vadd.f32 %v363, %v364
        %v366 = vsel %vm298, %v344, 0.0
        %v367 = vadd.f32 %v365, %v366
        %v368 = vsel %vm298, %v345, 0.0
        %v369 = vadd.f32 %v367, %v368
        %v370 = vsel %vm298, %v346, 0.0
        %v371 = vadd.f32 %v369, %v370
        %v372 = vsel %vm298, %v347, 0.0
        %v373 = vadd.f32 %v371, %v372
        %v374 = vsel %vm298, %v348, 0.0
        %v375 = vadd.f32 %v373, %v374
        %v376 = vsel %vm298, %v349, 0.0
        %v377 = vadd.f32 %v375, %v376
        %v378 = vsel %vm298, %v350, 0.0
        %v379 = vadd.f32 %v377, %v378
        %v380 = vsel %vm298, %v351, 0.0
        %v381 = vadd.f32 %v379, %v380
        %v382 = vsel %vm298, %v352, 0.0
        %v383 = vadd.f32 %v381, %v382
        %v384 = vrot.slane %v383, 4
        %v385 = vadd.f32 %v383, %v384
        %v386 = vrot.slane %v385, 2
        %v387 = vadd.f32 %v385, %v386
        %v388 = vrot.slane %v387, 1
        %v389 = vadd.f32 %v387, %v388
        %v390 = vmul.f32 %v389, 0.0078125
        %v391 = vmul.f32 %v336, %v336
        %v392 = vsub.f32 %v390, %v391
        %v393 = vmax.f32 %v392, 0.0
        %v394 = vadd.f32 %v393, 1e-05
        %v395 = vrsqrt.pop %v394
        %v396 = vmul.f32 %v267, %v395
        %v397 = vmul.f32 %v336, %v396
        %v398 = vsub.f32 %v268, %v397
        %v399 = vmul.f32 %v282, %v396
        %v400 = vmul.f32 %v283, %v396
        %v401 = vmul.f32 %v284, %v396
        %v402 = vmul.f32 %v285, %v396
        %v403 = vmul.f32 %v286, %v396
        %v404 = vmul.f32 %v287, %v396
        %v405 = vmul.f32 %v288, %v396
        %v406 = vmul.f32 %v289, %v396
        %v407 = vmul.f32 %v290, %v396
        %v408 = vmul.f32 %v291, %v396
        %v409 = vmul.f32 %v292, %v396
        %v410 = vmul.f32 %v293, %v396
        %v411 = vmul.f32 %v294, %v396
        %v412 = vmul.f32 %v295, %v396
        %v413 = vmul.f32 %v296, %v396
        %v414 = vmul.f32 %v297, %v396
        %v415 = vadd.f32 %v399, %v398
        %v416 = vadd.f32 %v400, %v398
        %v417 = vadd.f32 %v401, %v398
        %v418 = vadd.f32 %v402, %v398
        %v419 = vadd.f32 %v403, %v398
        %v420 = vadd.f32 %v404, %v398
        %v421 = vadd.f32 %v405, %v398
        %v422 = vadd.f32 %v406, %v398
        %v423 = vadd.f32 %v407, %v398
        %v424 = vadd.f32 %v408, %v398
        %v425 = vadd.f32 %v409, %v398
        %v426 = vadd.f32 %v410, %v398
        %v427 = vadd.f32 %v411, %v398
        %v428 = vadd.f32 %v412, %v398
        %v429 = vadd.f32 %v413, %v398
        %v430 = vadd.f32 %v414, %v398
        %v431 = vpack.c.bf16 %v416, %v415
        %v432 = vpack.c.bf16 %v418, %v417
        %v433 = vpack.c.bf16 %v420, %v419
        %v434 = vpack.c.bf16 %v422, %v421
        %v435 = vpack.c.bf16 %v424, %v423
        %v436 = vpack.c.bf16 %v426, %v425
        %v437 = vpack.c.bf16 %v428, %v427
        %v438 = vpack.c.bf16 %v430, %v429
        %v439 = vld [vmem:[%s3] sm:$0xff]
        %v440 = vld [vmem:[%s3 + $0x8] sm:$0xff]
        %v441 = vld [vmem:[%s3 + $0x10] sm:$0xff]
        %v442 = vld [vmem:[%s3 + $0x18] sm:$0xff]
        %v444 = vlaneseq
        %v445 = vshrl.u32 %v444, 7
        %v446 = vsub.s32 0, %v445
        %v447 = vrot.slane %v270, %v446
        %v448 = vlaneseq
        %v449 = vshrl.u32 %v448, 7
        %v450 = vsub.s32 1, %v449
        %v451 = vrot.slane %v270, %v450
        %v452 = vlaneseq
        %v453 = vshrl.u32 %v452, 7
        %v454 = vsub.s32 2, %v453
        %v455 = vrot.slane %v270, %v454
        %v456 = vlaneseq
        %v457 = vshrl.u32 %v456, 7
        %v458 = vsub.s32 3, %v457
        %v459 = vrot.slane %v270, %v458
        %v468 = vunpack.c.l.b16 %v439
        %v469 = vunpack.c.h.b16 %v439
        %v470 = vunpack.c.l.b16 %v440
        %v471 = vunpack.c.h.b16 %v440
        %v472 = vunpack.c.l.b16 %v441
        %v473 = vunpack.c.h.b16 %v441
        %v474 = vunpack.c.l.b16 %v442
        %v475 = vunpack.c.h.b16 %v442
        %v476 = vpack.c.b16 %v472, %v468
        %v477 = vpack.c.b16 %v473, %v469
        %v478 = vpack.c.b16 %v474, %v470
        %v479 = vpack.c.b16 %v475, %v471
        %v485 = vsel %vm298, %v431, 0
        %v488 = vsel %vm298, %v432, 0
        %v491 = vsel %vm298, %v433, 0
        %v494 = vsel %vm298, %v434, 0
        %v497 = vsel %vm298, %v435, 0
        %v500 = vsel %vm298, %v436, 0
        %v503 = vsel %vm298, %v437, 0
        %v506 = vsel %vm298, %v438, 0
        %508 = vmatprep.subr.bf16.mxu0 %v477
        %509 = vmatpush1.bf16.msra.mxu0 %v476
        %510 = vmatprep.subr.bf16.mxu0 0
        %511 = vmatpush1.bf16.msra.mxu0 0
        %512 = vmatprep.subr.bf16.mxu0 0
        %513 = vmatpush1.bf16.msra.mxu0 0
        %514 = vmatprep.subr.bf16.mxu0 0
        %515 = vmatpush1.bf16.msra.mxu0 0
        %516 = vmatprep.subr.bf16.mxu0 0
        %517 = vmatpush1.bf16.msra.mxu0 0
        %518 = vmatprep.subr.bf16.mxu0 0
        %519 = vmatpush1.bf16.msra.mxu0 0
        %520 = vmatprep.subr.bf16.mxu0 0
        %521 = vmatpush1.bf16.msra.mxu0 0
        %522 = vmatprep.subr.bf16.mxu0 0
        %523 = vmatpush1.bf16.msra.mxu0 0
        %524 = vmatprep.subr.bf16.mxu0 0
        %525 = vmatpush1.bf16.msra.mxu0 0
        %526 = vmatprep.subr.bf16.mxu0 0
        %527 = vmatpush1.bf16.msra.mxu0 0
        %528 = vmatprep.subr.bf16.mxu0 0
        %529 = vmatpush1.bf16.msra.mxu0 0
        %530 = vmatprep.subr.bf16.mxu0 0
        %531 = vmatpush1.bf16.msra.mxu0 0
        %532 = vmatprep.subr.bf16.mxu0 0
        %533 = vmatpush1.bf16.msra.mxu0 0
        %534 = vmatprep.subr.bf16.mxu0 0
        %535 = vmatpush1.bf16.msra.mxu0 0
        %536 = vmatprep.subr.bf16.mxu0 0
        %537 = vmatpush1.bf16.msra.mxu0 0
        %538 = vmatprep.subr.bf16.mxu0 0
        %539 = vmatpush1.bf16.msra.mxu0 0
        %540 = vmatprep.mubr.bf16.mxu0 0
        %541 = vmatmul.mubr.bf16.gmra.mrb[0].mxu0 %v485
        %v542 = vpop.f32.mrb[0].mxu0
        %v543 = vadd.f32 %v447, %v542
        %v544 = vpop.f32.mrb[0].mxu0
        %v545 = vadd.f32 %v451, %v544
        %v546 = vpop.f32.mrb[0].mxu0
        %v547 = vadd.f32 %v447, %v546
        %v548 = vpop.f32.mrb[0].mxu0
        %v549 = vadd.f32 %v451, %v548
        %550 = vmatprep.mubr.bf16.mxu0 0
        %551 = vmatmul.mubr.bf16.gmra.mrb[0].mxu0 %v488
        %v552 = vpop.f32.mrb[0].mxu0
        %v553 = vadd.f32 %v447, %v552
        %v554 = vpop.f32.mrb[0].mxu0
        %v555 = vadd.f32 %v451, %v554
        %v556 = vpop.f32.mrb[0].mxu0
        %v557 = vadd.f32 %v447, %v556
        %v558 = vpop.f32.mrb[0].mxu0
        %v559 = vadd.f32 %v451, %v558
        %560 = vmatprep.mubr.bf16.mxu0 0
        %561 = vmatmul.mubr.bf16.gmra.mrb[0].mxu0 %v491
        %v562 = vpop.f32.mrb[0].mxu0
        %v563 = vadd.f32 %v447, %v562
        %v564 = vpop.f32.mrb[0].mxu0
        %v565 = vadd.f32 %v451, %v564
        %v566 = vpop.f32.mrb[0].mxu0
        %v567 = vadd.f32 %v447, %v566
        %v568 = vpop.f32.mrb[0].mxu0
        %v569 = vadd.f32 %v451, %v568
        %570 = vmatprep.mubr.bf16.mxu0 0
        %571 = vmatmul.mubr.bf16.gmra.mrb[0].mxu0 %v494
        %v572 = vpop.f32.mrb[0].mxu0
        %v573 = vadd.f32 %v447, %v572
        %v574 = vpop.f32.mrb[0].mxu0
        %v575 = vadd.f32 %v451, %v574
        %v576 = vpop.f32.mrb[0].mxu0
        %v577 = vadd.f32 %v447, %v576
        %v578 = vpop.f32.mrb[0].mxu0
        %v579 = vadd.f32 %v451, %v578
        %580 = vmatprep.mubr.bf16.mxu0 0
        %581 = vmatmul.mubr.bf16.gmra.mrb[0].mxu0 %v497
        %v582 = vpop.f32.mrb[0].mxu0
        %v583 = vadd.f32 %v447, %v582
        %v584 = vpop.f32.mrb[0].mxu0
        %v585 = vadd.f32 %v451, %v584
        %v586 = vpop.f32.mrb[0].mxu0
        %v587 = vadd.f32 %v447, %v586
        %v588 = vpop.f32.mrb[0].mxu0
        %v589 = vadd.f32 %v451, %v588
        %590 = vmatprep.mubr.bf16.mxu0 0
        %591 = vmatmul.mubr.bf16.gmra.mrb[0].mxu0 %v500
        %v592 = vpop.f32.mrb[0].mxu0
        %v593 = vadd.f32 %v447, %v592
        %v594 = vpop.f32.mrb[0].mxu0
        %v595 = vadd.f32 %v451, %v594
        %v596 = vpop.f32.mrb[0].mxu0
        %v597 = vadd.f32 %v447, %v596
        %v598 = vpop.f32.mrb[0].mxu0
        %v599 = vadd.f32 %v451, %v598
        %600 = vmatprep.mubr.bf16.mxu0 0
        %601 = vmatmul.mubr.bf16.gmra.mrb[0].mxu0 %v503
        %v602 = vpop.f32.mrb[0].mxu0
        %v603 = vadd.f32 %v447, %v602
        %v604 = vpop.f32.mrb[0].mxu0
        %v605 = vadd.f32 %v451, %v604
        %v606 = vpop.f32.mrb[0].mxu0
        %v607 = vadd.f32 %v447, %v606
        %v608 = vpop.f32.mrb[0].mxu0
        %v609 = vadd.f32 %v451, %v608
        %610 = vmatprep.mubr.bf16.mxu0 0
        %611 = vmatmul.mubr.bf16.gmra.mrb[0].mxu0 %v506
        %v612 = vpop.f32.mrb[0].mxu0
        %v613 = vadd.f32 %v447, %v612
        %v614 = vpop.f32.mrb[0].mxu0
        %v615 = vadd.f32 %v451, %v614
        %v616 = vpop.f32.mrb[0].mxu0
        %v617 = vadd.f32 %v447, %v616
        %v618 = vpop.f32.mrb[0].mxu0
        %v619 = vadd.f32 %v451, %v618
        %620 = vdwg.mxu0
        %621 = vmatprep.subr.bf16.mxu0 %v479
        %622 = vmatpush1.bf16.msra.mxu0 %v478
        %623 = vmatprep.subr.bf16.mxu0 0
        %624 = vmatpush1.bf16.msra.mxu0 0
        %625 = vmatprep.subr.bf16.mxu0 0
        %626 = vmatpush1.bf16.msra.mxu0 0
        %627 = vmatprep.subr.bf16.mxu0 0
        %628 = vmatpush1.bf16.msra.mxu0 0
        %629 = vmatprep.subr.bf16.mxu0 0
        %630 = vmatpush1.bf16.msra.mxu0 0
        %631 = vmatprep.subr.bf16.mxu0 0
        %632 = vmatpush1.bf16.msra.mxu0 0
        %633 = vmatprep.subr.bf16.mxu0 0
        %634 = vmatpush1.bf16.msra.mxu0 0
        %635 = vmatprep.subr.bf16.mxu0 0
        %636 = vmatpush1.bf16.msra.mxu0 0
        %637 = vmatprep.subr.bf16.mxu0 0
        %638 = vmatpush1.bf16.msra.mxu0 0
        %639 = vmatprep.subr.bf16.mxu0 0
        %640 = vmatpush1.bf16.msra.mxu0 0
        %641 = vmatprep.subr.bf16.mxu0 0
        %642 = vmatpush1.bf16.msra.mxu0 0
        %643 = vmatprep.subr.bf16.mxu0 0
        %644 = vmatpush1.bf16.msra.mxu0 0
        %645 = vmatprep.subr.bf16.mxu0 0
        %646 = vmatpush1.bf16.msra.mxu0 0
        %647 = vmatprep.subr.bf16.mxu0 0
        %648 = vmatpush1.bf16.msra.mxu0 0
        %649 = vmatprep.subr.bf16.mxu0 0
        %650 = vmatpush1.bf16.msra.mxu0 0
        %651 = vmatprep.subr.bf16.mxu0 0
        %652 = vmatpush1.bf16.msra.mxu0 0
        %653 = vmatprep.mubr.bf16.mxu0 0
        %654 = vmatmul.mubr.bf16.gmra.mrb[0].mxu0 %v485
        %v655 = vpop.f32.mrb[0].mxu0
        %v656 = vadd.f32 %v455, %v655
        %v657 = vpop.f32.mrb[0].mxu0
        %v658 = vadd.f32 %v459, %v657
        %v659 = vpop.f32.mrb[0].mxu0
        %v660 = vadd.f32 %v455, %v659
        %v661 = vpop.f32.mrb[0].mxu0
        %v662 = vadd.f32 %v459, %v661
        %663 = vmatprep.mubr.bf16.mxu0 0
        %664 = vmatmul.mubr.bf16.gmra.mrb[0].mxu0 %v488
        %v665 = vpop.f32.mrb[0].mxu0
        %v666 = vadd.f32 %v455, %v665
        %v667 = vpop.f32.mrb[0].mxu0
        %v668 = vadd.f32 %v459, %v667
        %v669 = vpop.f32.mrb[0].mxu0
        %v670 = vadd.f32 %v455, %v669
        %v671 = vpop.f32.mrb[0].mxu0
        %v672 = vadd.f32 %v459, %v671
        %673 = vmatprep.mubr.bf16.mxu0 0
        %674 = vmatmul.mubr.bf16.gmra.mrb[0].mxu0 %v491
        %v675 = vpop.f32.mrb[0].mxu0
        %v676 = vadd.f32 %v455, %v675
        %v677 = vpop.f32.mrb[0].mxu0
        %v678 = vadd.f32 %v459, %v677
        %v679 = vpop.f32.mrb[0].mxu0
        %v680 = vadd.f32 %v455, %v679
        %v681 = vpop.f32.mrb[0].mxu0
        %v682 = vadd.f32 %v459, %v681
        %683 = vmatprep.mubr.bf16.mxu0 0
        %684 = vmatmul.mubr.bf16.gmra.mrb[0].mxu0 %v494
        %v685 = vpop.f32.mrb[0].mxu0
        %v686 = vadd.f32 %v455, %v685
        %v687 = vpop.f32.mrb[0].mxu0
        %v688 = vadd.f32 %v459, %v687
        %v689 = vpop.f32.mrb[0].mxu0
        %v690 = vadd.f32 %v455, %v689
        %v691 = vpop.f32.mrb[0].mxu0
        %v692 = vadd.f32 %v459, %v691
        %693 = vmatprep.mubr.bf16.mxu0 0
        %694 = vmatmul.mubr.bf16.gmra.mrb[0].mxu0 %v497
        %v695 = vpop.f32.mrb[0].mxu0
        %v696 = vadd.f32 %v455, %v695
        %v697 = vpop.f32.mrb[0].mxu0
        %v698 = vadd.f32 %v459, %v697
        %v699 = vpop.f32.mrb[0].mxu0
        %v700 = vadd.f32 %v455, %v699
        %v701 = vpop.f32.mrb[0].mxu0
        %v702 = vadd.f32 %v459, %v701
        %703 = vmatprep.mubr.bf16.mxu0 0
        %704 = vmatmul.mubr.bf16.gmra.mrb[0].mxu0 %v500
        %v705 = vpop.f32.mrb[0].mxu0
        %v706 = vadd.f32 %v455, %v705
        %v707 = vpop.f32.mrb[0].mxu0
        %v708 = vadd.f32 %v459, %v707
        %v709 = vpop.f32.mrb[0].mxu0
        %v710 = vadd.f32 %v455, %v709
        %v711 = vpop.f32.mrb[0].mxu0
        %v712 = vadd.f32 %v459, %v711
        %713 = vmatprep.mubr.bf16.mxu0 0
        %714 = vmatmul.mubr.bf16.gmra.mrb[0].mxu0 %v503
        %v715 = vpop.f32.mrb[0].mxu0
        %v716 = vadd.f32 %v455, %v715
        %v717 = vpop.f32.mrb[0].mxu0
        %v718 = vadd.f32 %v459, %v717
        %v719 = vpop.f32.mrb[0].mxu0
        %v720 = vadd.f32 %v455, %v719
        %v721 = vpop.f32.mrb[0].mxu0
        %v722 = vadd.f32 %v459, %v721
        %723 = vmatprep.mubr.bf16.mxu0 0
        %724 = vmatmul.mubr.bf16.gmra.mrb[0].mxu0 %v506
        %v725 = vpop.f32.mrb[0].mxu0
        %v726 = vadd.f32 %v455, %v725
        %v727 = vpop.f32.mrb[0].mxu0
        %v728 = vadd.f32 %v459, %v727
        %v729 = vpop.f32.mrb[0].mxu0
        %v730 = vadd.f32 %v455, %v729
        %v731 = vpop.f32.mrb[0].mxu0
        %v732 = vadd.f32 %v459, %v731
        %733 = vdwg.mxu0
        %v734 = vadd.f32 %v543, %v547
        %v735 = vadd.f32 %v734, %v553
        %v736 = vadd.f32 %v735, %v557
        %v737 = vadd.f32 %v736, %v563
        %v738 = vadd.f32 %v737, %v567
        %v739 = vadd.f32 %v738, %v573
        %v740 = vadd.f32 %v739, %v577
        %v741 = vadd.f32 %v740, %v583
        %v742 = vadd.f32 %v741, %v587
        %v743 = vadd.f32 %v742, %v593
        %v744 = vadd.f32 %v743, %v597
        %v745 = vadd.f32 %v744, %v603
        %v746 = vadd.f32 %v745, %v607
        %v747 = vadd.f32 %v746, %v613
        %v748 = vadd.f32 %v747, %v617
        %v749 = vrot.slane %v748, 4
        %v750 = vadd.f32 %v748, %v749
        %v751 = vrot.slane %v750, 2
        %v752 = vadd.f32 %v750, %v751
        %v753 = vrot.slane %v752, 1
        %v754 = vadd.f32 %v752, %v753
        %v755 = vadd.f32 %v545, %v549
        %v756 = vadd.f32 %v755, %v555
        %v757 = vadd.f32 %v756, %v559
        %v758 = vadd.f32 %v757, %v565
        %v759 = vadd.f32 %v758, %v569
        %v760 = vadd.f32 %v759, %v575
        %v761 = vadd.f32 %v760, %v579
        %v762 = vadd.f32 %v761, %v585
        %v763 = vadd.f32 %v762, %v589
        %v764 = vadd.f32 %v763, %v595
        %v765 = vadd.f32 %v764, %v599
        %v766 = vadd.f32 %v765, %v605
        %v767 = vadd.f32 %v766, %v609
        %v768 = vadd.f32 %v767, %v615
        %v769 = vadd.f32 %v768, %v619
        %v770 = vrot.slane %v769, 4
        %v771 = vadd.f32 %v769, %v770
        %v772 = vrot.slane %v771, 2
        %v773 = vadd.f32 %v771, %v772
        %v774 = vrot.slane %v773, 1
        %v775 = vadd.f32 %v773, %v774
        %v776 = vadd.f32 %v656, %v660
        %v777 = vadd.f32 %v776, %v666
        %v778 = vadd.f32 %v777, %v670
        %v779 = vadd.f32 %v778, %v676
        %v780 = vadd.f32 %v779, %v680
        %v781 = vadd.f32 %v780, %v686
        %v782 = vadd.f32 %v781, %v690
        %v783 = vadd.f32 %v782, %v696
        %v784 = vadd.f32 %v783, %v700
        %v785 = vadd.f32 %v784, %v706
        %v786 = vadd.f32 %v785, %v710
        %v787 = vadd.f32 %v786, %v716
        %v788 = vadd.f32 %v787, %v720
        %v789 = vadd.f32 %v788, %v726
        %v790 = vadd.f32 %v789, %v730
        %v791 = vrot.slane %v790, 4
        %v792 = vadd.f32 %v790, %v791
        %v793 = vrot.slane %v792, 2
        %v794 = vadd.f32 %v792, %v793
        %v795 = vrot.slane %v794, 1
        %v796 = vadd.f32 %v794, %v795
        %v797 = vadd.f32 %v658, %v662
        %v798 = vadd.f32 %v797, %v668
        %v799 = vadd.f32 %v798, %v672
        %v800 = vadd.f32 %v799, %v678
        %v801 = vadd.f32 %v800, %v682
        %v802 = vadd.f32 %v801, %v688
        %v803 = vadd.f32 %v802, %v692
        %v804 = vadd.f32 %v803, %v698
        %v805 = vadd.f32 %v804, %v702
        %v806 = vadd.f32 %v805, %v708
        %v807 = vadd.f32 %v806, %v712
        %v808 = vadd.f32 %v807, %v718
        %v809 = vadd.f32 %v808, %v722
        %v810 = vadd.f32 %v809, %v728
        %v811 = vadd.f32 %v810, %v732
        %v812 = vrot.slane %v811, 4
        %v813 = vadd.f32 %v811, %v812
        %v814 = vrot.slane %v813, 2
        %v815 = vadd.f32 %v813, %v814
        %v816 = vrot.slane %v815, 1
        %v817 = vadd.f32 %v815, %v816
        %v818 = vmul.f32 %v754, 0.0078125
        %v819 = vmul.f32 %v775, 0.0078125
        %v820 = vmul.f32 %v796, 0.0078125
        %v821 = vmul.f32 %v817, 0.0078125
        %v822 = vmul.f32 %v543, %v543
        %v823 = vmul.f32 %v545, %v545
        %v824 = vmul.f32 %v656, %v656
        %v825 = vmul.f32 %v658, %v658
        %v826 = vmul.f32 %v547, %v547
        %v827 = vmul.f32 %v549, %v549
        %v828 = vmul.f32 %v660, %v660
        %v829 = vmul.f32 %v662, %v662
        %v830 = vmul.f32 %v553, %v553
        %v831 = vmul.f32 %v555, %v555
        %v832 = vmul.f32 %v666, %v666
        %v833 = vmul.f32 %v668, %v668
        %v834 = vmul.f32 %v557, %v557
        %v835 = vmul.f32 %v559, %v559
        %v836 = vmul.f32 %v670, %v670
        %v837 = vmul.f32 %v672, %v672
        %v838 = vmul.f32 %v563, %v563
        %v839 = vmul.f32 %v565, %v565
        %v840 = vmul.f32 %v676, %v676
        %v841 = vmul.f32 %v678, %v678
        %v842 = vmul.f32 %v567, %v567
        %v843 = vmul.f32 %v569, %v569
        %v844 = vmul.f32 %v680, %v680
        %v845 = vmul.f32 %v682, %v682
        %v846 = vmul.f32 %v573, %v573
        %v847 = vmul.f32 %v575, %v575
        %v848 = vmul.f32 %v686, %v686
        %v849 = vmul.f32 %v688, %v688
        %v850 = vmul.f32 %v577, %v577
        %v851 = vmul.f32 %v579, %v579
        %v852 = vmul.f32 %v690, %v690
        %v853 = vmul.f32 %v692, %v692
        %v854 = vmul.f32 %v583, %v583
        %v855 = vmul.f32 %v585, %v585
        %v856 = vmul.f32 %v696, %v696
        %v857 = vmul.f32 %v698, %v698
        %v858 = vmul.f32 %v587, %v587
        %v859 = vmul.f32 %v589, %v589
        %v860 = vmul.f32 %v700, %v700
        %v861 = vmul.f32 %v702, %v702
        %v862 = vmul.f32 %v593, %v593
        %v863 = vmul.f32 %v595, %v595
        %v864 = vmul.f32 %v706, %v706
        %v865 = vmul.f32 %v708, %v708
        %v866 = vmul.f32 %v597, %v597
        %v867 = vmul.f32 %v599, %v599
        %v868 = vmul.f32 %v710, %v710
        %v869 = vmul.f32 %v712, %v712
        %v870 = vmul.f32 %v603, %v603
        %v871 = vmul.f32 %v605, %v605
        %v872 = vmul.f32 %v716, %v716
        %v873 = vmul.f32 %v718, %v718
        %v874 = vmul.f32 %v607, %v607
        %v875 = vmul.f32 %v609, %v609
        %v876 = vmul.f32 %v720, %v720
        %v877 = vmul.f32 %v722, %v722
        %v878 = vmul.f32 %v613, %v613
        %v879 = vmul.f32 %v615, %v615
        %v880 = vmul.f32 %v726, %v726
        %v881 = vmul.f32 %v728, %v728
        %v882 = vmul.f32 %v617, %v617
        %v883 = vmul.f32 %v619, %v619
        %v884 = vmul.f32 %v730, %v730
        %v885 = vmul.f32 %v732, %v732
        %v886 = vadd.f32 %v822, %v826
        %v887 = vadd.f32 %v886, %v830
        %v888 = vadd.f32 %v887, %v834
        %v889 = vadd.f32 %v888, %v838
        %v890 = vadd.f32 %v889, %v842
        %v891 = vadd.f32 %v890, %v846
        %v892 = vadd.f32 %v891, %v850
        %v893 = vadd.f32 %v892, %v854
        %v894 = vadd.f32 %v893, %v858
        %v895 = vadd.f32 %v894, %v862
        %v896 = vadd.f32 %v895, %v866
        %v897 = vadd.f32 %v896, %v870
        %v898 = vadd.f32 %v897, %v874
        %v899 = vadd.f32 %v898, %v878
        %v900 = vadd.f32 %v899, %v882
        %v901 = vrot.slane %v900, 4
        %v902 = vadd.f32 %v900, %v901
        %v903 = vrot.slane %v902, 2
        %v904 = vadd.f32 %v902, %v903
        %v905 = vrot.slane %v904, 1
        %v906 = vadd.f32 %v904, %v905
        %v907 = vadd.f32 %v823, %v827
        %v908 = vadd.f32 %v907, %v831
        %v909 = vadd.f32 %v908, %v835
        %v910 = vadd.f32 %v909, %v839
        %v911 = vadd.f32 %v910, %v843
        %v912 = vadd.f32 %v911, %v847
        %v913 = vadd.f32 %v912, %v851
        %v914 = vadd.f32 %v913, %v855
        %v915 = vadd.f32 %v914, %v859
        %v916 = vadd.f32 %v915, %v863
        %v917 = vadd.f32 %v916, %v867
        %v918 = vadd.f32 %v917, %v871
        %v919 = vadd.f32 %v918, %v875
        %v920 = vadd.f32 %v919, %v879
        %v921 = vadd.f32 %v920, %v883
        %v922 = vrot.slane %v921, 4
        %v923 = vadd.f32 %v921, %v922
        %v924 = vrot.slane %v923, 2
        %v925 = vadd.f32 %v923, %v924
        %v926 = vrot.slane %v925, 1
        %v927 = vadd.f32 %v925, %v926
        %v928 = vadd.f32 %v824, %v828
        %v929 = vadd.f32 %v928, %v832
        %v930 = vadd.f32 %v929, %v836
        %v931 = vadd.f32 %v930, %v840
        %v932 = vadd.f32 %v931, %v844
        %v933 = vadd.f32 %v932, %v848
        %v934 = vadd.f32 %v933, %v852
        %v935 = vadd.f32 %v934, %v856
        %v936 = vadd.f32 %v935, %v860
        %v937 = vadd.f32 %v936, %v864
        %v938 = vadd.f32 %v937, %v868
        %v939 = vadd.f32 %v938, %v872
        %v940 = vadd.f32 %v939, %v876
        %v941 = vadd.f32 %v940, %v880
        %v942 = vadd.f32 %v941, %v884
        %v943 = vrot.slane %v942, 4
        %v944 = vadd.f32 %v942, %v943
        %v945 = vrot.slane %v944, 2
        %v946 = vadd.f32 %v944, %v945
        %v947 = vrot.slane %v946, 1
        %v948 = vadd.f32 %v946, %v947
        %v949 = vadd.f32 %v825, %v829
        %v950 = vadd.f32 %v949, %v833
        %v951 = vadd.f32 %v950, %v837
        %v952 = vadd.f32 %v951, %v841
        %v953 = vadd.f32 %v952, %v845
        %v954 = vadd.f32 %v953, %v849
        %v955 = vadd.f32 %v954, %v853
        %v956 = vadd.f32 %v955, %v857
        %v957 = vadd.f32 %v956, %v861
        %v958 = vadd.f32 %v957, %v865
        %v959 = vadd.f32 %v958, %v869
        %v960 = vadd.f32 %v959, %v873
        %v961 = vadd.f32 %v960, %v877
        %v962 = vadd.f32 %v961, %v881
        %v963 = vadd.f32 %v962, %v885
        %v964 = vrot.slane %v963, 4
        %v965 = vadd.f32 %v963, %v964
        %v966 = vrot.slane %v965, 2
        %v967 = vadd.f32 %v965, %v966
        %v968 = vrot.slane %v967, 1
        %v969 = vadd.f32 %v967, %v968
        %v970 = vmul.f32 %v906, 0.0078125
        %v971 = vmul.f32 %v927, 0.0078125
        %v972 = vmul.f32 %v948, 0.0078125
        %v973 = vmul.f32 %v969, 0.0078125
        %v974 = vmul.f32 %v818, %v818
        %v975 = vmul.f32 %v819, %v819
        %v976 = vmul.f32 %v820, %v820
        %v977 = vmul.f32 %v821, %v821
        %v978 = vsub.f32 %v970, %v974
        %v979 = vsub.f32 %v971, %v975
        %v980 = vsub.f32 %v972, %v976
        %v981 = vsub.f32 %v973, %v977
        %v982 = vmax.f32 %v978, 0.0
        %v983 = vmax.f32 %v979, 0.0
        %v984 = vmax.f32 %v980, 0.0
        %v985 = vmax.f32 %v981, 0.0
        %v986 = vadd.f32 %v982, 1e-05
        %v987 = vadd.f32 %v983, 1e-05
        %v988 = vadd.f32 %v984, 1e-05
        %v989 = vadd.f32 %v985, 1e-05
        %v990 = vrsqrt.pop %v986
        %v991 = vrsqrt.pop %v987
        %v992 = vrsqrt.pop %v988
        %v993 = vrsqrt.pop %v989
        %v998 = vcombine.low %v990, %v991
        %v999 = vcombine.low %v992, %v993
        %v1001 = vunpack.c.l.s4 1966171168
        %v1002 = vunpack.c.0.s8 %v1001
        %v1003 = vlaneseq
        %v1004 = vshrl.u32 %v1003, 7
        %v1005 = vsub.s32 %v1002, %v1004
        %v1006 = vrot.slane %v998, %v1005
        %v1008 = vunpack.c.l.s4 1966171168
        %v1009 = vunpack.c.0.s8 %v1008
        %v1010 = vlaneseq
        %v1011 = vshrl.u32 %v1010, 7
        %v1012 = vsub.s32 %v1009, %v1011
        %v1013 = vrot.slane %v999, %v1012
        %v1014 = vcombine.low %v1006, %v1013
        %v1016 = vunpack.c.l.s4 1966171168
        %v1017 = vunpack.c.0.s8 %v1016
        %v1018 = vlaneseq
        %v1019 = vshrl.u32 %v1018, 7
        %v1020 = vsub.s32 %v1017, %v1019
        %v1021 = vrot.slane %v1014, %v1020
        %v1023 = vmul.f32 %v272, %v1021
        %v1025 = vlaneseq
        %v1026 = vshrl.u32 %v1025, 7
        %v1027 = vsub.s32 0, %v1026
        %v1028 = vrot.slane %v1023, %v1027
        %v1029 = vlaneseq
        %v1030 = vshrl.u32 %v1029, 7
        %v1031 = vsub.s32 1, %v1030
        %v1032 = vrot.slane %v1023, %v1031
        %v1033 = vlaneseq
        %v1034 = vshrl.u32 %v1033, 7
        %v1035 = vsub.s32 2, %v1034
        %v1036 = vrot.slane %v1023, %v1035
        %v1037 = vlaneseq
        %v1038 = vshrl.u32 %v1037, 7
        %v1039 = vsub.s32 3, %v1038
        %v1040 = vrot.slane %v1023, %v1039
        %v1045 = vmul.f32 %v818, %v1028
        %v1046 = vmul.f32 %v819, %v1032
        %v1047 = vmul.f32 %v820, %v1036
        %v1048 = vmul.f32 %v821, %v1040
        %v1053 = vcombine.low %v1045, %v1046
        %v1054 = vcombine.low %v1047, %v1048
        %v1056 = vunpack.c.l.s4 1966171168
        %v1057 = vunpack.c.0.s8 %v1056
        %v1058 = vlaneseq
        %v1059 = vshrl.u32 %v1058, 7
        %v1060 = vsub.s32 %v1057, %v1059
        %v1061 = vrot.slane %v1053, %v1060
        %v1063 = vunpack.c.l.s4 1966171168
        %v1064 = vunpack.c.0.s8 %v1063
        %v1065 = vlaneseq
        %v1066 = vshrl.u32 %v1065, 7
        %v1067 = vsub.s32 %v1064, %v1066
        %v1068 = vrot.slane %v1054, %v1067
        %v1069 = vcombine.low %v1061, %v1068
        %v1071 = vunpack.c.l.s4 1966171168
        %v1072 = vunpack.c.0.s8 %v1071
        %v1073 = vlaneseq
        %v1074 = vshrl.u32 %v1073, 7
        %v1075 = vsub.s32 %v1072, %v1074
        %v1076 = vrot.slane %v1069, %v1075
        %v1078 = vsub.f32 %v274, %v1076
        %v1079 = vmul.f32 %v543, %v1028
        %v1080 = vmul.f32 %v545, %v1032
        %v1081 = vmul.f32 %v656, %v1036
        %v1082 = vmul.f32 %v658, %v1040
        %v1083 = vmul.f32 %v547, %v1028
        %v1084 = vmul.f32 %v549, %v1032
        %v1085 = vmul.f32 %v660, %v1036
        %v1086 = vmul.f32 %v662, %v1040
        %v1087 = vmul.f32 %v553, %v1028
        %v1088 = vmul.f32 %v555, %v1032
        %v1089 = vmul.f32 %v666, %v1036
        %v1090 = vmul.f32 %v668, %v1040
        %v1091 = vmul.f32 %v557, %v1028
        %v1092 = vmul.f32 %v559, %v1032
        %v1093 = vmul.f32 %v670, %v1036
        %v1094 = vmul.f32 %v672, %v1040
        %v1095 = vmul.f32 %v563, %v1028
        %v1096 = vmul.f32 %v565, %v1032
        %v1097 = vmul.f32 %v676, %v1036
        %v1098 = vmul.f32 %v678, %v1040
        %v1099 = vmul.f32 %v567, %v1028
        %v1100 = vmul.f32 %v569, %v1032
        %v1101 = vmul.f32 %v680, %v1036
        %v1102 = vmul.f32 %v682, %v1040
        %v1103 = vmul.f32 %v573, %v1028
        %v1104 = vmul.f32 %v575, %v1032
        %v1105 = vmul.f32 %v686, %v1036
        %v1106 = vmul.f32 %v688, %v1040
        %v1107 = vmul.f32 %v577, %v1028
        %v1108 = vmul.f32 %v579, %v1032
        %v1109 = vmul.f32 %v690, %v1036
        %v1110 = vmul.f32 %v692, %v1040
        %v1111 = vmul.f32 %v583, %v1028
        %v1112 = vmul.f32 %v585, %v1032
        %v1113 = vmul.f32 %v696, %v1036
        %v1114 = vmul.f32 %v698, %v1040
        %v1115 = vmul.f32 %v587, %v1028
        %v1116 = vmul.f32 %v589, %v1032
        %v1117 = vmul.f32 %v700, %v1036
        %v1118 = vmul.f32 %v702, %v1040
        %v1119 = vmul.f32 %v593, %v1028
        %v1120 = vmul.f32 %v595, %v1032
        %v1121 = vmul.f32 %v706, %v1036
        %v1122 = vmul.f32 %v708, %v1040
        %v1123 = vmul.f32 %v597, %v1028
        %v1124 = vmul.f32 %v599, %v1032
        %v1125 = vmul.f32 %v710, %v1036
        %v1126 = vmul.f32 %v712, %v1040
        %v1127 = vmul.f32 %v603, %v1028
        %v1128 = vmul.f32 %v605, %v1032
        %v1129 = vmul.f32 %v716, %v1036
        %v1130 = vmul.f32 %v718, %v1040
        %v1131 = vmul.f32 %v607, %v1028
        %v1132 = vmul.f32 %v609, %v1032
        %v1133 = vmul.f32 %v720, %v1036
        %v1134 = vmul.f32 %v722, %v1040
        %v1135 = vmul.f32 %v613, %v1028
        %v1136 = vmul.f32 %v615, %v1032
        %v1137 = vmul.f32 %v726, %v1036
        %v1138 = vmul.f32 %v728, %v1040
        %v1139 = vmul.f32 %v617, %v1028
        %v1140 = vmul.f32 %v619, %v1032
        %v1141 = vmul.f32 %v730, %v1036
        %v1142 = vmul.f32 %v732, %v1040
        %v1144 = vlaneseq
        %v1145 = vshrl.u32 %v1144, 7
        %v1146 = vsub.s32 0, %v1145
        %v1147 = vrot.slane %v1078, %v1146
        %v1148 = vlaneseq
        %v1149 = vshrl.u32 %v1148, 7
        %v1150 = vsub.s32 1, %v1149
        %v1151 = vrot.slane %v1078, %v1150
        %v1152 = vlaneseq
        %v1153 = vshrl.u32 %v1152, 7
        %v1154 = vsub.s32 2, %v1153
        %v1155 = vrot.slane %v1078, %v1154
        %v1156 = vlaneseq
        %v1157 = vshrl.u32 %v1156, 7
        %v1158 = vsub.s32 3, %v1157
        %v1159 = vrot.slane %v1078, %v1158
        %v1164 = vadd.f32 %v1079, %v1147
        %v1165 = vadd.f32 %v1080, %v1151
        %v1166 = vadd.f32 %v1081, %v1155
        %v1167 = vadd.f32 %v1082, %v1159
        %v1168 = vadd.f32 %v1083, %v1147
        %v1169 = vadd.f32 %v1084, %v1151
        %v1170 = vadd.f32 %v1085, %v1155
        %v1171 = vadd.f32 %v1086, %v1159
        %v1172 = vadd.f32 %v1087, %v1147
        %v1173 = vadd.f32 %v1088, %v1151
        %v1174 = vadd.f32 %v1089, %v1155
        %v1175 = vadd.f32 %v1090, %v1159
        %v1176 = vadd.f32 %v1091, %v1147
        %v1177 = vadd.f32 %v1092, %v1151
        %v1178 = vadd.f32 %v1093, %v1155
        %v1179 = vadd.f32 %v1094, %v1159
        %v1180 = vadd.f32 %v1095, %v1147
        %v1181 = vadd.f32 %v1096, %v1151
        %v1182 = vadd.f32 %v1097, %v1155
        %v1183 = vadd.f32 %v1098, %v1159
        %v1184 = vadd.f32 %v1099, %v1147
        %v1185 = vadd.f32 %v1100, %v1151
        %v1186 = vadd.f32 %v1101, %v1155
        %v1187 = vadd.f32 %v1102, %v1159
        %v1188 = vadd.f32 %v1103, %v1147
        %v1189 = vadd.f32 %v1104, %v1151
        %v1190 = vadd.f32 %v1105, %v1155
        %v1191 = vadd.f32 %v1106, %v1159
        %v1192 = vadd.f32 %v1107, %v1147
        %v1193 = vadd.f32 %v1108, %v1151
        %v1194 = vadd.f32 %v1109, %v1155
        %v1195 = vadd.f32 %v1110, %v1159
        %v1196 = vadd.f32 %v1111, %v1147
        %v1197 = vadd.f32 %v1112, %v1151
        %v1198 = vadd.f32 %v1113, %v1155
        %v1199 = vadd.f32 %v1114, %v1159
        %v1200 = vadd.f32 %v1115, %v1147
        %v1201 = vadd.f32 %v1116, %v1151
        %v1202 = vadd.f32 %v1117, %v1155
        %v1203 = vadd.f32 %v1118, %v1159
        %v1204 = vadd.f32 %v1119, %v1147
        %v1205 = vadd.f32 %v1120, %v1151
        %v1206 = vadd.f32 %v1121, %v1155
        %v1207 = vadd.f32 %v1122, %v1159
        %v1208 = vadd.f32 %v1123, %v1147
        %v1209 = vadd.f32 %v1124, %v1151
        %v1210 = vadd.f32 %v1125, %v1155
        %v1211 = vadd.f32 %v1126, %v1159
        %v1212 = vadd.f32 %v1127, %v1147
        %v1213 = vadd.f32 %v1128, %v1151
        %v1214 = vadd.f32 %v1129, %v1155
        %v1215 = vadd.f32 %v1130, %v1159
        %v1216 = vadd.f32 %v1131, %v1147
        %v1217 = vadd.f32 %v1132, %v1151
        %v1218 = vadd.f32 %v1133, %v1155
        %v1219 = vadd.f32 %v1134, %v1159
        %v1220 = vadd.f32 %v1135, %v1147
        %v1221 = vadd.f32 %v1136, %v1151
        %v1222 = vadd.f32 %v1137, %v1155
        %v1223 = vadd.f32 %v1138, %v1159
        %v1224 = vadd.f32 %v1139, %v1147
        %v1225 = vadd.f32 %v1140, %v1151
        %v1226 = vadd.f32 %v1141, %v1155
        %v1227 = vadd.f32 %v1142, %v1159
        %v1228 = vmax.f32 %v1164, 0.0
        %v1229 = vmax.f32 %v1165, 0.0
        %v1230 = vmax.f32 %v1166, 0.0
        %v1231 = vmax.f32 %v1167, 0.0
        %v1232 = vmax.f32 %v1168, 0.0
        %v1233 = vmax.f32 %v1169, 0.0
        %v1234 = vmax.f32 %v1170, 0.0
        %v1235 = vmax.f32 %v1171, 0.0
        %v1236 = vmax.f32 %v1172, 0.0
        %v1237 = vmax.f32 %v1173, 0.0
        %v1238 = vmax.f32 %v1174, 0.0
        %v1239 = vmax.f32 %v1175, 0.0
        %v1240 = vmax.f32 %v1176, 0.0
        %v1241 = vmax.f32 %v1177, 0.0
        %v1242 = vmax.f32 %v1178, 0.0
        %v1243 = vmax.f32 %v1179, 0.0
        %v1244 = vmax.f32 %v1180, 0.0
        %v1245 = vmax.f32 %v1181, 0.0
        %v1246 = vmax.f32 %v1182, 0.0
        %v1247 = vmax.f32 %v1183, 0.0
        %v1248 = vmax.f32 %v1184, 0.0
        %v1249 = vmax.f32 %v1185, 0.0
        %v1250 = vmax.f32 %v1186, 0.0
        %v1251 = vmax.f32 %v1187, 0.0
        %v1252 = vmax.f32 %v1188, 0.0
        %v1253 = vmax.f32 %v1189, 0.0
        %v1254 = vmax.f32 %v1190, 0.0
        %v1255 = vmax.f32 %v1191, 0.0
        %v1256 = vmax.f32 %v1192, 0.0
        %v1257 = vmax.f32 %v1193, 0.0
        %v1258 = vmax.f32 %v1194, 0.0
        %v1259 = vmax.f32 %v1195, 0.0
        %v1260 = vmax.f32 %v1196, 0.0
        %v1261 = vmax.f32 %v1197, 0.0
        %v1262 = vmax.f32 %v1198, 0.0
        %v1263 = vmax.f32 %v1199, 0.0
        %v1264 = vmax.f32 %v1200, 0.0
        %v1265 = vmax.f32 %v1201, 0.0
        %v1266 = vmax.f32 %v1202, 0.0
        %v1267 = vmax.f32 %v1203, 0.0
        %v1268 = vmax.f32 %v1204, 0.0
        %v1269 = vmax.f32 %v1205, 0.0
        %v1270 = vmax.f32 %v1206, 0.0
        %v1271 = vmax.f32 %v1207, 0.0
        %v1272 = vmax.f32 %v1208, 0.0
        %v1273 = vmax.f32 %v1209, 0.0
        %v1274 = vmax.f32 %v1210, 0.0
        %v1275 = vmax.f32 %v1211, 0.0
        %v1276 = vmax.f32 %v1212, 0.0
        %v1277 = vmax.f32 %v1213, 0.0
        %v1278 = vmax.f32 %v1214, 0.0
        %v1279 = vmax.f32 %v1215, 0.0
        %v1280 = vmax.f32 %v1216, 0.0
        %v1281 = vmax.f32 %v1217, 0.0
        %v1282 = vmax.f32 %v1218, 0.0
        %v1283 = vmax.f32 %v1219, 0.0
        %v1284 = vmax.f32 %v1220, 0.0
        %v1285 = vmax.f32 %v1221, 0.0
        %v1286 = vmax.f32 %v1222, 0.0
        %v1287 = vmax.f32 %v1223, 0.0
        %v1288 = vmax.f32 %v1224, 0.0
        %v1289 = vmax.f32 %v1225, 0.0
        %v1290 = vmax.f32 %v1226, 0.0
        %v1291 = vmax.f32 %v1227, 0.0
        %v1292 = vpack.c.bf16 %v1232, %v1228
        %v1293 = vpack.c.bf16 %v1233, %v1229
        %v1294 = vpack.c.bf16 %v1234, %v1230
        %v1295 = vpack.c.bf16 %v1235, %v1231
        %v1296 = vpack.c.bf16 %v1240, %v1236
        %v1297 = vpack.c.bf16 %v1241, %v1237
        %v1298 = vpack.c.bf16 %v1242, %v1238
        %v1299 = vpack.c.bf16 %v1243, %v1239
        %v1300 = vpack.c.bf16 %v1248, %v1244
        %v1301 = vpack.c.bf16 %v1249, %v1245
        %v1302 = vpack.c.bf16 %v1250, %v1246
        %v1303 = vpack.c.bf16 %v1251, %v1247
        %v1304 = vpack.c.bf16 %v1256, %v1252
        %v1305 = vpack.c.bf16 %v1257, %v1253
        %v1306 = vpack.c.bf16 %v1258, %v1254
        %v1307 = vpack.c.bf16 %v1259, %v1255
        %v1308 = vpack.c.bf16 %v1264, %v1260
        %v1309 = vpack.c.bf16 %v1265, %v1261
        %v1310 = vpack.c.bf16 %v1266, %v1262
        %v1311 = vpack.c.bf16 %v1267, %v1263
        %v1312 = vpack.c.bf16 %v1272, %v1268
        %v1313 = vpack.c.bf16 %v1273, %v1269
        %v1314 = vpack.c.bf16 %v1274, %v1270
        %v1315 = vpack.c.bf16 %v1275, %v1271
        %v1316 = vpack.c.bf16 %v1280, %v1276
        %v1317 = vpack.c.bf16 %v1281, %v1277
        %v1318 = vpack.c.bf16 %v1282, %v1278
        %v1319 = vpack.c.bf16 %v1283, %v1279
        %v1320 = vpack.c.bf16 %v1288, %v1284
        %v1321 = vpack.c.bf16 %v1289, %v1285
        %v1322 = vpack.c.bf16 %v1290, %v1286
        %v1323 = vpack.c.bf16 %v1291, %v1287
        %v1324 = vld [vmem:[#allocation3] sm:$0xff]
        %v1325 = vld [vmem:[#allocation3 + $0x8] sm:$0xf]
        %v1326 = vld [vmem:[#allocation3 + $0xc] sm:$0xff]
        %v1327 = vld [vmem:[#allocation3 + $0x14] sm:$0xf]
        %v1328 = vld [vmem:[#allocation3 + $0x18] sm:$0xff]
        %v1329 = vld [vmem:[#allocation3 + $0x20] sm:$0xf]
        %v1330 = vld [vmem:[#allocation3 + $0x24] sm:$0xff]
        %v1331 = vld [vmem:[#allocation3 + $0x2c] sm:$0xf]
        %v1332 = vld [vmem:[#allocation3 + $0x30] sm:$0xff]
        %v1333 = vld [vmem:[#allocation3 + $0x38] sm:$0xf]
        %v1334 = vld [vmem:[#allocation3 + $0x3c] sm:$0xff]
        %v1335 = vld [vmem:[#allocation3 + $0x44] sm:$0xf]
        %v1336 = vld [vmem:[#allocation3 + $0x48] sm:$0xff]
        %v1337 = vld [vmem:[#allocation3 + $0x50] sm:$0xf]
        %v1338 = vld [vmem:[#allocation3 + $0x54] sm:$0xff]
        %v1339 = vld [vmem:[#allocation3 + $0x5c] sm:$0xf]
        %v1340 = vld [vmem:[#allocation3 + $0x60] sm:$0xff]
        %v1341 = vld [vmem:[#allocation3 + $0x68] sm:$0xf]
        %v1342 = vld [vmem:[#allocation3 + $0x6c] sm:$0xff]
        %v1343 = vld [vmem:[#allocation3 + $0x74] sm:$0xf]
        %v1344 = vld [vmem:[#allocation3 + $0x78] sm:$0xff]
        %v1345 = vld [vmem:[#allocation3 + $0x80] sm:$0xf]
        %v1346 = vld [vmem:[#allocation3 + $0x84] sm:$0xff]
        %v1347 = vld [vmem:[#allocation3 + $0x8c] sm:$0xf]
        %v1348 = vld [vmem:[#allocation3 + $0x90] sm:$0xff]
        %v1349 = vld [vmem:[#allocation3 + $0x98] sm:$0xf]
        %v1350 = vld [vmem:[#allocation3 + $0x9c] sm:$0xff]
        %v1351 = vld [vmem:[#allocation3 + $0xa4] sm:$0xf]
        %v1352 = vld [vmem:[#allocation3 + $0xa8] sm:$0xff]
        %v1353 = vld [vmem:[#allocation3 + $0xb0] sm:$0xf]
        %v1354 = vld [vmem:[#allocation3 + $0xb4] sm:$0xff]
        %v1355 = vld [vmem:[#allocation3 + $0xbc] sm:$0xf]
        %v1356 = vld [vmem:[#allocation3 + $0xc0] sm:$0xff]
        %v1357 = vld [vmem:[#allocation3 + $0xc8] sm:$0xf]
        %v1358 = vld [vmem:[#allocation3 + $0xcc] sm:$0xff]
        %v1359 = vld [vmem:[#allocation3 + $0xd4] sm:$0xf]
        %v1360 = vld [vmem:[#allocation3 + $0xd8] sm:$0xff]
        %v1361 = vld [vmem:[#allocation3 + $0xe0] sm:$0xf]
        %v1362 = vld [vmem:[#allocation3 + $0xe4] sm:$0xff]
        %v1363 = vld [vmem:[#allocation3 + $0xec] sm:$0xf]
        %v1364 = vld [vmem:[#allocation3 + $0xf0] sm:$0xff]
        %v1365 = vld [vmem:[#allocation3 + $0xf8] sm:$0xf]
        %v1366 = vld [vmem:[#allocation3 + $0xfc] sm:$0xff]
        %v1367 = vld [vmem:[#allocation3 + $0x104] sm:$0xf]
        %v1368 = vld [vmem:[#allocation3 + $0x108] sm:$0xff]
        %v1369 = vld [vmem:[#allocation3 + $0x110] sm:$0xf]
        %v1370 = vld [vmem:[#allocation3 + $0x114] sm:$0xff]
        %v1371 = vld [vmem:[#allocation3 + $0x11c] sm:$0xf]
        %v1372 = vld [vmem:[#allocation3 + $0x120] sm:$0xff]
        %v1373 = vld [vmem:[#allocation3 + $0x128] sm:$0xf]
        %v1374 = vld [vmem:[#allocation3 + $0x12c] sm:$0xff]
        %v1375 = vld [vmem:[#allocation3 + $0x134] sm:$0xf]
        %v1376 = vld [vmem:[#allocation3 + $0x138] sm:$0xff]
        %v1377 = vld [vmem:[#allocation3 + $0x140] sm:$0xf]
        %v1378 = vld [vmem:[#allocation3 + $0x144] sm:$0xff]
        %v1379 = vld [vmem:[#allocation3 + $0x14c] sm:$0xf]
        %v1380 = vld [vmem:[#allocation3 + $0x150] sm:$0xff]
        %v1381 = vld [vmem:[#allocation3 + $0x158] sm:$0xf]
        %v1382 = vld [vmem:[#allocation3 + $0x15c] sm:$0xff]
        %v1383 = vld [vmem:[#allocation3 + $0x164] sm:$0xf]
        %v1384 = vld [vmem:[#allocation3 + $0x168] sm:$0xff]
        %v1385 = vld [vmem:[#allocation3 + $0x170] sm:$0xf]
        %v1386 = vld [vmem:[#allocation3 + $0x174] sm:$0xff]
        %v1387 = vld [vmem:[#allocation3 + $0x17c] sm:$0xf]
        %v1388 = vld [vmem:[#allocation3 + $0x180] sm:$0xff]
        %v1389 = vld [vmem:[#allocation3 + $0x188] sm:$0xf]
        %v1390 = vld [vmem:[#allocation3 + $0x18c] sm:$0xff]
        %v1391 = vld [vmem:[#allocation3 + $0x194] sm:$0xf]
        %v1392 = vld [vmem:[#allocation3 + $0x198] sm:$0xff]
        %v1393 = vld [vmem:[#allocation3 + $0x1a0] sm:$0xf]
        %v1394 = vld [vmem:[#allocation3 + $0x1a4] sm:$0xff]
        %v1395 = vld [vmem:[#allocation3 + $0x1ac] sm:$0xf]
        %v1396 = vld [vmem:[#allocation3 + $0x1b0] sm:$0xff]
        %v1397 = vld [vmem:[#allocation3 + $0x1b8] sm:$0xf]
        %v1398 = vld [vmem:[#allocation3 + $0x1bc] sm:$0xff]
        %v1399 = vld [vmem:[#allocation3 + $0x1c4] sm:$0xf]
        %v1400 = vld [vmem:[#allocation3 + $0x1c8] sm:$0xff]
        %v1401 = vld [vmem:[#allocation3 + $0x1d0] sm:$0xf]
        %v1402 = vld [vmem:[#allocation3 + $0x1d4] sm:$0xff]
        %v1403 = vld [vmem:[#allocation3 + $0x1dc] sm:$0xf]
        %v1404 = vld [vmem:[#allocation3 + $0x1e0] sm:$0xff]
        %v1405 = vld [vmem:[#allocation3 + $0x1e8] sm:$0xf]
        %v1406 = vld [vmem:[#allocation3 + $0x1ec] sm:$0xff]
        %v1407 = vld [vmem:[#allocation3 + $0x1f4] sm:$0xf]
        %v1408 = vld [vmem:[#allocation3 + $0x1f8] sm:$0xff]
        %v1409 = vld [vmem:[#allocation3 + $0x200] sm:$0xf]
        %v1410 = vld [vmem:[#allocation3 + $0x204] sm:$0xff]
        %v1411 = vld [vmem:[#allocation3 + $0x20c] sm:$0xf]
        %v1412 = vld [vmem:[#allocation3 + $0x210] sm:$0xff]
        %v1413 = vld [vmem:[#allocation3 + $0x218] sm:$0xf]
        %v1414 = vld [vmem:[#allocation3 + $0x21c] sm:$0xff]
        %v1415 = vld [vmem:[#allocation3 + $0x224] sm:$0xf]
        %v1416 = vld [vmem:[#allocation3 + $0x228] sm:$0xff]
        %v1417 = vld [vmem:[#allocation3 + $0x230] sm:$0xf]
        %v1418 = vld [vmem:[#allocation3 + $0x234] sm:$0xff]
        %v1419 = vld [vmem:[#allocation3 + $0x23c] sm:$0xf]
        %v1420 = vld [vmem:[#allocation3 + $0x240] sm:$0xff]
        %v1421 = vld [vmem:[#allocation3 + $0x248] sm:$0xf]
        %v1422 = vld [vmem:[#allocation3 + $0x24c] sm:$0xff]
        %v1423 = vld [vmem:[#allocation3 + $0x254] sm:$0xf]
        %v1424 = vld [vmem:[#allocation3 + $0x258] sm:$0xff]
        %v1425 = vld [vmem:[#allocation3 + $0x260] sm:$0xf]
        %v1426 = vld [vmem:[#allocation3 + $0x264] sm:$0xff]
        %v1427 = vld [vmem:[#allocation3 + $0x26c] sm:$0xf]
        %v1428 = vld [vmem:[#allocation3 + $0x270] sm:$0xff]
        %v1429 = vld [vmem:[#allocation3 + $0x278] sm:$0xf]
        %v1430 = vld [vmem:[#allocation3 + $0x27c] sm:$0xff]
        %v1431 = vld [vmem:[#allocation3 + $0x284] sm:$0xf]
        %v1432 = vld [vmem:[#allocation3 + $0x288] sm:$0xff]
        %v1433 = vld [vmem:[#allocation3 + $0x290] sm:$0xf]
        %v1434 = vld [vmem:[#allocation3 + $0x294] sm:$0xff]
        %v1435 = vld [vmem:[#allocation3 + $0x29c] sm:$0xf]
        %v1436 = vld [vmem:[#allocation3 + $0x2a0] sm:$0xff]
        %v1437 = vld [vmem:[#allocation3 + $0x2a8] sm:$0xf]
        %v1438 = vld [vmem:[#allocation3 + $0x2ac] sm:$0xff]
        %v1439 = vld [vmem:[#allocation3 + $0x2b4] sm:$0xf]
        %v1440 = vld [vmem:[#allocation3 + $0x2b8] sm:$0xff]
        %v1441 = vld [vmem:[#allocation3 + $0x2c0] sm:$0xf]
        %v1442 = vld [vmem:[#allocation3 + $0x2c4] sm:$0xff]
        %v1443 = vld [vmem:[#allocation3 + $0x2cc] sm:$0xf]
        %v1444 = vld [vmem:[#allocation3 + $0x2d0] sm:$0xff]
        %v1445 = vld [vmem:[#allocation3 + $0x2d8] sm:$0xf]
        %v1446 = vld [vmem:[#allocation3 + $0x2dc] sm:$0xff]
        %v1447 = vld [vmem:[#allocation3 + $0x2e4] sm:$0xf]
        %v1448 = vld [vmem:[#allocation3 + $0x2e8] sm:$0xff]
        %v1449 = vld [vmem:[#allocation3 + $0x2f0] sm:$0xf]
        %v1450 = vld [vmem:[#allocation3 + $0x2f4] sm:$0xff]
        %v1451 = vld [vmem:[#allocation3 + $0x2fc] sm:$0xf]
        %v1453 = vlaneseq
        %v1454 = vshrl.u32 %v1453, 7
        %v1455 = vsub.s32 0, %v1454
        %v1456 = vrot.slane %v276, %v1455
        %v1457 = vlaneseq
        %v1458 = vshrl.u32 %v1457, 7
        %v1459 = vsub.s32 1, %v1458
        %v1460 = vrot.slane %v276, %v1459
        %v1461 = vlaneseq
        %v1462 = vshrl.u32 %v1461, 7
        %v1463 = vsub.s32 2, %v1462
        %v1464 = vrot.slane %v276, %v1463
        %v1596 = vunpack.c.l.b16 %v1324
        %v1597 = vunpack.c.h.b16 %v1324
        %v1598 = vunpack.c.l.b16 %v1325
        %v1599 = vunpack.c.l.b16 %v1326
        %v1600 = vunpack.c.h.b16 %v1326
        %v1601 = vunpack.c.l.b16 %v1327
        %v1602 = vunpack.c.l.b16 %v1328
        %v1603 = vunpack.c.h.b16 %v1328
        %v1604 = vunpack.c.l.b16 %v1329
        %v1605 = vunpack.c.l.b16 %v1330
        %v1606 = vunpack.c.h.b16 %v1330
        %v1607 = vunpack.c.l.b16 %v1331
        %v1608 = vunpack.c.l.b16 %v1332
        %v1609 = vunpack.c.h.b16 %v1332
        %v1610 = vunpack.c.l.b16 %v1333
        %v1611 = vunpack.c.l.b16 %v1334
        %v1612 = vunpack.c.h.b16 %v1334
        %v1613 = vunpack.c.l.b16 %v1335
        %v1614 = vunpack.c.l.b16 %v1336
        %v1615 = vunpack.c.h.b16 %v1336
        %v1616 = vunpack.c.l.b16 %v1337
        %v1617 = vunpack.c.l.b16 %v1338
        %v1618 = vunpack.c.h.b16 %v1338
        %v1619 = vunpack.c.l.b16 %v1339
        %v1620 = vunpack.c.l.b16 %v1340
        %v1621 = vunpack.c.h.b16 %v1340
        %v1622 = vunpack.c.l.b16 %v1341
        %v1623 = vunpack.c.l.b16 %v1342
        %v1624 = vunpack.c.h.b16 %v1342
        %v1625 = vunpack.c.l.b16 %v1343
        %v1626 = vunpack.c.l.b16 %v1344
        %v1627 = vunpack.c.h.b16 %v1344
        %v1628 = vunpack.c.l.b16 %v1345
        %v1629 = vunpack.c.l.b16 %v1346
        %v1630 = vunpack.c.h.b16 %v1346
        %v1631 = vunpack.c.l.b16 %v1347
        %v1632 = vunpack.c.l.b16 %v1348
        %v1633 = vunpack.c.h.b16 %v1348
        %v1634 = vunpack.c.l.b16 %v1349
        %v1635 = vunpack.c.l.b16 %v1350
        %v1636 = vunpack.c.h.b16 %v1350
        %v1637 = vunpack.c.l.b16 %v1351
        %v1638 = vunpack.c.l.b16 %v1352
        %v1639 = vunpack.c.h.b16 %v1352
        %v1640 = vunpack.c.l.b16 %v1353
        %v1641 = vunpack.c.l.b16 %v1354
        %v1642 = vunpack.c.h.b16 %v1354
        %v1643 = vunpack.c.l.b16 %v1355
        %v1644 = vunpack.c.l.b16 %v1356
        %v1645 = vunpack.c.h.b16 %v1356
        %v1646 = vunpack.c.l.b16 %v1357
        %v1647 = vunpack.c.l.b16 %v1358
        %v1648 = vunpack.c.h.b16 %v1358
        %v1649 = vunpack.c.l.b16 %v1359
        %v1650 = vunpack.c.l.b16 %v1360
        %v1651 = vunpack.c.h.b16 %v1360
        %v1652 = vunpack.c.l.b16 %v1361
        %v1653 = vunpack.c.l.b16 %v1362
        %v1654 = vunpack.c.h.b16 %v1362
        %v1655 = vunpack.c.l.b16 %v1363
        %v1656 = vunpack.c.l.b16 %v1364
        %v1657 = vunpack.c.h.b16 %v1364
        %v1658 = vunpack.c.l.b16 %v1365
        %v1659 = vunpack.c.l.b16 %v1366
        %v1660 = vunpack.c.h.b16 %v1366
        %v1661 = vunpack.c.l.b16 %v1367
        %v1662 = vunpack.c.l.b16 %v1368
        %v1663 = vunpack.c.h.b16 %v1368
        %v1664 = vunpack.c.l.b16 %v1369
        %v1665 = vunpack.c.l.b16 %v1370
        %v1666 = vunpack.c.h.b16 %v1370
        %v1667 = vunpack.c.l.b16 %v1371
        %v1668 = vunpack.c.l.b16 %v1372
        %v1669 = vunpack.c.h.b16 %v1372
        %v1670 = vunpack.c.l.b16 %v1373
        %v1671 = vunpack.c.l.b16 %v1374
        %v1672 = vunpack.c.h.b16 %v1374
        %v1673 = vunpack.c.l.b16 %v1375
        %v1674 = vunpack.c.l.b16 %v1376
        %v1675 = vunpack.c.h.b16 %v1376
        %v1676 = vunpack.c.l.b16 %v1377
        %v1677 = vunpack.c.l.b16 %v1378
        %v1678 = vunpack.c.h.b16 %v1378
        %v1679 = vunpack.c.l.b16 %v1379
        %v1680 = vunpack.c.l.b16 %v1380
        %v1681 = vunpack.c.h.b16 %v1380
        %v1682 = vunpack.c.l.b16 %v1381
        %v1683 = vunpack.c.l.b16 %v1382
        %v1684 = vunpack.c.h.b16 %v1382
        %v1685 = vunpack.c.l.b16 %v1383
        %v1686 = vunpack.c.l.b16 %v1384
        %v1687 = vunpack.c.h.b16 %v1384
        %v1688 = vunpack.c.l.b16 %v1385
        %v1689 = vunpack.c.l.b16 %v1386
        %v1690 = vunpack.c.h.b16 %v1386
        %v1691 = vunpack.c.l.b16 %v1387
        %v1692 = vunpack.c.l.b16 %v1388
        %v1693 = vunpack.c.h.b16 %v1388
        %v1694 = vunpack.c.l.b16 %v1389
        %v1695 = vunpack.c.l.b16 %v1390
        %v1696 = vunpack.c.h.b16 %v1390
        %v1697 = vunpack.c.l.b16 %v1391
        %v1698 = vunpack.c.l.b16 %v1392
        %v1699 = vunpack.c.h.b16 %v1392
        %v1700 = vunpack.c.l.b16 %v1393
        %v1701 = vunpack.c.l.b16 %v1394
        %v1702 = vunpack.c.h.b16 %v1394
        %v1703 = vunpack.c.l.b16 %v1395
        %v1704 = vunpack.c.l.b16 %v1396
        %v1705 = vunpack.c.h.b16 %v1396
        %v1706 = vunpack.c.l.b16 %v1397
        %v1707 = vunpack.c.l.b16 %v1398
        %v1708 = vunpack.c.h.b16 %v1398
        %v1709 = vunpack.c.l.b16 %v1399
        %v1710 = vunpack.c.l.b16 %v1400
        %v1711 = vunpack.c.h.b16 %v1400
        %v1712 = vunpack.c.l.b16 %v1401
        %v1713 = vunpack.c.l.b16 %v1402
        %v1714 = vunpack.c.h.b16 %v1402
        %v1715 = vunpack.c.l.b16 %v1403
        %v1716 = vunpack.c.l.b16 %v1404
        %v1717 = vunpack.c.h.b16 %v1404
        %v1718 = vunpack.c.l.b16 %v1405
        %v1719 = vunpack.c.l.b16 %v1406
        %v1720 = vunpack.c.h.b16 %v1406
        %v1721 = vunpack.c.l.b16 %v1407
        %v1722 = vunpack.c.l.b16 %v1408
        %v1723 = vunpack.c.h.b16 %v1408
        %v1724 = vunpack.c.l.b16 %v1409
        %v1725 = vunpack.c.l.b16 %v1410
        %v1726 = vunpack.c.h.b16 %v1410
        %v1727 = vunpack.c.l.b16 %v1411
        %v1728 = vunpack.c.l.b16 %v1412
        %v1729 = vunpack.c.h.b16 %v1412
        %v1730 = vunpack.c.l.b16 %v1413
        %v1731 = vunpack.c.l.b16 %v1414
        %v1732 = vunpack.c.h.b16 %v1414
        %v1733 = vunpack.c.l.b16 %v1415
        %v1734 = vunpack.c.l.b16 %v1416
        %v1735 = vunpack.c.h.b16 %v1416
        %v1736 = vunpack.c.l.b16 %v1417
        %v1737 = vunpack.c.l.b16 %v1418
        %v1738 = vunpack.c.h.b16 %v1418
        %v1739 = vunpack.c.l.b16 %v1419
        %v1740 = vunpack.c.l.b16 %v1420
        %v1741 = vunpack.c.h.b16 %v1420
        %v1742 = vunpack.c.l.b16 %v1421
        %v1743 = vunpack.c.l.b16 %v1422
        %v1744 = vunpack.c.h.b16 %v1422
        %v1745 = vunpack.c.l.b16 %v1423
        %v1746 = vunpack.c.l.b16 %v1424
        %v1747 = vunpack.c.h.b16 %v1424
        %v1748 = vunpack.c.l.b16 %v1425
        %v1749 = vunpack.c.l.b16 %v1426
        %v1750 = vunpack.c.h.b16 %v1426
        %v1751 = vunpack.c.l.b16 %v1427
        %v1752 = vunpack.c.l.b16 %v1428
        %v1753 = vunpack.c.h.b16 %v1428
        %v1754 = vunpack.c.l.b16 %v1429
        %v1755 = vunpack.c.l.b16 %v1430
        %v1756 = vunpack.c.h.b16 %v1430
        %v1757 = vunpack.c.l.b16 %v1431
        %v1758 = vunpack.c.l.b16 %v1432
        %v1759 = vunpack.c.h.b16 %v1432
        %v1760 = vunpack.c.l.b16 %v1433
        %v1761 = vunpack.c.l.b16 %v1434
        %v1762 = vunpack.c.h.b16 %v1434
        %v1763 = vunpack.c.l.b16 %v1435
        %v1764 = vunpack.c.l.b16 %v1436
        %v1765 = vunpack.c.h.b16 %v1436
        %v1766 = vunpack.c.l.b16 %v1437
        %v1767 = vunpack.c.l.b16 %v1438
        %v1768 = vunpack.c.h.b16 %v1438
        %v1769 = vunpack.c.l.b16 %v1439
        %v1770 = vunpack.c.l.b16 %v1440
        %v1771 = vunpack.c.h.b16 %v1440
        %v1772 = vunpack.c.l.b16 %v1441
        %v1773 = vunpack.c.l.b16 %v1442
        %v1774 = vunpack.c.h.b16 %v1442
        %v1775 = vunpack.c.l.b16 %v1443
        %v1776 = vunpack.c.l.b16 %v1444
        %v1777 = vunpack.c.h.b16 %v1444
        %v1778 = vunpack.c.l.b16 %v1445
        %v1779 = vunpack.c.l.b16 %v1446
        %v1780 = vunpack.c.h.b16 %v1446
        %v1781 = vunpack.c.l.b16 %v1447
        %v1782 = vunpack.c.l.b16 %v1448
        %v1783 = vunpack.c.h.b16 %v1448
        %v1784 = vunpack.c.l.b16 %v1449
        %v1785 = vunpack.c.l.b16 %v1450
        %v1786 = vunpack.c.h.b16 %v1450
        %v1787 = vunpack.c.l.b16 %v1451
        %v1788 = vpack.c.b16 %v1599, %v1596
        %v1789 = vpack.c.b16 %v1600, %v1597
        %v1790 = vpack.c.b16 %v1601, %v1598
        %v1791 = vpack.c.b16 %v1605, %v1602
        %v1792 = vpack.c.b16 %v1606, %v1603
        %v1793 = vpack.c.b16 %v1607, %v1604
        %v1794 = vpack.c.b16 %v1611, %v1608
        %v1795 = vpack.c.b16 %v1612, %v1609
        %v1796 = vpack.c.b16 %v1613, %v1610
        %v1797 = vpack.c.b16 %v1617, %v1614
        %v1798 = vpack.c.b16 %v1618, %v1615
        %v1799 = vpack.c.b16 %v1619, %v1616
        %v1800 = vpack.c.b16 %v1623, %v1620
        %v1801 = vpack.c.b16 %v1624, %v1621
        %v1802 = vpack.c.b16 %v1625, %v1622
        %v1803 = vpack.c.b16 %v1629, %v1626
        %v1804 = vpack.c.b16 %v1630, %v1627
        %v1805 = vpack.c.b16 %v1631, %v1628
        %v1806 = vpack.c.b16 %v1635, %v1632
        %v1807 = vpack.c.b16 %v1636, %v1633
        %v1808 = vpack.c.b16 %v1637, %v1634
        %v1809 = vpack.c.b16 %v1641, %v1638
        %v1810 = vpack.c.b16 %v1642, %v1639
        %v1811 = vpack.c.b16 %v1643, %v1640
        %v1812 = vpack.c.b16 %v1647, %v1644
        %v1813 = vpack.c.b16 %v1648, %v1645
        %v1814 = vpack.c.b16 %v1649, %v1646
        %v1815 = vpack.c.b16 %v1653, %v1650
        %v1816 = vpack.c.b16 %v1654, %v1651
        %v1817 = vpack.c.b16 %v1655, %v1652
        %v1818 = vpack.c.b16 %v1659, %v1656
        %v1819 = vpack.c.b16 %v1660, %v1657
        %v1820 = vpack.c.b16 %v1661, %v1658
        %v1821 = vpack.c.b16 %v1665, %v1662
        %v1822 = vpack.c.b16 %v1666, %v1663
        %v1823 = vpack.c.b16 %v1667, %v1664
        %v1824 = vpack.c.b16 %v1671, %v1668
        %v1825 = vpack.c.b16 %v1672, %v1669
        %v1826 = vpack.c.b16 %v1673, %v1670
        %v1827 = vpack.c.b16 %v1677, %v1674
        %v1828 = vpack.c.b16 %v1678, %v1675
        %v1829 = vpack.c.b16 %v1679, %v1676
        %v1830 = vpack.c.b16 %v1683, %v1680
        %v1831 = vpack.c.b16 %v1684, %v1681
        %v1832 = vpack.c.b16 %v1685, %v1682
        %v1833 = vpack.c.b16 %v1689, %v1686
        %v1834 = vpack.c.b16 %v1690, %v1687
        %v1835 = vpack.c.b16 %v1691, %v1688
        %v1836 = vpack.c.b16 %v1695, %v1692
        %v1837 = vpack.c.b16 %v1696, %v1693
        %v1838 = vpack.c.b16 %v1697, %v1694
        %v1839 = vpack.c.b16 %v1701, %v1698
        %v1840 = vpack.c.b16 %v1702, %v1699
        %v1841 = vpack.c.b16 %v1703, %v1700
        %v1842 = vpack.c.b16 %v1707, %v1704
        %v1843 = vpack.c.b16 %v1708, %v1705
        %v1844 = vpack.c.b16 %v1709, %v1706
        %v1845 = vpack.c.b16 %v1713, %v1710
        %v1846 = vpack.c.b16 %v1714, %v1711
        %v1847 = vpack.c.b16 %v1715, %v1712
        %v1848 = vpack.c.b16 %v1719, %v1716
        %v1849 = vpack.c.b16 %v1720, %v1717
        %v1850 = vpack.c.b16 %v1721, %v1718
        %v1851 = vpack.c.b16 %v1725, %v1722
        %v1852 = vpack.c.b16 %v1726, %v1723
        %v1853 = vpack.c.b16 %v1727, %v1724
        %v1854 = vpack.c.b16 %v1731, %v1728
        %v1855 = vpack.c.b16 %v1732, %v1729
        %v1856 = vpack.c.b16 %v1733, %v1730
        %v1857 = vpack.c.b16 %v1737, %v1734
        %v1858 = vpack.c.b16 %v1738, %v1735
        %v1859 = vpack.c.b16 %v1739, %v1736
        %v1860 = vpack.c.b16 %v1743, %v1740
        %v1861 = vpack.c.b16 %v1744, %v1741
        %v1862 = vpack.c.b16 %v1745, %v1742
        %v1863 = vpack.c.b16 %v1749, %v1746
        %v1864 = vpack.c.b16 %v1750, %v1747
        %v1865 = vpack.c.b16 %v1751, %v1748
        %v1866 = vpack.c.b16 %v1755, %v1752
        %v1867 = vpack.c.b16 %v1756, %v1753
        %v1868 = vpack.c.b16 %v1757, %v1754
        %v1869 = vpack.c.b16 %v1761, %v1758
        %v1870 = vpack.c.b16 %v1762, %v1759
        %v1871 = vpack.c.b16 %v1763, %v1760
        %v1872 = vpack.c.b16 %v1767, %v1764
        %v1873 = vpack.c.b16 %v1768, %v1765
        %v1874 = vpack.c.b16 %v1769, %v1766
        %v1875 = vpack.c.b16 %v1773, %v1770
        %v1876 = vpack.c.b16 %v1774, %v1771
        %v1877 = vpack.c.b16 %v1775, %v1772
        %v1878 = vpack.c.b16 %v1779, %v1776
        %v1879 = vpack.c.b16 %v1780, %v1777
        %v1880 = vpack.c.b16 %v1781, %v1778
        %v1881 = vpack.c.b16 %v1785, %v1782
        %v1882 = vpack.c.b16 %v1786, %v1783
        %v1883 = vpack.c.b16 %v1787, %v1784
        %1980 = vmatprep.subr.bf16.mxu0 %v1789
        %1981 = vmatpush1.bf16.msra.mxu0 %v1788
        %1982 = vmatprep.subr.bf16.mxu0 %v1792
        %1983 = vmatpush1.bf16.msra.mxu0 %v1791
        %1984 = vmatprep.subr.bf16.mxu0 %v1795
        %1985 = vmatpush1.bf16.msra.mxu0 %v1794
        %1986 = vmatprep.subr.bf16.mxu0 %v1798
        %1987 = vmatpush1.bf16.msra.mxu0 %v1797
        %1988 = vmatprep.subr.bf16.mxu0 %v1801
        %1989 = vmatpush1.bf16.msra.mxu0 %v1800
        %1990 = vmatprep.subr.bf16.mxu0 %v1804
        %1991 = vmatpush1.bf16.msra.mxu0 %v1803
        %1992 = vmatprep.subr.bf16.mxu0 %v1807
        %1993 = vmatpush1.bf16.msra.mxu0 %v1806
        %1994 = vmatprep.subr.bf16.mxu0 %v1810
        %1995 = vmatpush1.bf16.msra.mxu0 %v1809
        %1996 = vmatprep.subr.bf16.mxu0 %v1813
        %1997 = vmatpush1.bf16.msra.mxu0 %v1812
        %1998 = vmatprep.subr.bf16.mxu0 %v1816
        %1999 = vmatpush1.bf16.msra.mxu0 %v1815
        %2000 = vmatprep.subr.bf16.mxu0 %v1819
        %2001 = vmatpush1.bf16.msra.mxu0 %v1818
        %2002 = vmatprep.subr.bf16.mxu0 %v1822
        %2003 = vmatpush1.bf16.msra.mxu0 %v1821
        %2004 = vmatprep.subr.bf16.mxu0 %v1825
        %2005 = vmatpush1.bf16.msra.mxu0 %v1824
        %2006 = vmatprep.subr.bf16.mxu0 %v1828
        %2007 = vmatpush1.bf16.msra.mxu0 %v1827
        %2008 = vmatprep.subr.bf16.mxu0 %v1831
        %2009 = vmatpush1.bf16.msra.mxu0 %v1830
        %2010 = vmatprep.subr.bf16.mxu0 %v1834
        %2011 = vmatpush1.bf16.msra.mxu0 %v1833
        %2012 = vmatprep.mubr.bf16.mxu0 %v1293
        %2013 = vmatmul.mubr.bf16.gmra.mrb[0].mxu0 %v1292
        %v2014 = vpop.f32.mrb[0].mxu0
        %v2015 = vadd.f32 %v1456, %v2014
        %v2016 = vpop.f32.mrb[0].mxu0
        %v2017 = vadd.f32 %v1460, %v2016
        %v2018 = vpop.f32.mrb[0].mxu0
        %v2019 = vadd.f32 %v1456, %v2018
        %v2020 = vpop.f32.mrb[0].mxu0
        %v2021 = vadd.f32 %v1460, %v2020
        %2022 = vmatprep.mubr.bf16.mxu0 %v1297
        %2023 = vmatmul.mubr.bf16.gmra.mrb[0].mxu0 %v1296
        %v2024 = vpop.f32.mrb[0].mxu0
        %v2025 = vadd.f32 %v1456, %v2024
        %v2026 = vpop.f32.mrb[0].mxu0
        %v2027 = vadd.f32 %v1460, %v2026
        %v2028 = vpop.f32.mrb[0].mxu0
        %v2029 = vadd.f32 %v1456, %v2028
        %v2030 = vpop.f32.mrb[0].mxu0
        %v2031 = vadd.f32 %v1460, %v2030
        %2032 = vmatprep.mubr.bf16.mxu0 %v1301
        %2033 = vmatmul.mubr.bf16.gmra.mrb[0].mxu0 %v1300
        %v2034 = vpop.f32.mrb[0].mxu0
        %v2035 = vadd.f32 %v1456, %v2034
        %v2036 = vpop.f32.mrb[0].mxu0
        %v2037 = vadd.f32 %v1460, %v2036
        %v2038 = vpop.f32.mrb[0].mxu0
        %v2039 = vadd.f32 %v1456, %v2038
        %v2040 = vpop.f32.mrb[0].mxu0
        %v2041 = vadd.f32 %v1460, %v2040
        %2042 = vmatprep.mubr.bf16.mxu0 %v1305
        %2043 = vmatmul.mubr.bf16.gmra.mrb[0].mxu0 %v1304
        %v2044 = vpop.f32.mrb[0].mxu0
        %v2045 = vadd.f32 %v1456, %v2044
        %v2046 = vpop.f32.mrb[0].mxu0
        %v2047 = vadd.f32 %v1460, %v2046
        %v2048 = vpop.f32.mrb[0].mxu0
        %v2049 = vadd.f32 %v1456, %v2048
        %v2050 = vpop.f32.mrb[0].mxu0
        %v2051 = vadd.f32 %v1460, %v2050
        %2052 = vmatprep.mubr.bf16.mxu0 %v1309
        %2053 = vmatmul.mubr.bf16.gmra.mrb[0].mxu0 %v1308
        %v2054 = vpop.f32.mrb[0].mxu0
        %v2055 = vadd.f32 %v1456, %v2054
        %v2056 = vpop.f32.mrb[0].mxu0
        %v2057 = vadd.f32 %v1460, %v2056
        %v2058 = vpop.f32.mrb[0].mxu0
        %v2059 = vadd.f32 %v1456, %v2058
        %v2060 = vpop.f32.mrb[0].mxu0
        %v2061 = vadd.f32 %v1460, %v2060
        %2062 = vmatprep.mubr.bf16.mxu0 %v1313
        %2063 = vmatmul.mubr.bf16.gmra.mrb[0].mxu0 %v1312
        %v2064 = vpop.f32.mrb[0].mxu0
        %v2065 = vadd.f32 %v1456, %v2064
        %v2066 = vpop.f32.mrb[0].mxu0
        %v2067 = vadd.f32 %v1460, %v2066
        %v2068 = vpop.f32.mrb[0].mxu0
        %v2069 = vadd.f32 %v1456, %v2068
        %v2070 = vpop.f32.mrb[0].mxu0
        %v2071 = vadd.f32 %v1460, %v2070
        %2072 = vmatprep.mubr.bf16.mxu0 %v1317
        %2073 = vmatmul.mubr.bf16.gmra.mrb[0].mxu0 %v1316
        %v2074 = vpop.f32.mrb[0].mxu0
        %v2075 = vadd.f32 %v1456, %v2074
        %v2076 = vpop.f32.mrb[0].mxu0
        %v2077 = vadd.f32 %v1460, %v2076
        %v2078 = vpop.f32.mrb[0].mxu0
        %v2079 = vadd.f32 %v1456, %v2078
        %v2080 = vpop.f32.mrb[0].mxu0
        %v2081 = vadd.f32 %v1460, %v2080
        %2082 = vmatprep.mubr.bf16.mxu0 %v1321
        %2083 = vmatmul.mubr.bf16.gmra.mrb[0].mxu0 %v1320
        %v2084 = vpop.f32.mrb[0].mxu0
        %v2085 = vadd.f32 %v1456, %v2084
        %v2086 = vpop.f32.mrb[0].mxu0
        %v2087 = vadd.f32 %v1460, %v2086
        %v2088 = vpop.f32.mrb[0].mxu0
        %v2089 = vadd.f32 %v1456, %v2088
        %v2090 = vpop.f32.mrb[0].mxu0
        %v2091 = vadd.f32 %v1460, %v2090
        %2092 = vdwg.mxu0
        %2093 = vmatprep.subr.bf16.mxu0 %v1837
        %2094 = vmatpush1.bf16.msra.mxu0 %v1836
        %2095 = vmatprep.subr.bf16.mxu0 %v1840
        %2096 = vmatpush1.bf16.msra.mxu0 %v1839
        %2097 = vmatprep.subr.bf16.mxu0 %v1843
        %2098 = vmatpush1.bf16.msra.mxu0 %v1842
        %2099 = vmatprep.subr.bf16.mxu0 %v1846
        %2100 = vmatpush1.bf16.msra.mxu0 %v1845
        %2101 = vmatprep.subr.bf16.mxu0 %v1849
        %2102 = vmatpush1.bf16.msra.mxu0 %v1848
        %2103 = vmatprep.subr.bf16.mxu0 %v1852
        %2104 = vmatpush1.bf16.msra.mxu0 %v1851
        %2105 = vmatprep.subr.bf16.mxu0 %v1855
        %2106 = vmatpush1.bf16.msra.mxu0 %v1854
        %2107 = vmatprep.subr.bf16.mxu0 %v1858
        %2108 = vmatpush1.bf16.msra.mxu0 %v1857
        %2109 = vmatprep.subr.bf16.mxu0 %v1861
        %2110 = vmatpush1.bf16.msra.mxu0 %v1860
        %2111 = vmatprep.subr.bf16.mxu0 %v1864
        %2112 = vmatpush1.bf16.msra.mxu0 %v1863
        %2113 = vmatprep.subr.bf16.mxu0 %v1867
        %2114 = vmatpush1.bf16.msra.mxu0 %v1866
        %2115 = vmatprep.subr.bf16.mxu0 %v1870
        %2116 = vmatpush1.bf16.msra.mxu0 %v1869
        %2117 = vmatprep.subr.bf16.mxu0 %v1873
        %2118 = vmatpush1.bf16.msra.mxu0 %v1872
        %2119 = vmatprep.subr.bf16.mxu0 %v1876
        %2120 = vmatpush1.bf16.msra.mxu0 %v1875
        %2121 = vmatprep.subr.bf16.mxu0 %v1879
        %2122 = vmatpush1.bf16.msra.mxu0 %v1878
        %2123 = vmatprep.subr.bf16.mxu0 %v1882
        %2124 = vmatpush1.bf16.msra.mxu0 %v1881
        %2125 = vmatprep.mubr.bf16.mxu0 %v1295
        %2126 = vmatmul.mubr.bf16.gmra.mrb[0].mxu0 %v1294
        %v2127 = vpop.f32.mrb[0].mxu0
        %v2128 = vadd.f32 %v2015, %v2127
        %v2129 = vpop.f32.mrb[0].mxu0
        %v2130 = vadd.f32 %v2017, %v2129
        %v2131 = vpop.f32.mrb[0].mxu0
        %v2132 = vadd.f32 %v2019, %v2131
        %v2133 = vpop.f32.mrb[0].mxu0
        %v2134 = vadd.f32 %v2021, %v2133
        %2135 = vmatprep.mubr.bf16.mxu0 %v1299
        %2136 = vmatmul.mubr.bf16.gmra.mrb[0].mxu0 %v1298
        %v2137 = vpop.f32.mrb[0].mxu0
        %v2138 = vadd.f32 %v2025, %v2137
        %v2139 = vpop.f32.mrb[0].mxu0
        %v2140 = vadd.f32 %v2027, %v2139
        %v2141 = vpop.f32.mrb[0].mxu0
        %v2142 = vadd.f32 %v2029, %v2141
        %v2143 = vpop.f32.mrb[0].mxu0
        %v2144 = vadd.f32 %v2031, %v2143
        %2145 = vmatprep.mubr.bf16.mxu0 %v1303
        %2146 = vmatmul.mubr.bf16.gmra.mrb[0].mxu0 %v1302
        %v2147 = vpop.f32.mrb[0].mxu0
        %v2148 = vadd.f32 %v2035, %v2147
        %v2149 = vpop.f32.mrb[0].mxu0
        %v2150 = vadd.f32 %v2037, %v2149
        %v2151 = vpop.f32.mrb[0].mxu0
        %v2152 = vadd.f32 %v2039, %v2151
        %v2153 = vpop.f32.mrb[0].mxu0
        %v2154 = vadd.f32 %v2041, %v2153
        %2155 = vmatprep.mubr.bf16.mxu0 %v1307
        %2156 = vmatmul.mubr.bf16.gmra.mrb[0].mxu0 %v1306
        %v2157 = vpop.f32.mrb[0].mxu0
        %v2158 = vadd.f32 %v2045, %v2157
        %v2159 = vpop.f32.mrb[0].mxu0
        %v2160 = vadd.f32 %v2047, %v2159
        %v2161 = vpop.f32.mrb[0].mxu0
        %v2162 = vadd.f32 %v2049, %v2161
        %v2163 = vpop.f32.mrb[0].mxu0
        %v2164 = vadd.f32 %v2051, %v2163
        %2165 = vmatprep.mubr.bf16.mxu0 %v1311
        %2166 = vmatmul.mubr.bf16.gmra.mrb[0].mxu0 %v1310
        %v2167 = vpop.f32.mrb[0].mxu0
        %v2168 = vadd.f32 %v2055, %v2167
        %v2169 = vpop.f32.mrb[0].mxu0
        %v2170 = vadd.f32 %v2057, %v2169
        %v2171 = vpop.f32.mrb[0].mxu0
        %v2172 = vadd.f32 %v2059, %v2171
        %v2173 = vpop.f32.mrb[0].mxu0
        %v2174 = vadd.f32 %v2061, %v2173
        %2175 = vmatprep.mubr.bf16.mxu0 %v1315
        %2176 = vmatmul.mubr.bf16.gmra.mrb[0].mxu0 %v1314
        %v2177 = vpop.f32.mrb[0].mxu0
        %v2178 = vadd.f32 %v2065, %v2177
        %v2179 = vpop.f32.mrb[0].mxu0
        %v2180 = vadd.f32 %v2067, %v2179
        %v2181 = vpop.f32.mrb[0].mxu0
        %v2182 = vadd.f32 %v2069, %v2181
        %v2183 = vpop.f32.mrb[0].mxu0
        %v2184 = vadd.f32 %v2071, %v2183
        %2185 = vmatprep.mubr.bf16.mxu0 %v1319
        %2186 = vmatmul.mubr.bf16.gmra.mrb[0].mxu0 %v1318
        %v2187 = vpop.f32.mrb[0].mxu0
        %v2188 = vadd.f32 %v2075, %v2187
        %v2189 = vpop.f32.mrb[0].mxu0
        %v2190 = vadd.f32 %v2077, %v2189
        %v2191 = vpop.f32.mrb[0].mxu0
        %v2192 = vadd.f32 %v2079, %v2191
        %v2193 = vpop.f32.mrb[0].mxu0
        %v2194 = vadd.f32 %v2081, %v2193
        %2195 = vmatprep.mubr.bf16.mxu0 %v1323
        %2196 = vmatmul.mubr.bf16.gmra.mrb[0].mxu0 %v1322
        %v2197 = vpop.f32.mrb[0].mxu0
        %v2198 = vadd.f32 %v2085, %v2197
        %v2199 = vpop.f32.mrb[0].mxu0
        %v2200 = vadd.f32 %v2087, %v2199
        %v2201 = vpop.f32.mrb[0].mxu0
        %v2202 = vadd.f32 %v2089, %v2201
        %v2203 = vpop.f32.mrb[0].mxu0
        %v2204 = vadd.f32 %v2091, %v2203
        %2205 = vdwg.mxu0
        %2206 = vmatprep.subr.bf16.mxu0 0
        %2207 = vmatpush1.bf16.msra.mxu0 %v1790
        %2208 = vmatprep.subr.bf16.mxu0 0
        %2209 = vmatpush1.bf16.msra.mxu0 %v1793
        %2210 = vmatprep.subr.bf16.mxu0 0
        %2211 = vmatpush1.bf16.msra.mxu0 %v1796
        %2212 = vmatprep.subr.bf16.mxu0 0
        %2213 = vmatpush1.bf16.msra.mxu0 %v1799
        %2214 = vmatprep.subr.bf16.mxu0 0
        %2215 = vmatpush1.bf16.msra.mxu0 %v1802
        %2216 = vmatprep.subr.bf16.mxu0 0
        %2217 = vmatpush1.bf16.msra.mxu0 %v1805
        %2218 = vmatprep.subr.bf16.mxu0 0
        %2219 = vmatpush1.bf16.msra.mxu0 %v1808
        %2220 = vmatprep.subr.bf16.mxu0 0
        %2221 = vmatpush1.bf16.msra.mxu0 %v1811
        %2222 = vmatprep.subr.bf16.mxu0 0
        %2223 = vmatpush1.bf16.msra.mxu0 %v1814
        %2224 = vmatprep.subr.bf16.mxu0 0
        %2225 = vmatpush1.bf16.msra.mxu0 %v1817
        %2226 = vmatprep.subr.bf16.mxu0 0
        %2227 = vmatpush1.bf16.msra.mxu0 %v1820
        %2228 = vmatprep.subr.bf16.mxu0 0
        %2229 = vmatpush1.bf16.msra.mxu0 %v1823
        %2230 = vmatprep.subr.bf16.mxu0 0
        %2231 = vmatpush1.bf16.msra.mxu0 %v1826
        %2232 = vmatprep.subr.bf16.mxu0 0
        %2233 = vmatpush1.bf16.msra.mxu0 %v1829
        %2234 = vmatprep.subr.bf16.mxu0 0
        %2235 = vmatpush1.bf16.msra.mxu0 %v1832
        %2236 = vmatprep.subr.bf16.mxu0 0
        %2237 = vmatpush1.bf16.msra.mxu0 %v1835
        %2238 = vmatprep.mubr.bf16.mxu0 %v1293
        %2239 = vmatmul.mubr.bf16.gmra.mrb[0].mxu0 %v1292
        %v2240 = vpop.f32.mrb[0].mxu0
        %v2241 = vadd.f32 %v1464, %v2240
        %v2242 = vpop.f32.mrb[0].mxu0
        %v2243 = vpop.f32.mrb[0].mxu0
        %v2244 = vadd.f32 %v1464, %v2243
        %v2245 = vpop.f32.mrb[0].mxu0
        %2246 = vmatprep.mubr.bf16.mxu0 %v1297
        %2247 = vmatmul.mubr.bf16.gmra.mrb[0].mxu0 %v1296
        %v2248 = vpop.f32.mrb[0].mxu0
        %v2249 = vadd.f32 %v1464, %v2248
        %v2250 = vpop.f32.mrb[0].mxu0
        %v2251 = vpop.f32.mrb[0].mxu0
        %v2252 = vadd.f32 %v1464, %v2251
        %v2253 = vpop.f32.mrb[0].mxu0
        %2254 = vmatprep.mubr.bf16.mxu0 %v1301
        %2255 = vmatmul.mubr.bf16.gmra.mrb[0].mxu0 %v1300
        %v2256 = vpop.f32.mrb[0].mxu0
        %v2257 = vadd.f32 %v1464, %v2256
        %v2258 = vpop.f32.mrb[0].mxu0
        %v2259 = vpop.f32.mrb[0].mxu0
        %v2260 = vadd.f32 %v1464, %v2259
        %v2261 = vpop.f32.mrb[0].mxu0
        %2262 = vmatprep.mubr.bf16.mxu0 %v1305
        %2263 = vmatmul.mubr.bf16.gmra.mrb[0].mxu0 %v1304
        %v2264 = vpop.f32.mrb[0].mxu0
        %v2265 = vadd.f32 %v1464, %v2264
        %v2266 = vpop.f32.mrb[0].mxu0
        %v2267 = vpop.f32.mrb[0].mxu0
        %v2268 = vadd.f32 %v1464, %v2267
        %v2269 = vpop.f32.mrb[0].mxu0
        %2270 = vmatprep.mubr.bf16.mxu0 %v1309
        %2271 = vmatmul.mubr.bf16.gmra.mrb[0].mxu0 %v1308
        %v2272 = vpop.f32.mrb[0].mxu0
        %v2273 = vadd.f32 %v1464, %v2272
        %v2274 = vpop.f32.mrb[0].mxu0
        %v2275 = vpop.f32.mrb[0].mxu0
        %v2276 = vadd.f32 %v1464, %v2275
        %v2277 = vpop.f32.mrb[0].mxu0
        %2278 = vmatprep.mubr.bf16.mxu0 %v1313
        %2279 = vmatmul.mubr.bf16.gmra.mrb[0].mxu0 %v1312
        %v2280 = vpop.f32.mrb[0].mxu0
        %v2281 = vadd.f32 %v1464, %v2280
        %v2282 = vpop.f32.mrb[0].mxu0
        %v2283 = vpop.f32.mrb[0].mxu0
        %v2284 = vadd.f32 %v1464, %v2283
        %v2285 = vpop.f32.mrb[0].mxu0
        %2286 = vmatprep.mubr.bf16.mxu0 %v1317
        %2287 = vmatmul.mubr.bf16.gmra.mrb[0].mxu0 %v1316
        %v2288 = vpop.f32.mrb[0].mxu0
        %v2289 = vadd.f32 %v1464, %v2288
        %v2290 = vpop.f32.mrb[0].mxu0
        %v2291 = vpop.f32.mrb[0].mxu0
        %v2292 = vadd.f32 %v1464, %v2291
        %v2293 = vpop.f32.mrb[0].mxu0
        %2294 = vmatprep.mubr.bf16.mxu0 %v1321
        %2295 = vmatmul.mubr.bf16.gmra.mrb[0].mxu0 %v1320
        %v2296 = vpop.f32.mrb[0].mxu0
        %v2297 = vadd.f32 %v1464, %v2296
        %v2298 = vpop.f32.mrb[0].mxu0
        %v2299 = vpop.f32.mrb[0].mxu0
        %v2300 = vadd.f32 %v1464, %v2299
        %v2301 = vpop.f32.mrb[0].mxu0
        %2302 = vdwg.mxu0
        %2303 = vmatprep.subr.bf16.mxu0 0
        %2304 = vmatpush1.bf16.msra.mxu0 %v1838
        %2305 = vmatprep.subr.bf16.mxu0 0
        %2306 = vmatpush1.bf16.msra.mxu0 %v1841
        %2307 = vmatprep.subr.bf16.mxu0 0
        %2308 = vmatpush1.bf16.msra.mxu0 %v1844
        %2309 = vmatprep.subr.bf16.mxu0 0
        %2310 = vmatpush1.bf16.msra.mxu0 %v1847
        %2311 = vmatprep.subr.bf16.mxu0 0
        %2312 = vmatpush1.bf16.msra.mxu0 %v1850
        %2313 = vmatprep.subr.bf16.mxu0 0
        %2314 = vmatpush1.bf16.msra.mxu0 %v1853
        %2315 = vmatprep.subr.bf16.mxu0 0
        %2316 = vmatpush1.bf16.msra.mxu0 %v1856
        %2317 = vmatprep.subr.bf16.mxu0 0
        %2318 = vmatpush1.bf16.msra.mxu0 %v1859
        %2319 = vmatprep.subr.bf16.mxu0 0
        %2320 = vmatpush1.bf16.msra.mxu0 %v1862
        %2321 = vmatprep.subr.bf16.mxu0 0
        %2322 = vmatpush1.bf16.msra.mxu0 %v1865
        %2323 = vmatprep.subr.bf16.mxu0 0
        %2324 = vmatpush1.bf16.msra.mxu0 %v1868
        %2325 = vmatprep.subr.bf16.mxu0 0
        %2326 = vmatpush1.bf16.msra.mxu0 %v1871
        %2327 = vmatprep.subr.bf16.mxu0 0
        %2328 = vmatpush1.bf16.msra.mxu0 %v1874
        %2329 = vmatprep.subr.bf16.mxu0 0
        %2330 = vmatpush1.bf16.msra.mxu0 %v1877
        %2331 = vmatprep.subr.bf16.mxu0 0
        %2332 = vmatpush1.bf16.msra.mxu0 %v1880
        %2333 = vmatprep.subr.bf16.mxu0 0
        %2334 = vmatpush1.bf16.msra.mxu0 %v1883
        %2335 = vmatprep.mubr.bf16.mxu0 %v1295
        %2336 = vmatmul.mubr.bf16.gmra.mrb[0].mxu0 %v1294
        %v2337 = vpop.f32.mrb[0].mxu0
        %v2338 = vadd.f32 %v2241, %v2337
        %v2339 = vpop.f32.mrb[0].mxu0
        %v2340 = vpop.f32.mrb[0].mxu0
        %v2341 = vadd.f32 %v2244, %v2340
        %v2342 = vpop.f32.mrb[0].mxu0
        %2343 = vmatprep.mubr.bf16.mxu0 %v1299
        %2344 = vmatmul.mubr.bf16.gmra.mrb[0].mxu0 %v1298
        %v2345 = vpop.f32.mrb[0].mxu0
        %v2346 = vadd.f32 %v2249, %v2345
        %v2347 = vpop.f32.mrb[0].mxu0
        %v2348 = vpop.f32.mrb[0].mxu0
        %v2349 = vadd.f32 %v2252, %v2348
        %v2350 = vpop.f32.mrb[0].mxu0
        %2351 = vmatprep.mubr.bf16.mxu0 %v1303
        %2352 = vmatmul.mubr.bf16.gmra.mrb[0].mxu0 %v1302
        %v2353 = vpop.f32.mrb[0].mxu0
        %v2354 = vadd.f32 %v2257, %v2353
        %v2355 = vpop.f32.mrb[0].mxu0
        %v2356 = vpop.f32.mrb[0].mxu0
        %v2357 = vadd.f32 %v2260, %v2356
        %v2358 = vpop.f32.mrb[0].mxu0
        %2359 = vmatprep.mubr.bf16.mxu0 %v1307
        %2360 = vmatmul.mubr.bf16.gmra.mrb[0].mxu0 %v1306
        %v2361 = vpop.f32.mrb[0].mxu0
        %v2362 = vadd.f32 %v2265, %v2361
        %v2363 = vpop.f32.mrb[0].mxu0
        %v2364 = vpop.f32.mrb[0].mxu0
        %v2365 = vadd.f32 %v2268, %v2364
        %v2366 = vpop.f32.mrb[0].mxu0
        %2367 = vmatprep.mubr.bf16.mxu0 %v1311
        %2368 = vmatmul.mubr.bf16.gmra.mrb[0].mxu0 %v1310
        %v2369 = vpop.f32.mrb[0].mxu0
        %v2370 = vadd.f32 %v2273, %v2369
        %v2371 = vpop.f32.mrb[0].mxu0
        %v2372 = vpop.f32.mrb[0].mxu0
        %v2373 = vadd.f32 %v2276, %v2372
        %v2374 = vpop.f32.mrb[0].mxu0
        %2375 = vmatprep.mubr.bf16.mxu0 %v1315
        %2376 = vmatmul.mubr.bf16.gmra.mrb[0].mxu0 %v1314
        %v2377 = vpop.f32.mrb[0].mxu0
        %v2378 = vadd.f32 %v2281, %v2377
        %v2379 = vpop.f32.mrb[0].mxu0
        %v2380 = vpop.f32.mrb[0].mxu0
        %v2381 = vadd.f32 %v2284, %v2380
        %v2382 = vpop.f32.mrb[0].mxu0
        %2383 = vmatprep.mubr.bf16.mxu0 %v1319
        %2384 = vmatmul.mubr.bf16.gmra.mrb[0].mxu0 %v1318
        %v2385 = vpop.f32.mrb[0].mxu0
        %v2386 = vadd.f32 %v2289, %v2385
        %v2387 = vpop.f32.mrb[0].mxu0
        %v2388 = vpop.f32.mrb[0].mxu0
        %v2389 = vadd.f32 %v2292, %v2388
        %v2390 = vpop.f32.mrb[0].mxu0
        %2391 = vmatprep.mubr.bf16.mxu0 %v1323
        %2392 = vmatmul.mubr.bf16.gmra.mrb[0].mxu0 %v1322
        %v2393 = vpop.f32.mrb[0].mxu0
        %v2394 = vadd.f32 %v2297, %v2393
        %v2395 = vpop.f32.mrb[0].mxu0
        %v2396 = vpop.f32.mrb[0].mxu0
        %v2397 = vadd.f32 %v2300, %v2396
        %v2398 = vpop.f32.mrb[0].mxu0
        %2399 = vdwg.mxu0
        %v2400 = vadd.f32 %v2128, %v2132
        %v2401 = vadd.f32 %v2400, %v2138
        %v2402 = vadd.f32 %v2401, %v2142
        %v2403 = vadd.f32 %v2402, %v2148
        %v2404 = vadd.f32 %v2403, %v2152
        %v2405 = vadd.f32 %v2404, %v2158
        %v2406 = vadd.f32 %v2405, %v2162
        %v2407 = vadd.f32 %v2406, %v2168
        %v2408 = vadd.f32 %v2407, %v2172
        %v2409 = vadd.f32 %v2408, %v2178
        %v2410 = vadd.f32 %v2409, %v2182
        %v2411 = vadd.f32 %v2410, %v2188
        %v2412 = vadd.f32 %v2411, %v2192
        %v2413 = vadd.f32 %v2412, %v2198
        %v2414 = vadd.f32 %v2413, %v2202
        %v2415 = vrot.slane %v2414, 4
        %v2416 = vadd.f32 %v2414, %v2415
        %v2417 = vrot.slane %v2416, 2
        %v2418 = vadd.f32 %v2416, %v2417
        %v2419 = vrot.slane %v2418, 1
        %v2420 = vadd.f32 %v2418, %v2419
        %v2421 = vadd.f32 %v2130, %v2134
        %v2422 = vadd.f32 %v2421, %v2140
        %v2423 = vadd.f32 %v2422, %v2144
        %v2424 = vadd.f32 %v2423, %v2150
        %v2425 = vadd.f32 %v2424, %v2154
        %v2426 = vadd.f32 %v2425, %v2160
        %v2427 = vadd.f32 %v2426, %v2164
        %v2428 = vadd.f32 %v2427, %v2170
        %v2429 = vadd.f32 %v2428, %v2174
        %v2430 = vadd.f32 %v2429, %v2180
        %v2431 = vadd.f32 %v2430, %v2184
        %v2432 = vadd.f32 %v2431, %v2190
        %v2433 = vadd.f32 %v2432, %v2194
        %v2434 = vadd.f32 %v2433, %v2200
        %v2435 = vadd.f32 %v2434, %v2204
        %v2436 = vrot.slane %v2435, 4
        %v2437 = vadd.f32 %v2435, %v2436
        %v2438 = vrot.slane %v2437, 2
        %v2439 = vadd.f32 %v2437, %v2438
        %v2440 = vrot.slane %v2439, 1
        %v2441 = vadd.f32 %v2439, %v2440
        %v2442 = vadd.f32 %v2338, %v2341
        %v2443 = vadd.f32 %v2442, %v2346
        %v2444 = vadd.f32 %v2443, %v2349
        %v2445 = vadd.f32 %v2444, %v2354
        %v2446 = vadd.f32 %v2445, %v2357
        %v2447 = vadd.f32 %v2446, %v2362
        %v2448 = vadd.f32 %v2447, %v2365
        %v2449 = vadd.f32 %v2448, %v2370
        %v2450 = vadd.f32 %v2449, %v2373
        %v2451 = vadd.f32 %v2450, %v2378
        %v2452 = vadd.f32 %v2451, %v2381
        %v2453 = vadd.f32 %v2452, %v2386
        %v2454 = vadd.f32 %v2453, %v2389
        %v2455 = vadd.f32 %v2454, %v2394
        %v2456 = vadd.f32 %v2455, %v2397
        %v2457 = vrot.slane %v2456, 4
        %v2458 = vadd.f32 %v2456, %v2457
        %v2459 = vrot.slane %v2458, 2
        %v2460 = vadd.f32 %v2458, %v2459
        %v2461 = vrot.slane %v2460, 1
        %v2462 = vadd.f32 %v2460, %v2461
        %v2463 = vmul.f32 %v2420, 0.0078125
        %v2464 = vmul.f32 %v2441, 0.0078125
        %v2465 = vmul.f32 %v2462, 0.0078125
        %v2466 = vmul.f32 %v2128, %v2128
        %v2467 = vmul.f32 %v2130, %v2130
        %v2468 = vmul.f32 %v2338, %v2338
        %v2469 = vmul.f32 %v2132, %v2132
        %v2470 = vmul.f32 %v2134, %v2134
        %v2471 = vmul.f32 %v2341, %v2341
        %v2472 = vmul.f32 %v2138, %v2138
        %v2473 = vmul.f32 %v2140, %v2140
        %v2474 = vmul.f32 %v2346, %v2346
        %v2475 = vmul.f32 %v2142, %v2142
        %v2476 = vmul.f32 %v2144, %v2144
        %v2477 = vmul.f32 %v2349, %v2349
        %v2478 = vmul.f32 %v2148, %v2148
        %v2479 = vmul.f32 %v2150, %v2150
        %v2480 = vmul.f32 %v2354, %v2354
        %v2481 = vmul.f32 %v2152, %v2152
        %v2482 = vmul.f32 %v2154, %v2154
        %v2483 = vmul.f32 %v2357, %v2357
        %v2484 = vmul.f32 %v2158, %v2158
        %v2485 = vmul.f32 %v2160, %v2160
        %v2486 = vmul.f32 %v2362, %v2362
        %v2487 = vmul.f32 %v2162, %v2162
        %v2488 = vmul.f32 %v2164, %v2164
        %v2489 = vmul.f32 %v2365, %v2365
        %v2490 = vmul.f32 %v2168, %v2168
        %v2491 = vmul.f32 %v2170, %v2170
        %v2492 = vmul.f32 %v2370, %v2370
        %v2493 = vmul.f32 %v2172, %v2172
        %v2494 = vmul.f32 %v2174, %v2174
        %v2495 = vmul.f32 %v2373, %v2373
        %v2496 = vmul.f32 %v2178, %v2178
        %v2497 = vmul.f32 %v2180, %v2180
        %v2498 = vmul.f32 %v2378, %v2378
        %v2499 = vmul.f32 %v2182, %v2182
        %v2500 = vmul.f32 %v2184, %v2184
        %v2501 = vmul.f32 %v2381, %v2381
        %v2502 = vmul.f32 %v2188, %v2188
        %v2503 = vmul.f32 %v2190, %v2190
        %v2504 = vmul.f32 %v2386, %v2386
        %v2505 = vmul.f32 %v2192, %v2192
        %v2506 = vmul.f32 %v2194, %v2194
        %v2507 = vmul.f32 %v2389, %v2389
        %v2508 = vmul.f32 %v2198, %v2198
        %v2509 = vmul.f32 %v2200, %v2200
        %v2510 = vmul.f32 %v2394, %v2394
        %v2511 = vmul.f32 %v2202, %v2202
        %v2512 = vmul.f32 %v2204, %v2204
        %v2513 = vmul.f32 %v2397, %v2397
        %v2514 = vadd.f32 %v2466, %v2469
        %v2515 = vadd.f32 %v2514, %v2472
        %v2516 = vadd.f32 %v2515, %v2475
        %v2517 = vadd.f32 %v2516, %v2478
        %v2518 = vadd.f32 %v2517, %v2481
        %v2519 = vadd.f32 %v2518, %v2484
        %v2520 = vadd.f32 %v2519, %v2487
        %v2521 = vadd.f32 %v2520, %v2490
        %v2522 = vadd.f32 %v2521, %v2493
        %v2523 = vadd.f32 %v2522, %v2496
        %v2524 = vadd.f32 %v2523, %v2499
        %v2525 = vadd.f32 %v2524, %v2502
        %v2526 = vadd.f32 %v2525, %v2505
        %v2527 = vadd.f32 %v2526, %v2508
        %v2528 = vadd.f32 %v2527, %v2511
        %v2529 = vrot.slane %v2528, 4
        %v2530 = vadd.f32 %v2528, %v2529
        %v2531 = vrot.slane %v2530, 2
        %v2532 = vadd.f32 %v2530, %v2531
        %v2533 = vrot.slane %v2532, 1
        %v2534 = vadd.f32 %v2532, %v2533
        %v2535 = vadd.f32 %v2467, %v2470
        %v2536 = vadd.f32 %v2535, %v2473
        %v2537 = vadd.f32 %v2536, %v2476
        %v2538 = vadd.f32 %v2537, %v2479
        %v2539 = vadd.f32 %v2538, %v2482
        %v2540 = vadd.f32 %v2539, %v2485
        %v2541 = vadd.f32 %v2540, %v2488
        %v2542 = vadd.f32 %v2541, %v2491
        %v2543 = vadd.f32 %v2542, %v2494
        %v2544 = vadd.f32 %v2543, %v2497
        %v2545 = vadd.f32 %v2544, %v2500
        %v2546 = vadd.f32 %v2545, %v2503
        %v2547 = vadd.f32 %v2546, %v2506
        %v2548 = vadd.f32 %v2547, %v2509
        %v2549 = vadd.f32 %v2548, %v2512
        %v2550 = vrot.slane %v2549, 4
        %v2551 = vadd.f32 %v2549, %v2550
        %v2552 = vrot.slane %v2551, 2
        %v2553 = vadd.f32 %v2551, %v2552
        %v2554 = vrot.slane %v2553, 1
        %v2555 = vadd.f32 %v2553, %v2554
        %v2556 = vadd.f32 %v2468, %v2471
        %v2557 = vadd.f32 %v2556, %v2474
        %v2558 = vadd.f32 %v2557, %v2477
        %v2559 = vadd.f32 %v2558, %v2480
        %v2560 = vadd.f32 %v2559, %v2483
        %v2561 = vadd.f32 %v2560, %v2486
        %v2562 = vadd.f32 %v2561, %v2489
        %v2563 = vadd.f32 %v2562, %v2492
        %v2564 = vadd.f32 %v2563, %v2495
        %v2565 = vadd.f32 %v2564, %v2498
        %v2566 = vadd.f32 %v2565, %v2501
        %v2567 = vadd.f32 %v2566, %v2504
        %v2568 = vadd.f32 %v2567, %v2507
        %v2569 = vadd.f32 %v2568, %v2510
        %v2570 = vadd.f32 %v2569, %v2513
        %v2571 = vrot.slane %v2570, 4
        %v2572 = vadd.f32 %v2570, %v2571
        %v2573 = vrot.slane %v2572, 2
        %v2574 = vadd.f32 %v2572, %v2573
        %v2575 = vrot.slane %v2574, 1
        %v2576 = vadd.f32 %v2574, %v2575
        %v2577 = vmul.f32 %v2534, 0.0078125
        %v2578 = vmul.f32 %v2555, 0.0078125
        %v2579 = vmul.f32 %v2576, 0.0078125
        %v2580 = vmul.f32 %v2463, %v2463
        %v2581 = vmul.f32 %v2464, %v2464
        %v2582 = vmul.f32 %v2465, %v2465
        %v2583 = vsub.f32 %v2577, %v2580
        %v2584 = vsub.f32 %v2578, %v2581
        %v2585 = vsub.f32 %v2579, %v2582
        %v2586 = vmax.f32 %v2583, 0.0
        %v2587 = vmax.f32 %v2584, 0.0
        %v2588 = vmax.f32 %v2585, 0.0
        %v2589 = vadd.f32 %v2586, 1e-05
        %v2590 = vadd.f32 %v2587, 1e-05
        %v2591 = vadd.f32 %v2588, 1e-05
        %v2592 = vrsqrt.pop %v2589
        %v2593 = vrsqrt.pop %v2590
        %v2594 = vrsqrt.pop %v2591
        %v2598 = vcombine.low %v2592, %v2593
        %v2600 = vunpack.c.l.s4 1966171168
        %v2601 = vunpack.c.0.s8 %v2600
        %v2602 = vlaneseq
        %v2603 = vshrl.u32 %v2602, 7
        %v2604 = vsub.s32 %v2601, %v2603
        %v2605 = vrot.slane %v2598, %v2604
        %v2607 = vunpack.c.l.s4 1966171168
        %v2608 = vunpack.c.0.s8 %v2607
        %v2609 = vlaneseq
        %v2610 = vshrl.u32 %v2609, 7
        %v2611 = vsub.s32 %v2608, %v2610
        %v2612 = vrot.slane %v2594, %v2611
        %v2613 = vcombine.low %v2605, %v2612
        %v2615 = vunpack.c.l.s4 1966171168
        %v2616 = vunpack.c.0.s8 %v2615
        %v2617 = vlaneseq
        %v2618 = vshrl.u32 %v2617, 7
        %v2619 = vsub.s32 %v2616, %v2618
        %v2620 = vrot.slane %v2613, %v2619
        %v2622 = vmul.f32 %v278, %v2620
        %v2624 = vlaneseq
        %v2625 = vshrl.u32 %v2624, 7
        %v2626 = vsub.s32 0, %v2625
        %v2627 = vrot.slane %v2622, %v2626
        %v2628 = vlaneseq
        %v2629 = vshrl.u32 %v2628, 7
        %v2630 = vsub.s32 1, %v2629
        %v2631 = vrot.slane %v2622, %v2630
        %v2632 = vlaneseq
        %v2633 = vshrl.u32 %v2632, 7
        %v2634 = vsub.s32 2, %v2633
        %v2635 = vrot.slane %v2622, %v2634
        %v2639 = vmul.f32 %v2463, %v2627
        %v2640 = vmul.f32 %v2464, %v2631
        %v2641 = vmul.f32 %v2465, %v2635
        %v2645 = vcombine.low %v2639, %v2640
        %v2647 = vunpack.c.l.s4 1966171168
        %v2648 = vunpack.c.0.s8 %v2647
        %v2649 = vlaneseq
        %v2650 = vshrl.u32 %v2649, 7
        %v2651 = vsub.s32 %v2648, %v2650
        %v2652 = vrot.slane %v2645, %v2651
        %v2654 = vunpack.c.l.s4 1966171168
        %v2655 = vunpack.c.0.s8 %v2654
        %v2656 = vlaneseq
        %v2657 = vshrl.u32 %v2656, 7
        %v2658 = vsub.s32 %v2655, %v2657
        %v2659 = vrot.slane %v2641, %v2658
        %v2660 = vcombine.low %v2652, %v2659
        %v2662 = vunpack.c.l.s4 1966171168
        %v2663 = vunpack.c.0.s8 %v2662
        %v2664 = vlaneseq
        %v2665 = vshrl.u32 %v2664, 7
        %v2666 = vsub.s32 %v2663, %v2665
        %v2667 = vrot.slane %v2660, %v2666
        %v2669 = vsub.f32 %v280, %v2667
        %v2670 = vmul.f32 %v2128, %v2627
        %v2671 = vmul.f32 %v2130, %v2631
        %v2672 = vmul.f32 %v2338, %v2635
        %v2673 = vmul.f32 %v2132, %v2627
        %v2674 = vmul.f32 %v2134, %v2631
        %v2675 = vmul.f32 %v2341, %v2635
        %v2676 = vmul.f32 %v2138, %v2627
        %v2677 = vmul.f32 %v2140, %v2631
        %v2678 = vmul.f32 %v2346, %v2635
        %v2679 = vmul.f32 %v2142, %v2627
        %v2680 = vmul.f32 %v2144, %v2631
        %v2681 = vmul.f32 %v2349, %v2635
        %v2682 = vmul.f32 %v2148, %v2627
        %v2683 = vmul.f32 %v2150, %v2631
        %v2684 = vmul.f32 %v2354, %v2635
        %v2685 = vmul.f32 %v2152, %v2627
        %v2686 = vmul.f32 %v2154, %v2631
        %v2687 = vmul.f32 %v2357, %v2635
        %v2688 = vmul.f32 %v2158, %v2627
        %v2689 = vmul.f32 %v2160, %v2631
        %v2690 = vmul.f32 %v2362, %v2635
        %v2691 = vmul.f32 %v2162, %v2627
        %v2692 = vmul.f32 %v2164, %v2631
        %v2693 = vmul.f32 %v2365, %v2635
        %v2694 = vmul.f32 %v2168, %v2627
        %v2695 = vmul.f32 %v2170, %v2631
        %v2696 = vmul.f32 %v2370, %v2635
        %v2697 = vmul.f32 %v2172, %v2627
        %v2698 = vmul.f32 %v2174, %v2631
        %v2699 = vmul.f32 %v2373, %v2635
        %v2700 = vmul.f32 %v2178, %v2627
        %v2701 = vmul.f32 %v2180, %v2631
        %v2702 = vmul.f32 %v2378, %v2635
        %v2703 = vmul.f32 %v2182, %v2627
        %v2704 = vmul.f32 %v2184, %v2631
        %v2705 = vmul.f32 %v2381, %v2635
        %v2706 = vmul.f32 %v2188, %v2627
        %v2707 = vmul.f32 %v2190, %v2631
        %v2708 = vmul.f32 %v2386, %v2635
        %v2709 = vmul.f32 %v2192, %v2627
        %v2710 = vmul.f32 %v2194, %v2631
        %v2711 = vmul.f32 %v2389, %v2635
        %v2712 = vmul.f32 %v2198, %v2627
        %v2713 = vmul.f32 %v2200, %v2631
        %v2714 = vmul.f32 %v2394, %v2635
        %v2715 = vmul.f32 %v2202, %v2627
        %v2716 = vmul.f32 %v2204, %v2631
        %v2717 = vmul.f32 %v2397, %v2635
        %v2719 = vlaneseq
        %v2720 = vshrl.u32 %v2719, 7
        %v2721 = vsub.s32 0, %v2720
        %v2722 = vrot.slane %v2669, %v2721
        %v2723 = vlaneseq
        %v2724 = vshrl.u32 %v2723, 7
        %v2725 = vsub.s32 1, %v2724
        %v2726 = vrot.slane %v2669, %v2725
        %v2727 = vlaneseq
        %v2728 = vshrl.u32 %v2727, 7
        %v2729 = vsub.s32 2, %v2728
        %v2730 = vrot.slane %v2669, %v2729
        %v2734 = vadd.f32 %v2670, %v2722
        %v2735 = vadd.f32 %v2671, %v2726
        %v2736 = vadd.f32 %v2672, %v2730
        %v2737 = vadd.f32 %v2673, %v2722
        %v2738 = vadd.f32 %v2674, %v2726
        %v2739 = vadd.f32 %v2675, %v2730
        %v2740 = vadd.f32 %v2676, %v2722
        %v2741 = vadd.f32 %v2677, %v2726
        %v2742 = vadd.f32 %v2678, %v2730
        %v2743 = vadd.f32 %v2679, %v2722
        %v2744 = vadd.f32 %v2680, %v2726
        %v2745 = vadd.f32 %v2681, %v2730
        %v2746 = vadd.f32 %v2682, %v2722
        %v2747 = vadd.f32 %v2683, %v2726
        %v2748 = vadd.f32 %v2684, %v2730
        %v2749 = vadd.f32 %v2685, %v2722
        %v2750 = vadd.f32 %v2686, %v2726
        %v2751 = vadd.f32 %v2687, %v2730
        %v2752 = vadd.f32 %v2688, %v2722
        %v2753 = vadd.f32 %v2689, %v2726
        %v2754 = vadd.f32 %v2690, %v2730
        %v2755 = vadd.f32 %v2691, %v2722
        %v2756 = vadd.f32 %v2692, %v2726
        %v2757 = vadd.f32 %v2693, %v2730
        %v2758 = vadd.f32 %v2694, %v2722
        %v2759 = vadd.f32 %v2695, %v2726
        %v2760 = vadd.f32 %v2696, %v2730
        %v2761 = vadd.f32 %v2697, %v2722
        %v2762 = vadd.f32 %v2698, %v2726
        %v2763 = vadd.f32 %v2699, %v2730
        %v2764 = vadd.f32 %v2700, %v2722
        %v2765 = vadd.f32 %v2701, %v2726
        %v2766 = vadd.f32 %v2702, %v2730
        %v2767 = vadd.f32 %v2703, %v2722
        %v2768 = vadd.f32 %v2704, %v2726
        %v2769 = vadd.f32 %v2705, %v2730
        %v2770 = vadd.f32 %v2706, %v2722
        %v2771 = vadd.f32 %v2707, %v2726
        %v2772 = vadd.f32 %v2708, %v2730
        %v2773 = vadd.f32 %v2709, %v2722
        %v2774 = vadd.f32 %v2710, %v2726
        %v2775 = vadd.f32 %v2711, %v2730
        %v2776 = vadd.f32 %v2712, %v2722
        %v2777 = vadd.f32 %v2713, %v2726
        %v2778 = vadd.f32 %v2714, %v2730
        %v2779 = vadd.f32 %v2715, %v2722
        %v2780 = vadd.f32 %v2716, %v2726
        %v2781 = vadd.f32 %v2717, %v2730
        %v2782 = vmax.f32 %v2734, 0.0
        %v2783 = vmax.f32 %v2735, 0.0
        %v2784 = vmax.f32 %v2736, 0.0
        %v2785 = vmax.f32 %v2737, 0.0
        %v2786 = vmax.f32 %v2738, 0.0
        %v2787 = vmax.f32 %v2739, 0.0
        %v2788 = vmax.f32 %v2740, 0.0
        %v2789 = vmax.f32 %v2741, 0.0
        %v2790 = vmax.f32 %v2742, 0.0
        %v2791 = vmax.f32 %v2743, 0.0
        %v2792 = vmax.f32 %v2744, 0.0
        %v2793 = vmax.f32 %v2745, 0.0
        %v2794 = vmax.f32 %v2746, 0.0
        %v2795 = vmax.f32 %v2747, 0.0
        %v2796 = vmax.f32 %v2748, 0.0
        %v2797 = vmax.f32 %v2749, 0.0
        %v2798 = vmax.f32 %v2750, 0.0
        %v2799 = vmax.f32 %v2751, 0.0
        %v2800 = vmax.f32 %v2752, 0.0
        %v2801 = vmax.f32 %v2753, 0.0
        %v2802 = vmax.f32 %v2754, 0.0
        %v2803 = vmax.f32 %v2755, 0.0
        %v2804 = vmax.f32 %v2756, 0.0
        %v2805 = vmax.f32 %v2757, 0.0
        %v2806 = vmax.f32 %v2758, 0.0
        %v2807 = vmax.f32 %v2759, 0.0
        %v2808 = vmax.f32 %v2760, 0.0
        %v2809 = vmax.f32 %v2761, 0.0
        %v2810 = vmax.f32 %v2762, 0.0
        %v2811 = vmax.f32 %v2763, 0.0
        %v2812 = vmax.f32 %v2764, 0.0
        %v2813 = vmax.f32 %v2765, 0.0
        %v2814 = vmax.f32 %v2766, 0.0
        %v2815 = vmax.f32 %v2767, 0.0
        %v2816 = vmax.f32 %v2768, 0.0
        %v2817 = vmax.f32 %v2769, 0.0
        %v2818 = vmax.f32 %v2770, 0.0
        %v2819 = vmax.f32 %v2771, 0.0
        %v2820 = vmax.f32 %v2772, 0.0
        %v2821 = vmax.f32 %v2773, 0.0
        %v2822 = vmax.f32 %v2774, 0.0
        %v2823 = vmax.f32 %v2775, 0.0
        %v2824 = vmax.f32 %v2776, 0.0
        %v2825 = vmax.f32 %v2777, 0.0
        %v2826 = vmax.f32 %v2778, 0.0
        %v2827 = vmax.f32 %v2779, 0.0
        %v2828 = vmax.f32 %v2780, 0.0
        %v2829 = vmax.f32 %v2781, 0.0
        %v2830 = vpack.c.bf16 %v2785, %v2782
        %v2831 = vpack.c.bf16 %v2786, %v2783
        %v2832 = vpack.c.bf16 %v2787, %v2784
        %v2833 = vpack.c.bf16 %v2791, %v2788
        %v2834 = vpack.c.bf16 %v2792, %v2789
        %v2835 = vpack.c.bf16 %v2793, %v2790
        %v2836 = vpack.c.bf16 %v2797, %v2794
        %v2837 = vpack.c.bf16 %v2798, %v2795
        %v2838 = vpack.c.bf16 %v2799, %v2796
        %v2839 = vpack.c.bf16 %v2803, %v2800
        %v2840 = vpack.c.bf16 %v2804, %v2801
        %v2841 = vpack.c.bf16 %v2805, %v2802
        %v2842 = vpack.c.bf16 %v2809, %v2806
        %v2843 = vpack.c.bf16 %v2810, %v2807
        %v2844 = vpack.c.bf16 %v2811, %v2808
        %v2845 = vpack.c.bf16 %v2815, %v2812
        %v2846 = vpack.c.bf16 %v2816, %v2813
        %v2847 = vpack.c.bf16 %v2817, %v2814
        %v2848 = vpack.c.bf16 %v2821, %v2818
        %v2849 = vpack.c.bf16 %v2822, %v2819
        %v2850 = vpack.c.bf16 %v2823, %v2820
        %v2851 = vpack.c.bf16 %v2827, %v2824
        %v2852 = vpack.c.bf16 %v2828, %v2825
        %v2853 = vpack.c.bf16 %v2829, %v2826
        %v2854 = vld [vmem:[%s5] sm:$0xf]
        %v2855 = vld [vmem:[%s5 + $0x4] sm:$0xf]
        %v2856 = vld [vmem:[%s5 + $0x8] sm:$0xf]
        %v2857 = vld [vmem:[%s5 + $0xc] sm:$0xf]
        %v2858 = vld [vmem:[%s5 + $0x10] sm:$0xf]
        %v2859 = vld [vmem:[%s5 + $0x14] sm:$0xf]
        %v2860 = vld [vmem:[%s5 + $0x18] sm:$0xf]
        %v2861 = vld [vmem:[%s5 + $0x1c] sm:$0xf]
        %v2862 = vld [vmem:[%s5 + $0x20] sm:$0xf]
        %v2863 = vld [vmem:[%s5 + $0x24] sm:$0xf]
        %v2864 = vld [vmem:[%s5 + $0x28] sm:$0xf]
        %v2865 = vld [vmem:[%s5 + $0x2c] sm:$0xf]
        %v2866 = vld [vmem:[%s5 + $0x30] sm:$0xf]
        %v2867 = vld [vmem:[%s5 + $0x34] sm:$0xf]
        %v2868 = vld [vmem:[%s5 + $0x38] sm:$0xf]
        %v2869 = vld [vmem:[%s5 + $0x3c] sm:$0xf]
        %v2870 = vld [vmem:[%s5 + $0x40] sm:$0xf]
        %v2871 = vld [vmem:[%s5 + $0x44] sm:$0xf]
        %v2872 = vld [vmem:[%s5 + $0x48] sm:$0xf]
        %v2873 = vld [vmem:[%s5 + $0x4c] sm:$0xf]
        %v2874 = vld [vmem:[%s5 + $0x50] sm:$0xf]
        %v2875 = vld [vmem:[%s5 + $0x54] sm:$0xf]
        %v2876 = vld [vmem:[%s5 + $0x58] sm:$0xf]
        %v2877 = vld [vmem:[%s5 + $0x5c] sm:$0xf]
        %v2878 = vld [vmem:[%s5 + $0x60] sm:$0xf]
        %v2879 = vld [vmem:[%s5 + $0x64] sm:$0xf]
        %v2880 = vld [vmem:[%s5 + $0x68] sm:$0xf]
        %v2881 = vld [vmem:[%s5 + $0x6c] sm:$0xf]
        %v2882 = vld [vmem:[%s5 + $0x70] sm:$0xf]
        %v2883 = vld [vmem:[%s5 + $0x74] sm:$0xf]
        %v2884 = vld [vmem:[%s5 + $0x78] sm:$0xf]
        %v2885 = vld [vmem:[%s5 + $0x7c] sm:$0xf]
        %v2886 = vld [vmem:[%s5 + $0x80] sm:$0xf]
        %v2887 = vld [vmem:[%s5 + $0x84] sm:$0xf]
        %v2888 = vld [vmem:[%s5 + $0x88] sm:$0xf]
        %v2889 = vld [vmem:[%s5 + $0x8c] sm:$0xf]
        %v2890 = vld [vmem:[%s5 + $0x90] sm:$0xf]
        %v2891 = vld [vmem:[%s5 + $0x94] sm:$0xf]
        %v2892 = vld [vmem:[%s5 + $0x98] sm:$0xf]
        %v2893 = vld [vmem:[%s5 + $0x9c] sm:$0xf]
        %v2894 = vld [vmem:[%s5 + $0xa0] sm:$0xf]
        %v2895 = vld [vmem:[%s5 + $0xa4] sm:$0xf]
        %v2896 = vld [vmem:[%s5 + $0xa8] sm:$0xf]
        %v2897 = vld [vmem:[%s5 + $0xac] sm:$0xf]
        %v2898 = vld [vmem:[%s5 + $0xb0] sm:$0xf]
        %v2899 = vld [vmem:[%s5 + $0xb4] sm:$0xf]
        %v2900 = vld [vmem:[%s5 + $0xb8] sm:$0xf]
        %v2901 = vld [vmem:[%s5 + $0xbc] sm:$0xf]
        %v2950 = vunpack.c.l.b16 %v2854
        %v2951 = vunpack.c.l.b16 %v2855
        %v2952 = vunpack.c.l.b16 %v2856
        %v2953 = vunpack.c.l.b16 %v2857
        %v2954 = vunpack.c.l.b16 %v2858
        %v2955 = vunpack.c.l.b16 %v2859
        %v2956 = vunpack.c.l.b16 %v2860
        %v2957 = vunpack.c.l.b16 %v2861
        %v2958 = vunpack.c.l.b16 %v2862
        %v2959 = vunpack.c.l.b16 %v2863
        %v2960 = vunpack.c.l.b16 %v2864
        %v2961 = vunpack.c.l.b16 %v2865
        %v2962 = vunpack.c.l.b16 %v2866
        %v2963 = vunpack.c.l.b16 %v2867
        %v2964 = vunpack.c.l.b16 %v2868
        %v2965 = vunpack.c.l.b16 %v2869
        %v2966 = vunpack.c.l.b16 %v2870
        %v2967 = vunpack.c.l.b16 %v2871
        %v2968 = vunpack.c.l.b16 %v2872
        %v2969 = vunpack.c.l.b16 %v2873
        %v2970 = vunpack.c.l.b16 %v2874
        %v2971 = vunpack.c.l.b16 %v2875
        %v2972 = vunpack.c.l.b16 %v2876
        %v2973 = vunpack.c.l.b16 %v2877
        %v2974 = vunpack.c.l.b16 %v2878
        %v2975 = vunpack.c.l.b16 %v2879
        %v2976 = vunpack.c.l.b16 %v2880
        %v2977 = vunpack.c.l.b16 %v2881
        %v2978 = vunpack.c.l.b16 %v2882
        %v2979 = vunpack.c.l.b16 %v2883
        %v2980 = vunpack.c.l.b16 %v2884
        %v2981 = vunpack.c.l.b16 %v2885
        %v2982 = vunpack.c.l.b16 %v2886
        %v2983 = vunpack.c.l.b16 %v2887
        %v2984 = vunpack.c.l.b16 %v2888
        %v2985 = vunpack.c.l.b16 %v2889
        %v2986 = vunpack.c.l.b16 %v2890
        %v2987 = vunpack.c.l.b16 %v2891
        %v2988 = vunpack.c.l.b16 %v2892
        %v2989 = vunpack.c.l.b16 %v2893
        %v2990 = vunpack.c.l.b16 %v2894
        %v2991 = vunpack.c.l.b16 %v2895
        %v2992 = vunpack.c.l.b16 %v2896
        %v2993 = vunpack.c.l.b16 %v2897
        %v2994 = vunpack.c.l.b16 %v2898
        %v2995 = vunpack.c.l.b16 %v2899
        %v2996 = vunpack.c.l.b16 %v2900
        %v2997 = vunpack.c.l.b16 %v2901
        %v2998 = vpack.c.b16 %v2951, %v2950
        %v2999 = vpack.c.b16 %v2953, %v2952
        %v3000 = vpack.c.b16 %v2955, %v2954
        %v3001 = vpack.c.b16 %v2957, %v2956
        %v3002 = vpack.c.b16 %v2959, %v2958
        %v3003 = vpack.c.b16 %v2961, %v2960
        %v3004 = vpack.c.b16 %v2963, %v2962
        %v3005 = vpack.c.b16 %v2965, %v2964
        %v3006 = vpack.c.b16 %v2967, %v2966
        %v3007 = vpack.c.b16 %v2969, %v2968
        %v3008 = vpack.c.b16 %v2971, %v2970
        %v3009 = vpack.c.b16 %v2973, %v2972
        %v3010 = vpack.c.b16 %v2975, %v2974
        %v3011 = vpack.c.b16 %v2977, %v2976
        %v3012 = vpack.c.b16 %v2979, %v2978
        %v3013 = vpack.c.b16 %v2981, %v2980
        %v3014 = vpack.c.b16 %v2983, %v2982
        %v3015 = vpack.c.b16 %v2985, %v2984
        %v3016 = vpack.c.b16 %v2987, %v2986
        %v3017 = vpack.c.b16 %v2989, %v2988
        %v3018 = vpack.c.b16 %v2991, %v2990
        %v3019 = vpack.c.b16 %v2993, %v2992
        %v3020 = vpack.c.b16 %v2995, %v2994
        %v3021 = vpack.c.b16 %v2997, %v2996
        %3046 = vmatprep.subr.bf16.mxu0 0
        %3047 = vmatpush1.bf16.msra.mxu0 %v2998
        %3048 = vmatprep.subr.bf16.mxu0 0
        %3049 = vmatpush1.bf16.msra.mxu0 %v2999
        %3050 = vmatprep.subr.bf16.mxu0 0
        %3051 = vmatpush1.bf16.msra.mxu0 %v3000
        %3052 = vmatprep.subr.bf16.mxu0 0
        %3053 = vmatpush1.bf16.msra.mxu0 %v3001
        %3054 = vmatprep.subr.bf16.mxu0 0
        %3055 = vmatpush1.bf16.msra.mxu0 %v3002
        %3056 = vmatprep.subr.bf16.mxu0 0
        %3057 = vmatpush1.bf16.msra.mxu0 %v3003
        %3058 = vmatprep.subr.bf16.mxu0 0
        %3059 = vmatpush1.bf16.msra.mxu0 %v3004
        %3060 = vmatprep.subr.bf16.mxu0 0
        %3061 = vmatpush1.bf16.msra.mxu0 %v3005
        %3062 = vmatprep.subr.bf16.mxu0 0
        %3063 = vmatpush1.bf16.msra.mxu0 %v3006
        %3064 = vmatprep.subr.bf16.mxu0 0
        %3065 = vmatpush1.bf16.msra.mxu0 %v3007
        %3066 = vmatprep.subr.bf16.mxu0 0
        %3067 = vmatpush1.bf16.msra.mxu0 %v3008
        %3068 = vmatprep.subr.bf16.mxu0 0
        %3069 = vmatpush1.bf16.msra.mxu0 %v3009
        %3070 = vmatprep.subr.bf16.mxu0 0
        %3071 = vmatpush1.bf16.msra.mxu0 %v3010
        %3072 = vmatprep.subr.bf16.mxu0 0
        %3073 = vmatpush1.bf16.msra.mxu0 %v3011
        %3074 = vmatprep.subr.bf16.mxu0 0
        %3075 = vmatpush1.bf16.msra.mxu0 %v3012
        %3076 = vmatprep.subr.bf16.mxu0 0
        %3077 = vmatpush1.bf16.msra.mxu0 %v3013
        %3078 = vmatprep.mubr.bf16.mxu0 %v2831
        %3079 = vmatmul.mubr.bf16.gmra.mrb[0].mxu0 %v2830
        %v3080 = vpop.f32.mrb[0].mxu0
        %v3081 = vadd.f32 %v281, %v3080
        %v3082 = vpop.f32.mrb[0].mxu0
        %v3083 = vpop.f32.mrb[0].mxu0
        %v3084 = vadd.f32 %v281, %v3083
        %v3085 = vpop.f32.mrb[0].mxu0
        %3086 = vmatprep.mubr.bf16.mxu0 %v2834
        %3087 = vmatmul.mubr.bf16.gmra.mrb[0].mxu0 %v2833
        %v3088 = vpop.f32.mrb[0].mxu0
        %v3089 = vadd.f32 %v281, %v3088
        %v3090 = vpop.f32.mrb[0].mxu0
        %v3091 = vpop.f32.mrb[0].mxu0
        %v3092 = vadd.f32 %v281, %v3091
        %v3093 = vpop.f32.mrb[0].mxu0
        %3094 = vmatprep.mubr.bf16.mxu0 %v2837
        %3095 = vmatmul.mubr.bf16.gmra.mrb[0].mxu0 %v2836
        %v3096 = vpop.f32.mrb[0].mxu0
        %v3097 = vadd.f32 %v281, %v3096
        %v3098 = vpop.f32.mrb[0].mxu0
        %v3099 = vpop.f32.mrb[0].mxu0
        %v3100 = vadd.f32 %v281, %v3099
        %v3101 = vpop.f32.mrb[0].mxu0
        %3102 = vmatprep.mubr.bf16.mxu0 %v2840
        %3103 = vmatmul.mubr.bf16.gmra.mrb[0].mxu0 %v2839
        %v3104 = vpop.f32.mrb[0].mxu0
        %v3105 = vadd.f32 %v281, %v3104
        %v3106 = vpop.f32.mrb[0].mxu0
        %v3107 = vpop.f32.mrb[0].mxu0
        %v3108 = vadd.f32 %v281, %v3107
        %v3109 = vpop.f32.mrb[0].mxu0
        %3110 = vmatprep.mubr.bf16.mxu0 %v2843
        %3111 = vmatmul.mubr.bf16.gmra.mrb[0].mxu0 %v2842
        %v3112 = vpop.f32.mrb[0].mxu0
        %v3113 = vadd.f32 %v281, %v3112
        %v3114 = vpop.f32.mrb[0].mxu0
        %v3115 = vpop.f32.mrb[0].mxu0
        %v3116 = vadd.f32 %v281, %v3115
        %v3117 = vpop.f32.mrb[0].mxu0
        %3118 = vmatprep.mubr.bf16.mxu0 %v2846
        %3119 = vmatmul.mubr.bf16.gmra.mrb[0].mxu0 %v2845
        %v3120 = vpop.f32.mrb[0].mxu0
        %v3121 = vadd.f32 %v281, %v3120
        %v3122 = vpop.f32.mrb[0].mxu0
        %v3123 = vpop.f32.mrb[0].mxu0
        %v3124 = vadd.f32 %v281, %v3123
        %v3125 = vpop.f32.mrb[0].mxu0
        %3126 = vmatprep.mubr.bf16.mxu0 %v2849
        %3127 = vmatmul.mubr.bf16.gmra.mrb[0].mxu0 %v2848
        %v3128 = vpop.f32.mrb[0].mxu0
        %v3129 = vadd.f32 %v281, %v3128
        %v3130 = vpop.f32.mrb[0].mxu0
        %v3131 = vpop.f32.mrb[0].mxu0
        %v3132 = vadd.f32 %v281, %v3131
        %v3133 = vpop.f32.mrb[0].mxu0
        %3134 = vmatprep.mubr.bf16.mxu0 %v2852
        %3135 = vmatmul.mubr.bf16.gmra.mrb[0].mxu0 %v2851
        %v3136 = vpop.f32.mrb[0].mxu0
        %v3137 = vadd.f32 %v281, %v3136
        %v3138 = vpop.f32.mrb[0].mxu0
        %v3139 = vpop.f32.mrb[0].mxu0
        %v3140 = vadd.f32 %v281, %v3139
        %v3141 = vpop.f32.mrb[0].mxu0
        %3142 = vdwg.mxu0
        %3143 = vmatprep.subr.bf16.mxu0 0
        %3144 = vmatpush1.bf16.msra.mxu0 %v3014
        %3145 = vmatprep.subr.bf16.mxu0 0
        %3146 = vmatpush1.bf16.msra.mxu0 %v3015
        %3147 = vmatprep.subr.bf16.mxu0 0
        %3148 = vmatpush1.bf16.msra.mxu0 %v3016
        %3149 = vmatprep.subr.bf16.mxu0 0
        %3150 = vmatpush1.bf16.msra.mxu0 %v3017
        %3151 = vmatprep.subr.bf16.mxu0 0
        %3152 = vmatpush1.bf16.msra.mxu0 %v3018
        %3153 = vmatprep.subr.bf16.mxu0 0
        %3154 = vmatpush1.bf16.msra.mxu0 %v3019
        %3155 = vmatprep.subr.bf16.mxu0 0
        %3156 = vmatpush1.bf16.msra.mxu0 %v3020
        %3157 = vmatprep.subr.bf16.mxu0 0
        %3158 = vmatpush1.bf16.msra.mxu0 %v3021
        %3159 = vmatprep.subr.bf16.mxu0 0
        %3160 = vmatpush1.bf16.msra.mxu0 0
        %3161 = vmatprep.subr.bf16.mxu0 0
        %3162 = vmatpush1.bf16.msra.mxu0 0
        %3163 = vmatprep.subr.bf16.mxu0 0
        %3164 = vmatpush1.bf16.msra.mxu0 0
        %3165 = vmatprep.subr.bf16.mxu0 0
        %3166 = vmatpush1.bf16.msra.mxu0 0
        %3167 = vmatprep.subr.bf16.mxu0 0
        %3168 = vmatpush1.bf16.msra.mxu0 0
        %3169 = vmatprep.subr.bf16.mxu0 0
        %3170 = vmatpush1.bf16.msra.mxu0 0
        %3171 = vmatprep.subr.bf16.mxu0 0
        %3172 = vmatpush1.bf16.msra.mxu0 0
        %3173 = vmatprep.subr.bf16.mxu0 0
        %3174 = vmatpush1.bf16.msra.mxu0 0
        %3175 = vmatprep.mubr.bf16.mxu0 0
        %3176 = vmatmul.mubr.bf16.gmra.mrb[0].mxu0 %v2832
        %v3177 = vpop.f32.mrb[0].mxu0
        %v3178 = vadd.f32 %v3081, %v3177
        %v3179 = vpop.f32.mrb[0].mxu0
        %v3180 = vpop.f32.mrb[0].mxu0
        %v3181 = vadd.f32 %v3084, %v3180
        %v3182 = vpop.f32.mrb[0].mxu0
        %3183 = vmatprep.mubr.bf16.mxu0 0
        %3184 = vmatmul.mubr.bf16.gmra.mrb[0].mxu0 %v2835
        %v3185 = vpop.f32.mrb[0].mxu0
        %v3186 = vadd.f32 %v3089, %v3185
        %v3187 = vpop.f32.mrb[0].mxu0
        %v3188 = vpop.f32.mrb[0].mxu0
        %v3189 = vadd.f32 %v3092, %v3188
        %v3190 = vpop.f32.mrb[0].mxu0
        %3191 = vmatprep.mubr.bf16.mxu0 0
        %3192 = vmatmul.mubr.bf16.gmra.mrb[0].mxu0 %v2838
        %v3193 = vpop.f32.mrb[0].mxu0
        %v3194 = vadd.f32 %v3097, %v3193
        %v3195 = vpop.f32.mrb[0].mxu0
        %v3196 = vpop.f32.mrb[0].mxu0
        %v3197 = vadd.f32 %v3100, %v3196
        %v3198 = vpop.f32.mrb[0].mxu0
        %3199 = vmatprep.mubr.bf16.mxu0 0
        %3200 = vmatmul.mubr.bf16.gmra.mrb[0].mxu0 %v2841
        %v3201 = vpop.f32.mrb[0].mxu0
        %v3202 = vadd.f32 %v3105, %v3201
        %v3203 = vpop.f32.mrb[0].mxu0
        %v3204 = vpop.f32.mrb[0].mxu0
        %v3205 = vadd.f32 %v3108, %v3204
        %v3206 = vpop.f32.mrb[0].mxu0
        %3207 = vmatprep.mubr.bf16.mxu0 0
        %3208 = vmatmul.mubr.bf16.gmra.mrb[0].mxu0 %v2844
        %v3209 = vpop.f32.mrb[0].mxu0
        %v3210 = vadd.f32 %v3113, %v3209
        %v3211 = vpop.f32.mrb[0].mxu0
        %v3212 = vpop.f32.mrb[0].mxu0
        %v3213 = vadd.f32 %v3116, %v3212
        %v3214 = vpop.f32.mrb[0].mxu0
        %3215 = vmatprep.mubr.bf16.mxu0 0
        %3216 = vmatmul.mubr.bf16.gmra.mrb[0].mxu0 %v2847
        %v3217 = vpop.f32.mrb[0].mxu0
        %v3218 = vadd.f32 %v3121, %v3217
        %v3219 = vpop.f32.mrb[0].mxu0
        %v3220 = vpop.f32.mrb[0].mxu0
        %v3221 = vadd.f32 %v3124, %v3220
        %v3222 = vpop.f32.mrb[0].mxu0
        %3223 = vmatprep.mubr.bf16.mxu0 0
        %3224 = vmatmul.mubr.bf16.gmra.mrb[0].mxu0 %v2850
        %v3225 = vpop.f32.mrb[0].mxu0
        %v3226 = vadd.f32 %v3129, %v3225
        %v3227 = vpop.f32.mrb[0].mxu0
        %v3228 = vpop.f32.mrb[0].mxu0
        %v3229 = vadd.f32 %v3132, %v3228
        %v3230 = vpop.f32.mrb[0].mxu0
        %3231 = vmatprep.mubr.bf16.mxu0 0
        %3232 = vmatmul.mubr.bf16.gmra.mrb[0].mxu0 %v2853
        %v3233 = vpop.f32.mrb[0].mxu0
        %v3234 = vadd.f32 %v3137, %v3233
        %v3235 = vpop.f32.mrb[0].mxu0
        %v3236 = vpop.f32.mrb[0].mxu0
        %v3237 = vadd.f32 %v3140, %v3236
        %v3238 = vpop.f32.mrb[0].mxu0
        %3239 = vdwg.mxu0
        %s3240 = sld [smem:[#allocation2]]
        %v3241 = vtanh.pop %v3178
        %v3242 = vtanh.pop %v3181
        %v3243 = vtanh.pop %v3186
        %v3244 = vtanh.pop %v3189
        %v3245 = vtanh.pop %v3194
        %v3246 = vtanh.pop %v3197
        %v3247 = vtanh.pop %v3202
        %v3248 = vtanh.pop %v3205
        %v3249 = vtanh.pop %v3210
        %v3250 = vtanh.pop %v3213
        %v3251 = vtanh.pop %v3218
        %v3252 = vtanh.pop %v3221
        %v3253 = vtanh.pop %v3226
        %v3254 = vtanh.pop %v3229
        %v3255 = vtanh.pop %v3234
        %v3256 = vtanh.pop %v3237
        %v3257 = vstv %s3240
        %v3258 = vmul.f32 %v3257, %v3241
        %v3259 = vmul.f32 %v3257, %v3242
        %v3260 = vmul.f32 %v3257, %v3243
        %v3261 = vmul.f32 %v3257, %v3244
        %v3262 = vmul.f32 %v3257, %v3245
        %v3263 = vmul.f32 %v3257, %v3246
        %v3264 = vmul.f32 %v3257, %v3247
        %v3265 = vmul.f32 %v3257, %v3248
        %v3266 = vmul.f32 %v3257, %v3249
        %v3267 = vmul.f32 %v3257, %v3250
        %v3268 = vmul.f32 %v3257, %v3251
        %v3269 = vmul.f32 %v3257, %v3252
        %v3270 = vmul.f32 %v3257, %v3253
        %v3271 = vmul.f32 %v3257, %v3254
        %v3272 = vmul.f32 %v3257, %v3255
        %v3273 = vmul.f32 %v3257, %v3256
        %3274 = vst [vmem:[%s260] sm:$0xff] %v3258
        %3275 = vst [vmem:[%s260 + $0x8] sm:$0xff] %v3259
        %3276 = vst [vmem:[%s260 + $0x10] sm:$0xff] %v3260
        %3277 = vst [vmem:[%s260 + $0x18] sm:$0xff] %v3261
        %3278 = vst [vmem:[%s260 + $0x20] sm:$0xff] %v3262
        %3279 = vst [vmem:[%s260 + $0x28] sm:$0xff] %v3263
        %3280 = vst [vmem:[%s260 + $0x30] sm:$0xff] %v3264
        %3281 = vst [vmem:[%s260 + $0x38] sm:$0xff] %v3265
        %3282 = vst [vmem:[%s260 + $0x40] sm:$0xff] %v3266
        %3283 = vst [vmem:[%s260 + $0x48] sm:$0xff] %v3267
        %3284 = vst [vmem:[%s260 + $0x50] sm:$0xff] %v3268
        %3285 = vst [vmem:[%s260 + $0x58] sm:$0xff] %v3269
        %3286 = vst [vmem:[%s260 + $0x60] sm:$0xff] %v3270
        %3287 = vst [vmem:[%s260 + $0x68] sm:$0xff] %v3271
        %3288 = vst [vmem:[%s260 + $0x70] sm:$0xff] %v3272
        %3289 = vst [vmem:[%s260 + $0x78] sm:$0xff] %v3273
        %s3290 = sand.u32 %s161, 1
        %s3291 = scalar_lea.sflag [#allocation5], %s3290
        %s3292 = sand.u32 %s161, 1
        %s3293 = smul.addr %s3292, 128
        %s3294 = scalar_lea.vmem [#allocation6], %s3293
        // Predicated region
        $region49: #{tpu_custom_call.1} parent=43 // pred_check
          %p3295 = pneg %p171
        $region50: #{tpu_custom_call.1} parent=43 // pred_check_branch
          %3297 = sbr.rel (%p3295) target = $region52
        $region51: #{tpu_custom_call.1} parent=43 // pred_region
          %s3299 = ssub.s32 2048, 2048
          %3300 = vsyncadd %s3291, %s3299
          %s3301 = smul.addr %s22, 16
          %s3302 = smul.addr %s3301, 128
          %s3303 = scalar_lea.hbm %s6, %s3302
          %s3304 = sshll.u32 %s3294, 4
          %s3305 = int_to_ptr.vmem [resolvable:$true] %s3304
          %3310 = dma.vmem_to_hbm [thread:$0]  %s3305, 2048, %s3303, %s3291, 128, 128, 8
        $region52: #{tpu_custom_call.1} parent=43 // pred_fallthru
          _
      $region44: #{tpu_custom_call.1} parent=5 // pred_fallthru
        _
      %p3311 = scmp.le.s32.totalorder 2, %s17
      // Predicated region
      $region53: #{tpu_custom_call.1} parent=5 // pred_check
        %p3312 = pneg %p3311
      $region54: #{tpu_custom_call.1} parent=5 // pred_check_branch
        %3314 = sbr.rel (%p3312) target = $region56
      $region55: #{tpu_custom_call.1} parent=5 // pred_region
        %s3315 = ssub.s32 %s17, 2
        // Predicated region
        $region57: #{tpu_custom_call.1} parent=55 // pred_check
          %p3316 = pneg %p177
        $region58: #{tpu_custom_call.1} parent=55 // pred_check_branch
          %3318 = sbr.rel (%p3316) target = $region60
        $region59: #{tpu_custom_call.1} parent=55 // pred_region
          %s3319 = sand.u32 %s162, 1
          %s3320 = scalar_lea.sflag [#allocation5], %s3319
          %s3321 = sand.u32 %s162, 1
          %s3322 = smul.addr %s3321, 128
          %s3323 = scalar_lea.vmem [#allocation6], %s3322
          %3324 = dma.done %s3320, 2048
        $region60: #{tpu_custom_call.1} parent=55 // pred_fallthru
          _
      $region56: #{tpu_custom_call.1} parent=5 // pred_fallthru
        _
    $region6: #{tpu_custom_call.1} parent=1 // loop_footer
      %s21 = sadd.s32 1, %s17
    $region7: #{tpu_custom_call.1} parent=1 // loop_footer_branch
      %16 = sbr.rel target = $region3
    $region8: #{tpu_custom_call.1} parent=1 // loop_exit
      _
    %3325 = vsyncpa [#allocation4], 1
    %s3326 = scalar_lea.sflag [#allocation4], 1
    %3327 = vsyncpa %s3326, 1
    %3328 = vsyncpa [#allocation5], 1
    %s3329 = scalar_lea.sflag [#allocation5], 1
    %3330 = vsyncpa %s3329, 1

</llo_original>
